<compile_context>
chip_gen: v5e
topology: v5e:2x2
jax: 0.10.0
libtpu: 0.0.40
codegen_flags: <defaults>
</compile_context>

<pallas_src>
import functools

import jax
import jax.numpy as jnp
from jax.experimental import pallas as pl
from jax.experimental.pallas import tpu as pltpu

EPS = 1e-5


# ----------------------------- in-kernel helpers -----------------------------
def _pad_hw1(v):
    """Zero-pad the two spatial dims of an NHWC tile by 1 on each side (in VMEM)."""
    b, h, w, c = v.shape
    zr = jnp.zeros((b, 1, w, c), v.dtype)
    v = jnp.concatenate([zr, v, zr], axis=1)          # (b, h+2, w, c)
    zc = jnp.zeros((b, h + 2, 1, c), v.dtype)
    return jnp.concatenate([zc, v, zc], axis=2)       # (b, h+2, w+2, c)


def _conv3x3_im2col(xpad, w_flat):
    """3x3 'same' conv as a single im2col matmul.

    xpad   : (B, H+2, W+2, C)   zero-padded input tile
    w_flat : (9*C, Co)          rows ordered (ky, kx, c)
    returns (B*H*W, Co) float32
    """
    b, hp, wp, c = xpad.shape
    h, w = hp - 2, wp - 2
    taps = [xpad[:, ky:ky + h, kx:kx + w, :]
            for ky in range(3) for kx in range(3)]
    patches = jnp.concatenate(taps, axis=-1).reshape(b * h * w, 9 * c)
    return jnp.dot(patches, w_flat, preferred_element_type=jnp.float32)


# --------------------------------- the kernel --------------------------------
def _residual_block_kernel(x_ref, w1_ref, w2_ref, wd_ref, bn_ref, o_ref,
                           y1_buf, yd_buf, y2_buf, stats,
                           *, total_rows, eps):
    p = pl.program_id(0)        # phase: 0 conv1/conv_d, 1 bn1+relu+conv2, 2 epilogue
    t = pl.program_id(1)        # batch tile
    tn, H, W, _ = x_ref.shape
    Co = o_ref.shape[-1]
    inv_cnt = 1.0 / float(total_rows)    # BN count = N*H*W (full batch)

    def bn_scale_shift(s_row, ss_row, g_row, b_row):
        # one-pass batch statistics: var = E[x^2] - mean^2, clamped >= 0
        mean = s_row * inv_cnt
        var = jnp.maximum(ss_row * inv_cnt - mean * mean, 0.0)
        scale = g_row * jax.lax.rsqrt(var + eps)
        return scale, b_row - mean * scale

    @pl.when(jnp.logical_and(p == 0, t == 0))
    def _init():
        stats[...] = jnp.zeros_like(stats)

    # ---- phase 0: conv1 and downsample conv, accumulate their BN sums ----
    @pl.when(p == 0)
    def _phase0():
        xp = _pad_hw1(x_ref[...])
        y1 = _conv3x3_im2col(xp, w1_ref[...])            # (tn*H*W, Co) f32
        yd = _conv3x3_im2col(xp, wd_ref[...])
        y1_buf[pl.ds(t * tn, tn)] = y1.reshape(tn, H * W, Co)
        yd_buf[pl.ds(t * tn, tn)] = yd.reshape(tn, H * W, Co)
        stats[0:1, :] += jnp.sum(y1, axis=0, keepdims=True)
        stats[1:2, :] += jnp.sum(y1 * y1, axis=0, keepdims=True)
        stats[2:3, :] += jnp.sum(yd, axis=0, keepdims=True)
        stats[3:4, :] += jnp.sum(yd * yd, axis=0, keepdims=True)

    # ---- phase 1: mid = relu(bn1(y1)); y2 = conv2(mid); accumulate its sums ----
    @pl.when(p == 1)
    def _phase1():
        scale1, shift1 = bn_scale_shift(stats[0:1, :], stats[1:2, :],
                                        bn_ref[0:1, :], bn_ref[1:2, :])
        y1 = y1_buf[pl.ds(t * tn, tn)]                   # (tn, H*W, Co)
        mid = jnp.maximum(y1 * scale1 + shift1, 0.0)
        mid = mid.reshape(tn, H, W, Co).astype(w2_ref.dtype)
        y2 = _conv3x3_im2col(_pad_hw1(mid), w2_ref[...])
        y2_buf[pl.ds(t * tn, tn)] = y2.reshape(tn, H * W, Co)
        stats[4:5, :] += jnp.sum(y2, axis=0, keepdims=True)
        stats[5:6, :] += jnp.sum(y2 * y2, axis=0, keepdims=True)

    # ---- phase 2: out = relu(bn2(y2) + bn_d(yd)) ----
    @pl.when(p == 2)
    def _phase2():
        scale2, shift2 = bn_scale_shift(stats[4:5, :], stats[5:6, :],
                                        bn_ref[2:3, :], bn_ref[3:4, :])
        scaled, shiftd = bn_scale_shift(stats[2:3, :], stats[3:4, :],
                                        bn_ref[4:5, :], bn_ref[5:6, :])
        y2 = y2_buf[pl.ds(t * tn, tn)]
        yd = yd_buf[pl.ds(t * tn, tn)]
        o_ref[...] = jnp.maximum(y2 * scale2 + shift2 + yd * scaled + shiftd, 0.0)


# --------------------------------- the wrapper --------------------------------
def residual_block_pallas(x_nchw, params, *, tile_n=1, compute_dtype=jnp.float32):
    """Forward pass of ResidualBlock(in_ch, out_ch, stride=1) with projection branch."""
    x = jnp.transpose(x_nchw, (0, 2, 3, 1)).astype(compute_dtype)     # NCHW -> NHWC
    N, H, W, Cin = x.shape
    Cout = params["w1"].shape[-1]
    assert N % tile_n == 0, "batch must be divisible by tile_n"
    nt = N // tile_n

    # HWIO (3,3,Ci,Co) -> (9*Ci, Co); row order (ky, kx, c) matches the kernel's im2col.
    w1f = params["w1"].reshape(9 * Cin, Cout).astype(compute_dtype)
    w2f = params["w2"].reshape(9 * Cout, Cout).astype(compute_dtype)
    wdf = params["wd"].reshape(9 * Cin, Cout).astype(compute_dtype)
    # Pack all BN affine params into a single resident (6, Cout) array.
    bn = jnp.stack([params["g1"], params["b1"], params["g2"],
                    params["b2"], params["gd"], params["bd"]], axis=0).astype(jnp.float32)

    kernel = functools.partial(_residual_block_kernel,
                               total_rows=N * H * W, eps=EPS)

    out = pl.pallas_call(
        kernel,
        grid=(3, nt),                      # (phase, batch tile) -- phase is outer
        in_specs=[
            # x is only needed in phase 0; afterwards pin block 0 (stays resident).
            pl.BlockSpec((tile_n, H, W, Cin),
                         lambda p, t: (jnp.where(p == 0, t, 0), 0, 0, 0)),
            pl.BlockSpec((9 * Cin, Cout), lambda p, t: (0, 0)),    # w1  (resident)
            pl.BlockSpec((9 * Cout, Cout), lambda p, t: (0, 0)),   # w2  (resident)
            pl.BlockSpec((9 * Cin, Cout), lambda p, t: (0, 0)),    # w_d (resident)
            pl.BlockSpec((6, Cout), lambda p, t: (0, 0)),          # BN params (resident)
        ],
        # Output is only produced in phase 2; earlier phases keep block 0 resident
        # and never write it, so no garbage/extra writebacks happen.
        out_specs=pl.BlockSpec((tile_n, H * W, Cout),
                               lambda p, t: (jnp.where(p == 2, t, 0), 0, 0)),
        out_shape=jax.ShapeDtypeStruct((N, H * W, Cout), jnp.float32),
        scratch_shapes=[
            pltpu.VMEM((N, H * W, Cout), jnp.float32),   # conv1 pre-BN output
            pltpu.VMEM((N, H * W, Cout), jnp.float32),   # downsample pre-BN output
            pltpu.VMEM((N, H * W, Cout), jnp.float32),   # conv2 pre-BN output
            pltpu.VMEM((8, Cout), jnp.float32),          # BN sum / sum-of-squares rows
        ],
        compiler_params=pltpu.CompilerParams(
            # BN batch statistics are a cross-tile reduction and the phases are
            # ordered, so both grid axes must stay sequential on one core.
            dimension_semantics=("arbitrary", "arbitrary"),
            vmem_limit_bytes=32 * 1024 * 1024),
    )(x, w1f, w2f, wdf, bn)

    out = out.reshape(N, H, W, Cout)
    return jnp.transpose(out, (0, 3, 1, 2))              # NHWC -> NCHW


# ----------------------------- plain-JAX reference ----------------------------
def _ref_conv(x_nchw, w_oihw):
    return jax.lax.conv_general_dilated(
        x_nchw, w_oihw, window_strides=(1, 1), padding=((1, 1), (1, 1)),
        dimension_numbers=("NCHW", "OIHW", "NCHW"))


def _ref_bn(y, g, b):
    mean = y.mean(axis=(0, 2, 3), keepdims=True)
    var = ((y - mean) ** 2).mean(axis=(0, 2, 3), keepdims=True)
    yn = (y - mean) / jnp.sqrt(var + EPS)
    return yn * g.reshape(1, -1, 1, 1) + b.reshape(1, -1, 1, 1)


def residual_block_ref(x, p):
    out = jnp.maximum(_ref_bn(_ref_conv(x, p["w1_oihw"]), p["g1v"], p["b1v"]), 0.0)
    out = _ref_bn(_ref_conv(out, p["w2_oihw"]), p["g2v"], p["b2v"])
    res = _ref_bn(_ref_conv(x, p["wd_oihw"]), p["gdv"], p["bdv"])
    return jnp.maximum(out + res, 0.0)


# ------------------------------------ main ------------------------------------
if __name__ == "__main__":
    N, Cin, Cout, H, W = 2, 4, 8, 16, 16   # in_channels != out_channels -> downsample branch

    key = jax.random.PRNGKey(0)
    ks = jax.random.split(key, 10)

    x = jax.random.normal(ks[0], (N, Cin, H, W), jnp.float32)

    w1_oihw = 0.2 * jax.random.normal(ks[1], (Cout, Cin, 3, 3), jnp.float32)
    w2_oihw = 0.2 * jax.random.normal(ks[2], (Cout, Cout, 3, 3), jnp.float32)
    wd_oihw = 0.2 * jax.random.normal(ks[3], (Cout, Cin, 3, 3), jnp.float32)

    g1 = 1.0 + 0.1 * jax.random.normal(ks[4], (Cout,), jnp.float32)
    b1 = 0.1 * jax.random.normal(ks[5], (Cout,), jnp.float32)
    g2 = 1.0 + 0.1 * jax.random.normal(ks[6], (Cout,), jnp.float32)
    b2 = 0.1 * jax.random.normal(ks[7], (Cout,), jnp.float32)
    gd = 1.0 + 0.1 * jax.random.normal(ks[8], (Cout,), jnp.float32)
    bd = 0.1 * jax.random.normal(ks[9], (Cout,), jnp.float32)

    to_hwio = lambda w: jnp.transpose(w, (2, 3, 1, 0))    # OIHW -> HWIO

    kernel_params = {
        "w1": to_hwio(w1_oihw), "w2": to_hwio(w2_oihw), "wd": to_hwio(wd_oihw),
        "g1": g1, "b1": b1, "g2": g2, "b2": b2, "gd": gd, "bd": bd,
    }
    ref_params = {
        "w1_oihw": w1_oihw, "w2_oihw": w2_oihw, "wd_oihw": wd_oihw,
        "g1v": g1, "b1v": b1, "g2v": g2, "b2v": b2, "gdv": gd, "bdv": bd,
    }

    out = jax.block_until_ready(residual_block_pallas(x, kernel_params))
    ref = jax.block_until_ready(residual_block_ref(x, ref_params))

    assert out.shape == (N, Cout, H, W), out.shape
    max_diff = float(jnp.max(jnp.abs(out - ref)))
    assert jnp.allclose(out, ref, atol=2e-4, rtol=2e-4), f"max abs diff {max_diff}"

    print("KERNEL_OK")
</pallas_src>

<mosaic_0001>
module attributes {stable_mosaic.version = 11 : i64} {
  func.func @_residual_block_kernel(%arg0: i32, %arg1: i32, %arg2: memref<1x16x16x4xf32, #tpu.memory_space<vmem>>, %arg3: memref<36x8xf32, #tpu.memory_space<vmem>>, %arg4: memref<72x8xf32, #tpu.memory_space<vmem>>, %arg5: memref<36x8xf32, #tpu.memory_space<vmem>>, %arg6: memref<6x8xf32, #tpu.memory_space<vmem>>, %arg7: memref<1x256x8xf32, #tpu.memory_space<vmem>>, %arg8: memref<2x256x8xf32, #tpu.memory_space<vmem>>, %arg9: memref<2x256x8xf32, #tpu.memory_space<vmem>>, %arg10: memref<2x256x8xf32, #tpu.memory_space<vmem>>, %arg11: memref<8x8xf32, #tpu.memory_space<vmem>>) attributes {dimension_semantics = [#tpu.dimension_semantics<arbitrary>, #tpu.dimension_semantics<arbitrary>], iteration_bounds = array<i64: 3, 2>, scalar_prefetch = 0 : i64, scratch_operands = 4 : i64, tpu.core_type = #tpu.core_type<tc>, window_params = [{transform_indices = @transform_0, window_bounds = array<i64: 1, 16, 16, 4>}, {pipeline_mode = #tpu.pipeline_mode<synchronous>, transform_indices = @transform_1, window_bounds = array<i64: 36, 8>}, {pipeline_mode = #tpu.pipeline_mode<synchronous>, transform_indices = @transform_2, window_bounds = array<i64: 72, 8>}, {pipeline_mode = #tpu.pipeline_mode<synchronous>, transform_indices = @transform_3, window_bounds = array<i64: 36, 8>}, {pipeline_mode = #tpu.pipeline_mode<synchronous>, transform_indices = @transform_4, window_bounds = array<i64: 6, 8>}, {transform_indices = @transform_5, window_bounds = array<i64: 1, 256, 8>}]} {
    %c0_i32 = arith.constant 0 : i32
    %0 = arith.cmpi eq, %arg0, %c0_i32 : i32
    %c0_i32_0 = arith.constant 0 : i32
    %1 = arith.cmpi eq, %arg1, %c0_i32_0 : i32
    %2 = arith.andi %0, %1 : i1
    %3 = arith.extui %2 : i1 to i32
    %c0_i32_1 = arith.constant 0 : i32
    %4 = arith.cmpi ne, %3, %c0_i32_1 : i32
    scf.if %4 {
      %cst = arith.constant 0.000000e+00 : f32
      %14 = vector.broadcast %cst : f32 to vector<8x8xf32>
      %c0 = arith.constant 0 : index
      %c0_6 = arith.constant 0 : index
      %15 = vector.load %arg11[%c0, %c0_6] : memref<8x8xf32, #tpu.memory_space<vmem>>, vector<8x8xf32>
      tpu.vector_store %arg11[%c0, %c0_6], %14 {strides = array<i32>} : memref<8x8xf32, #tpu.memory_space<vmem>>, vector<8x8xf32>,
    } else {
    }
    %c0_i32_2 = arith.constant 0 : i32
    %5 = arith.cmpi eq, %arg0, %c0_i32_2 : i32
    %6 = arith.extui %5 : i1 to i32
    %c0_i32_3 = arith.constant 0 : i32
    %7 = arith.cmpi ne, %6, %c0_i32_3 : i32
    scf.if %7 {
      %c0 = arith.constant 0 : index
      %c0_6 = arith.constant 0 : index
      %c0_7 = arith.constant 0 : index
      %c0_8 = arith.constant 0 : index
      %14 = vector.load %arg2[%c0, %c0_6, %c0_7, %c0_8] : memref<1x16x16x4xf32, #tpu.memory_space<vmem>>, vector<1x16x16x4xf32>
      %cst = arith.constant 0.000000e+00 : f32
      %15 = vector.broadcast %cst : f32 to vector<1x1x16x4xf32>
      %16 = tpu.concatenate %15, %14, %15 in 1 : vector<1x1x16x4xf32>, vector<1x16x16x4xf32>, vector<1x1x16x4xf32> -> vector<1x18x16x4xf32>
      %cst_9 = arith.constant 0.000000e+00 : f32
      %17 = vector.broadcast %cst_9 : f32 to vector<1x18x1x4xf32>
      %18 = tpu.concatenate %17, %16, %17 in 2 : vector<1x18x1x4xf32>, vector<1x18x16x4xf32>, vector<1x18x1x4xf32> -> vector<1x18x18x4xf32>
      %c0_10 = arith.constant 0 : index
      %c0_11 = arith.constant 0 : index
      %19 = vector.load %arg3[%c0_10, %c0_11] : memref<36x8xf32, #tpu.memory_space<vmem>>, vector<36x8xf32>
      %20 = vector.extract_strided_slice %18 {offsets = [0, 0, 0, 0], sizes = [1, 16, 16, 4], strides = [1, 1, 1, 1]} : vector<1x18x18x4xf32> to vector<1x16x16x4xf32>
      %21 = vector.extract_strided_slice %18 {offsets = [0, 0, 1, 0], sizes = [1, 16, 16, 4], strides = [1, 1, 1, 1]} : vector<1x18x18x4xf32> to vector<1x16x16x4xf32>
      %22 = vector.extract_strided_slice %18 {offsets = [0, 0, 2, 0], sizes = [1, 16, 16, 4], strides = [1, 1, 1, 1]} : vector<1x18x18x4xf32> to vector<1x16x16x4xf32>
      %23 = vector.extract_strided_slice %18 {offsets = [0, 1, 0, 0], sizes = [1, 16, 16, 4], strides = [1, 1, 1, 1]} : vector<1x18x18x4xf32> to vector<1x16x16x4xf32>
      %24 = vector.extract_strided_slice %18 {offsets = [0, 1, 1, 0], sizes = [1, 16, 16, 4], strides = [1, 1, 1, 1]} : vector<1x18x18x4xf32> to vector<1x16x16x4xf32>
      %25 = vector.extract_strided_slice %18 {offsets = [0, 1, 2, 0], sizes = [1, 16, 16, 4], strides = [1, 1, 1, 1]} : vector<1x18x18x4xf32> to vector<1x16x16x4xf32>
      %26 = vector.extract_strided_slice %18 {offsets = [0, 2, 0, 0], sizes = [1, 16, 16, 4], strides = [1, 1, 1, 1]} : vector<1x18x18x4xf32> to vector<1x16x16x4xf32>
      %27 = vector.extract_strided_slice %18 {offsets = [0, 2, 1, 0], sizes = [1, 16, 16, 4], strides = [1, 1, 1, 1]} : vector<1x18x18x4xf32> to vector<1x16x16x4xf32>
      %28 = vector.extract_strided_slice %18 {offsets = [0, 2, 2, 0], sizes = [1, 16, 16, 4], strides = [1, 1, 1, 1]} : vector<1x18x18x4xf32> to vector<1x16x16x4xf32>
      %29 = tpu.concatenate %20, %21, %22, %23, %24, %25, %26, %27, %28 in 3 : vector<1x16x16x4xf32>, vector<1x16x16x4xf32>, vector<1x16x16x4xf32>, vector<1x16x16x4xf32>, vector<1x16x16x4xf32>, vector<1x16x16x4xf32>, vector<1x16x16x4xf32>, vector<1x16x16x4xf32>, vector<1x16x16x4xf32> -> vector<1x16x16x36xf32>
      %30 = vector.shape_cast %29 : vector<1x16x16x36xf32> to vector<256x36xf32>
      %cst_12 = arith.constant dense<0.000000e+00> : vector<256x8xf32>
      %31 = tpu.matmul %30, %19, %cst_12 {dimension_numbers = #tpu.dot_dimension_numbers<[1], [0], [0], [1], [0, 0, 1, 1], [], []>} : vector<256x36xf32>, vector<36x8xf32>, vector<256x8xf32> -> vector<256x8xf32>
      %c0_13 = arith.constant 0 : index
      %c0_14 = arith.constant 0 : index
      %32 = vector.load %arg5[%c0_13, %c0_14] : memref<36x8xf32, #tpu.memory_space<vmem>>, vector<36x8xf32>
      %33 = vector.extract_strided_slice %18 {offsets = [0, 0, 0, 0], sizes = [1, 16, 16, 4], strides = [1, 1, 1, 1]} : vector<1x18x18x4xf32> to vector<1x16x16x4xf32>
      %34 = vector.extract_strided_slice %18 {offsets = [0, 0, 1, 0], sizes = [1, 16, 16, 4], strides = [1, 1, 1, 1]} : vector<1x18x18x4xf32> to vector<1x16x16x4xf32>
      %35 = vector.extract_strided_slice %18 {offsets = [0, 0, 2, 0], sizes = [1, 16, 16, 4], strides = [1, 1, 1, 1]} : vector<1x18x18x4xf32> to vector<1x16x16x4xf32>
      %36 = vector.extract_strided_slice %18 {offsets = [0, 1, 0, 0], sizes = [1, 16, 16, 4], strides = [1, 1, 1, 1]} : vector<1x18x18x4xf32> to vector<1x16x16x4xf32>
      %37 = vector.extract_strided_slice %18 {offsets = [0, 1, 1, 0], sizes = [1, 16, 16, 4], strides = [1, 1, 1, 1]} : vector<1x18x18x4xf32> to vector<1x16x16x4xf32>
      %38 = vector.extract_strided_slice %18 {offsets = [0, 1, 2, 0], sizes = [1, 16, 16, 4], strides = [1, 1, 1, 1]} : vector<1x18x18x4xf32> to vector<1x16x16x4xf32>
      %39 = vector.extract_strided_slice %18 {offsets = [0, 2, 0, 0], sizes = [1, 16, 16, 4], strides = [1, 1, 1, 1]} : vector<1x18x18x4xf32> to vector<1x16x16x4xf32>
      %40 = vector.extract_strided_slice %18 {offsets = [0, 2, 1, 0], sizes = [1, 16, 16, 4], strides = [1, 1, 1, 1]} : vector<1x18x18x4xf32> to vector<1x16x16x4xf32>
      %41 = vector.extract_strided_slice %18 {offsets = [0, 2, 2, 0], sizes = [1, 16, 16, 4], strides = [1, 1, 1, 1]} : vector<1x18x18x4xf32> to vector<1x16x16x4xf32>
      %42 = tpu.concatenate %33, %34, %35, %36, %37, %38, %39, %40, %41 in 3 : vector<1x16x16x4xf32>, vector<1x16x16x4xf32>, vector<1x16x16x4xf32>, vector<1x16x16x4xf32>, vector<1x16x16x4xf32>, vector<1x16x16x4xf32>, vector<1x16x16x4xf32>, vector<1x16x16x4xf32>, vector<1x16x16x4xf32> -> vector<1x16x16x36xf32>
      %43 = vector.shape_cast %42 : vector<1x16x16x36xf32> to vector<256x36xf32>
      %cst_15 = arith.constant dense<0.000000e+00> : vector<256x8xf32>
      %44 = tpu.matmul %43, %32, %cst_15 {dimension_numbers = #tpu.dot_dimension_numbers<[1], [0], [0], [1], [0, 0, 1, 1], [], []>} : vector<256x36xf32>, vector<36x8xf32>, vector<256x8xf32> -> vector<256x8xf32>
      %45 = vector.shape_cast %31 : vector<256x8xf32> to vector<1x256x8xf32>
      %c1_i32_16 = arith.constant 1 : i32
      %46 = arith.muli %arg1, %c1_i32_16 : i32
      %47 = arith.index_cast %46 : i32 to index
      %c0_17 = arith.constant 0 : index
      %c0_18 = arith.constant 0 : index
      %48 = vector.load %arg8[%47, %c0_17, %c0_18] : memref<2x256x8xf32, #tpu.memory_space<vmem>>, vector<1x256x8xf32>
      tpu.vector_store %arg8[%47, %c0_17, %c0_18], %45 {strides = array<i32>} : memref<2x256x8xf32, #tpu.memory_space<vmem>>, vector<1x256x8xf32>,
      %49 = vector.shape_cast %44 : vector<256x8xf32> to vector<1x256x8xf32>
      %c1_i32_19 = arith.constant 1 : i32
      %50 = arith.muli %arg1, %c1_i32_19 : i32
      %51 = arith.index_cast %50 : i32 to index
      %c0_20 = arith.constant 0 : index
      %c0_21 = arith.constant 0 : index
      %52 = vector.load %arg9[%51, %c0_20, %c0_21] : memref<2x256x8xf32, #tpu.memory_space<vmem>>, vector<1x256x8xf32>
      tpu.vector_store %arg9[%51, %c0_20, %c0_21], %49 {strides = array<i32>} : memref<2x256x8xf32, #tpu.memory_space<vmem>>, vector<1x256x8xf32>,
      %c0_22 = arith.constant 0 : index
      %c0_23 = arith.constant 0 : index
      %53 = vector.load %arg11[%c0_22, %c0_23] : memref<8x8xf32, #tpu.memory_space<vmem>>, vector<1x8xf32>
      %cst_24 = arith.constant dense<0.000000e+00> : vector<8xf32>
      %54 = vector.multi_reduction <add>, %31, %cst_24 [0] : vector<256x8xf32> to vector<8xf32>
      %55 = vector.shape_cast %54 : vector<8xf32> to vector<1x8xf32>
      %56 = arith.addf %53, %55 : vector<1x8xf32>
      %c0_25 = arith.constant 0 : index
      %c0_26 = arith.constant 0 : index
      %57 = vector.load %arg11[%c0_25, %c0_26] : memref<8x8xf32, #tpu.memory_space<vmem>>, vector<1x8xf32>
      tpu.vector_store %arg11[%c0_25, %c0_26], %56 {strides = array<i32>} : memref<8x8xf32, #tpu.memory_space<vmem>>, vector<1x8xf32>,
      %c1 = arith.constant 1 : index
      %c0_27 = arith.constant 0 : index
      %58 = vector.load %arg11[%c1, %c0_27] : memref<8x8xf32, #tpu.memory_space<vmem>>, vector<1x8xf32>
      %59 = arith.mulf %31, %31 : vector<256x8xf32>
      %cst_28 = arith.constant dense<0.000000e+00> : vector<8xf32>
      %60 = vector.multi_reduction <add>, %59, %cst_28 [0] : vector<256x8xf32> to vector<8xf32>
      %61 = vector.shape_cast %60 : vector<8xf32> to vector<1x8xf32>
      %62 = arith.addf %58, %61 : vector<1x8xf32>
      %c1_29 = arith.constant 1 : index
      %c0_30 = arith.constant 0 : index
      %63 = vector.load %arg11[%c1_29, %c0_30] : memref<8x8xf32, #tpu.memory_space<vmem>>, vector<1x8xf32>
      tpu.vector_store %arg11[%c1_29, %c0_30], %62 {strides = array<i32>} : memref<8x8xf32, #tpu.memory_space<vmem>>, vector<1x8xf32>,
      %c2 = arith.constant 2 : index
      %c0_31 = arith.constant 0 : index
      %64 = vector.load %arg11[%c2, %c0_31] : memref<8x8xf32, #tpu.memory_space<vmem>>, vector<1x8xf32>
      %cst_32 = arith.constant dense<0.000000e+00> : vector<8xf32>
      %65 = vector.multi_reduction <add>, %44, %cst_32 [0] : vector<256x8xf32> to vector<8xf32>
      %66 = vector.shape_cast %65 : vector<8xf32> to vector<1x8xf32>
      %67 = arith.addf %64, %66 : vector<1x8xf32>
      %c2_33 = arith.constant 2 : index
      %c0_34 = arith.constant 0 : index
      %68 = vector.load %arg11[%c2_33, %c0_34] : memref<8x8xf32, #tpu.memory_space<vmem>>, vector<1x8xf32>
      tpu.vector_store %arg11[%c2_33, %c0_34], %67 {strides = array<i32>} : memref<8x8xf32, #tpu.memory_space<vmem>>, vector<1x8xf32>,
      %c3 = arith.constant 3 : index
      %c0_35 = arith.constant 0 : index
      %69 = vector.load %arg11[%c3, %c0_35] : memref<8x8xf32, #tpu.memory_space<vmem>>, vector<1x8xf32>
      %70 = arith.mulf %44, %44 : vector<256x8xf32>
      %cst_36 = arith.constant dense<0.000000e+00> : vector<8xf32>
      %71 = vector.multi_reduction <add>, %70, %cst_36 [0] : vector<256x8xf32> to vector<8xf32>
      %72 = vector.shape_cast %71 : vector<8xf32> to vector<1x8xf32>
      %73 = arith.addf %69, %72 : vector<1x8xf32>
      %c3_37 = arith.constant 3 : index
      %c0_38 = arith.constant 0 : index
      %74 = vector.load %arg11[%c3_37, %c0_38] : memref<8x8xf32, #tpu.memory_space<vmem>>, vector<1x8xf32>
      tpu.vector_store %arg11[%c3_37, %c0_38], %73 {strides = array<i32>} : memref<8x8xf32, #tpu.memory_space<vmem>>, vector<1x8xf32>,
    } else {
    }
    %c1_i32 = arith.constant 1 : i32
    %8 = arith.cmpi eq, %arg0, %c1_i32 : i32
    %9 = arith.extui %8 : i1 to i32
    %c0_i32_4 = arith.constant 0 : i32
    %10 = arith.cmpi ne, %9, %c0_i32_4 : i32
    scf.if %10 {
      %c0 = arith.constant 0 : index
      %c0_6 = arith.constant 0 : index
      %14 = vector.load %arg11[%c0, %c0_6] : memref<8x8xf32, #tpu.memory_space<vmem>>, vector<1x8xf32>
      %c1 = arith.constant 1 : index
      %c0_7 = arith.constant 0 : index
      %15 = vector.load %arg11[%c1, %c0_7] : memref<8x8xf32, #tpu.memory_space<vmem>>, vector<1x8xf32>
      %c0_8 = arith.constant 0 : index
      %c0_9 = arith.constant 0 : index
      %16 = vector.load %arg6[%c0_8, %c0_9] : memref<6x8xf32, #tpu.memory_space<vmem>>, vector<1x8xf32>
      %c1_10 = arith.constant 1 : index
      %c0_11 = arith.constant 0 : index
      %17 = vector.load %arg6[%c1_10, %c0_11] : memref<6x8xf32, #tpu.memory_space<vmem>>, vector<1x8xf32>
      %cst = arith.constant 0.001953125 : f32
      %18 = vector.broadcast %cst : f32 to vector<1x8xf32>
      %19 = arith.mulf %14, %18 : vector<1x8xf32>
      %cst_12 = arith.constant 0.001953125 : f32
      %20 = vector.broadcast %cst_12 : f32 to vector<1x8xf32>
      %21 = arith.mulf %15, %20 : vector<1x8xf32>
      %22 = arith.mulf %19, %19 : vector<1x8xf32>
      %23 = arith.subf %21, %22 : vector<1x8xf32>
      %cst_13 = arith.constant 0.000000e+00 : f32
      %24 = vector.broadcast %cst_13 : f32 to vector<1x8xf32>
      %25 = arith.maximumf %23, %24 : vector<1x8xf32>
      %cst_14 = arith.constant 9.99999974E-6 : f32
      %26 = vector.broadcast %cst_14 : f32 to vector<1x8xf32>
      %27 = arith.addf %25, %26 : vector<1x8xf32>
      %28 = math.rsqrt %27 : vector<1x8xf32>
      %29 = arith.mulf %16, %28 : vector<1x8xf32>
      %30 = arith.mulf %19, %29 : vector<1x8xf32>
      %31 = arith.subf %17, %30 : vector<1x8xf32>
      %c1_i32_15 = arith.constant 1 : i32
      %32 = arith.muli %arg1, %c1_i32_15 : i32
      %33 = arith.index_cast %32 : i32 to index
      %c0_16 = arith.constant 0 : index
      %c0_17 = arith.constant 0 : index
      %34 = vector.load %arg8[%33, %c0_16, %c0_17] : memref<2x256x8xf32, #tpu.memory_space<vmem>>, vector<1x256x8xf32>
      %35 = vector.shape_cast %29 : vector<1x8xf32> to vector<1x1x8xf32>
      %36 = vector.broadcast %35 : vector<1x1x8xf32> to vector<1x256x8xf32>
      %37 = arith.mulf %34, %36 : vector<1x256x8xf32>
      %38 = vector.shape_cast %31 : vector<1x8xf32> to vector<1x1x8xf32>
      %39 = vector.broadcast %38 : vector<1x1x8xf32> to vector<1x256x8xf32>
      %40 = arith.addf %37, %39 : vector<1x256x8xf32>
      %cst_18 = arith.constant 0.000000e+00 : f32
      %41 = vector.broadcast %cst_18 : f32 to vector<1x256x8xf32>
      %42 = arith.maximumf %40, %41 : vector<1x256x8xf32>
      %43 = vector.shape_cast %42 : vector<1x256x8xf32> to vector<1x16x16x8xf32>
      %cst_19 = arith.constant 0.000000e+00 : f32
      %44 = vector.broadcast %cst_19 : f32 to vector<1x1x16x8xf32>
      %45 = tpu.concatenate %44, %43, %44 in 1 : vector<1x1x16x8xf32>, vector<1x16x16x8xf32>, vector<1x1x16x8xf32> -> vector<1x18x16x8xf32>
      %cst_20 = arith.constant 0.000000e+00 : f32
      %46 = vector.broadcast %cst_20 : f32 to vector<1x18x1x8xf32>
      %47 = tpu.concatenate %46, %45, %46 in 2 : vector<1x18x1x8xf32>, vector<1x18x16x8xf32>, vector<1x18x1x8xf32> -> vector<1x18x18x8xf32>
      %c0_21 = arith.constant 0 : index
      %c0_22 = arith.constant 0 : index
      %48 = vector.load %arg4[%c0_21, %c0_22] : memref<72x8xf32, #tpu.memory_space<vmem>>, vector<72x8xf32>
      %49 = vector.extract_strided_slice %47 {offsets = [0, 0, 0, 0], sizes = [1, 16, 16, 8], strides = [1, 1, 1, 1]} : vector<1x18x18x8xf32> to vector<1x16x16x8xf32>
      %50 = vector.extract_strided_slice %47 {offsets = [0, 0, 1, 0], sizes = [1, 16, 16, 8], strides = [1, 1, 1, 1]} : vector<1x18x18x8xf32> to vector<1x16x16x8xf32>
      %51 = vector.extract_strided_slice %47 {offsets = [0, 0, 2, 0], sizes = [1, 16, 16, 8], strides = [1, 1, 1, 1]} : vector<1x18x18x8xf32> to vector<1x16x16x8xf32>
      %52 = vector.extract_strided_slice %47 {offsets = [0, 1, 0, 0], sizes = [1, 16, 16, 8], strides = [1, 1, 1, 1]} : vector<1x18x18x8xf32> to vector<1x16x16x8xf32>
      %53 = vector.extract_strided_slice %47 {offsets = [0, 1, 1, 0], sizes = [1, 16, 16, 8], strides = [1, 1, 1, 1]} : vector<1x18x18x8xf32> to vector<1x16x16x8xf32>
      %54 = vector.extract_strided_slice %47 {offsets = [0, 1, 2, 0], sizes = [1, 16, 16, 8], strides = [1, 1, 1, 1]} : vector<1x18x18x8xf32> to vector<1x16x16x8xf32>
      %55 = vector.extract_strided_slice %47 {offsets = [0, 2, 0, 0], sizes = [1, 16, 16, 8], strides = [1, 1, 1, 1]} : vector<1x18x18x8xf32> to vector<1x16x16x8xf32>
      %56 = vector.extract_strided_slice %47 {offsets = [0, 2, 1, 0], sizes = [1, 16, 16, 8], strides = [1, 1, 1, 1]} : vector<1x18x18x8xf32> to vector<1x16x16x8xf32>
      %57 = vector.extract_strided_slice %47 {offsets = [0, 2, 2, 0], sizes = [1, 16, 16, 8], strides = [1, 1, 1, 1]} : vector<1x18x18x8xf32> to vector<1x16x16x8xf32>
      %58 = tpu.concatenate %49, %50, %51, %52, %53, %54, %55, %56, %57 in 3 : vector<1x16x16x8xf32>, vector<1x16x16x8xf32>, vector<1x16x16x8xf32>, vector<1x16x16x8xf32>, vector<1x16x16x8xf32>, vector<1x16x16x8xf32>, vector<1x16x16x8xf32>, vector<1x16x16x8xf32>, vector<1x16x16x8xf32> -> vector<1x16x16x72xf32>
      %59 = vector.shape_cast %58 : vector<1x16x16x72xf32> to vector<256x72xf32>
      %cst_23 = arith.constant dense<0.000000e+00> : vector<256x8xf32>
      %60 = tpu.matmul %59, %48, %cst_23 {dimension_numbers = #tpu.dot_dimension_numbers<[1], [0], [0], [1], [0, 0, 1, 1], [], []>} : vector<256x72xf32>, vector<72x8xf32>, vector<256x8xf32> -> vector<256x8xf32>
      %61 = vector.shape_cast %60 : vector<256x8xf32> to vector<1x256x8xf32>
      %c1_i32_24 = arith.constant 1 : i32
      %62 = arith.muli %arg1, %c1_i32_24 : i32
      %63 = arith.index_cast %62 : i32 to index
      %c0_25 = arith.constant 0 : index
      %c0_26 = arith.constant 0 : index
      %64 = vector.load %arg10[%63, %c0_25, %c0_26] : memref<2x256x8xf32, #tpu.memory_space<vmem>>, vector<1x256x8xf32>
      tpu.vector_store %arg10[%63, %c0_25, %c0_26], %61 {strides = array<i32>} : memref<2x256x8xf32, #tpu.memory_space<vmem>>, vector<1x256x8xf32>,
      %c4 = arith.constant 4 : index
      %c0_27 = arith.constant 0 : index
      %65 = vector.load %arg11[%c4, %c0_27] : memref<8x8xf32, #tpu.memory_space<vmem>>, vector<1x8xf32>
      %cst_28 = arith.constant dense<0.000000e+00> : vector<8xf32>
      %66 = vector.multi_reduction <add>, %60, %cst_28 [0] : vector<256x8xf32> to vector<8xf32>
      %67 = vector.shape_cast %66 : vector<8xf32> to vector<1x8xf32>
      %68 = arith.addf %65, %67 : vector<1x8xf32>
      %c4_29 = arith.constant 4 : index
      %c0_30 = arith.constant 0 : index
      %69 = vector.load %arg11[%c4_29, %c0_30] : memref<8x8xf32, #tpu.memory_space<vmem>>, vector<1x8xf32>
      tpu.vector_store %arg11[%c4_29, %c0_30], %68 {strides = array<i32>} : memref<8x8xf32, #tpu.memory_space<vmem>>, vector<1x8xf32>,
      %c5 = arith.constant 5 : index
      %c0_31 = arith.constant 0 : index
      %70 = vector.load %arg11[%c5, %c0_31] : memref<8x8xf32, #tpu.memory_space<vmem>>, vector<1x8xf32>
      %71 = arith.mulf %60, %60 : vector<256x8xf32>
      %cst_32 = arith.constant dense<0.000000e+00> : vector<8xf32>
      %72 = vector.multi_reduction <add>, %71, %cst_32 [0] : vector<256x8xf32> to vector<8xf32>
      %73 = vector.shape_cast %72 : vector<8xf32> to vector<1x8xf32>
      %74 = arith.addf %70, %73 : vector<1x8xf32>
      %c5_33 = arith.constant 5 : index
      %c0_34 = arith.constant 0 : index
      %75 = vector.load %arg11[%c5_33, %c0_34] : memref<8x8xf32, #tpu.memory_space<vmem>>, vector<1x8xf32>
      tpu.vector_store %arg11[%c5_33, %c0_34], %74 {strides = array<i32>} : memref<8x8xf32, #tpu.memory_space<vmem>>, vector<1x8xf32>,
    } else {
    }
    %c2_i32 = arith.constant 2 : i32
    %11 = arith.cmpi eq, %arg0, %c2_i32 : i32
    %12 = arith.extui %11 : i1 to i32
    %c0_i32_5 = arith.constant 0 : i32
    %13 = arith.cmpi ne, %12, %c0_i32_5 : i32
    scf.if %13 {
      %c4 = arith.constant 4 : index
      %c0 = arith.constant 0 : index
      %14 = vector.load %arg11[%c4, %c0] : memref<8x8xf32, #tpu.memory_space<vmem>>, vector<1x8xf32>
      %c5 = arith.constant 5 : index
      %c0_6 = arith.constant 0 : index
      %15 = vector.load %arg11[%c5, %c0_6] : memref<8x8xf32, #tpu.memory_space<vmem>>, vector<1x8xf32>
      %c2 = arith.constant 2 : index
      %c0_7 = arith.constant 0 : index
      %16 = vector.load %arg6[%c2, %c0_7] : memref<6x8xf32, #tpu.memory_space<vmem>>, vector<1x8xf32>
      %c3 = arith.constant 3 : index
      %c0_8 = arith.constant 0 : index
      %17 = vector.load %arg6[%c3, %c0_8] : memref<6x8xf32, #tpu.memory_space<vmem>>, vector<1x8xf32>
      %cst = arith.constant 0.001953125 : f32
      %18 = vector.broadcast %cst : f32 to vector<1x8xf32>
      %19 = arith.mulf %14, %18 : vector<1x8xf32>
      %cst_9 = arith.constant 0.001953125 : f32
      %20 = vector.broadcast %cst_9 : f32 to vector<1x8xf32>
      %21 = arith.mulf %15, %20 : vector<1x8xf32>
      %22 = arith.mulf %19, %19 : vector<1x8xf32>
      %23 = arith.subf %21, %22 : vector<1x8xf32>
      %cst_10 = arith.constant 0.000000e+00 : f32
      %24 = vector.broadcast %cst_10 : f32 to vector<1x8xf32>
      %25 = arith.maximumf %23, %24 : vector<1x8xf32>
      %cst_11 = arith.constant 9.99999974E-6 : f32
      %26 = vector.broadcast %cst_11 : f32 to vector<1x8xf32>
      %27 = arith.addf %25, %26 : vector<1x8xf32>
      %28 = math.rsqrt %27 : vector<1x8xf32>
      %29 = arith.mulf %16, %28 : vector<1x8xf32>
      %30 = arith.mulf %19, %29 : vector<1x8xf32>
      %31 = arith.subf %17, %30 : vector<1x8xf32>
      %c2_12 = arith.constant 2 : index
      %c0_13 = arith.constant 0 : index
      %32 = vector.load %arg11[%c2_12, %c0_13] : memref<8x8xf32, #tpu.memory_space<vmem>>, vector<1x8xf32>
      %c3_14 = arith.constant 3 : index
      %c0_15 = arith.constant 0 : index
      %33 = vector.load %arg11[%c3_14, %c0_15] : memref<8x8xf32, #tpu.memory_space<vmem>>, vector<1x8xf32>
      %c4_16 = arith.constant 4 : index
      %c0_17 = arith.constant 0 : index
      %34 = vector.load %arg6[%c4_16, %c0_17] : memref<6x8xf32, #tpu.memory_space<vmem>>, vector<1x8xf32>
      %c5_18 = arith.constant 5 : index
      %c0_19 = arith.constant 0 : index
      %35 = vector.load %arg6[%c5_18, %c0_19] : memref<6x8xf32, #tpu.memory_space<vmem>>, vector<1x8xf32>
      %cst_20 = arith.constant 0.001953125 : f32
      %36 = vector.broadcast %cst_20 : f32 to vector<1x8xf32>
      %37 = arith.mulf %32, %36 : vector<1x8xf32>
      %cst_21 = arith.constant 0.001953125 : f32
      %38 = vector.broadcast %cst_21 : f32 to vector<1x8xf32>
      %39 = arith.mulf %33, %38 : vector<1x8xf32>
      %40 = arith.mulf %37, %37 : vector<1x8xf32>
      %41 = arith.subf %39, %40 : vector<1x8xf32>
      %cst_22 = arith.constant 0.000000e+00 : f32
      %42 = vector.broadcast %cst_22 : f32 to vector<1x8xf32>
      %43 = arith.maximumf %41, %42 : vector<1x8xf32>
      %cst_23 = arith.constant 9.99999974E-6 : f32
      %44 = vector.broadcast %cst_23 : f32 to vector<1x8xf32>
      %45 = arith.addf %43, %44 : vector<1x8xf32>
      %46 = math.rsqrt %45 : vector<1x8xf32>
      %47 = arith.mulf %34, %46 : vector<1x8xf32>
      %48 = arith.mulf %37, %47 : vector<1x8xf32>
      %49 = arith.subf %35, %48 : vector<1x8xf32>
      %c1_i32_24 = arith.constant 1 : i32
      %50 = arith.muli %arg1, %c1_i32_24 : i32
      %51 = arith.index_cast %50 : i32 to index
      %c0_25 = arith.constant 0 : index
      %c0_26 = arith.constant 0 : index
      %52 = vector.load %arg10[%51, %c0_25, %c0_26] : memref<2x256x8xf32, #tpu.memory_space<vmem>>, vector<1x256x8xf32>
      %c1_i32_27 = arith.constant 1 : i32
      %53 = arith.muli %arg1, %c1_i32_27 : i32
      %54 = arith.index_cast %53 : i32 to index
      %c0_28 = arith.constant 0 : index
      %c0_29 = arith.constant 0 : index
      %55 = vector.load %arg9[%54, %c0_28, %c0_29] : memref<2x256x8xf32, #tpu.memory_space<vmem>>, vector<1x256x8xf32>
      %56 = vector.shape_cast %29 : vector<1x8xf32> to vector<1x1x8xf32>
      %57 = vector.broadcast %56 : vector<1x1x8xf32> to vector<1x256x8xf32>
      %58 = arith.mulf %52, %57 : vector<1x256x8xf32>
      %59 = vector.shape_cast %31 : vector<1x8xf32> to vector<1x1x8xf32>
      %60 = vector.broadcast %59 : vector<1x1x8xf32> to vector<1x256x8xf32>
      %61 = arith.addf %58, %60 : vector<1x256x8xf32>
      %62 = vector.shape_cast %47 : vector<1x8xf32> to vector<1x1x8xf32>
      %63 = vector.broadcast %62 : vector<1x1x8xf32> to vector<1x256x8xf32>
      %64 = arith.mulf %55, %63 : vector<1x256x8xf32>
      %65 = arith.addf %61, %64 : vector<1x256x8xf32>
      %66 = vector.shape_cast %49 : vector<1x8xf32> to vector<1x1x8xf32>
      %67 = vector.broadcast %66 : vector<1x1x8xf32> to vector<1x256x8xf32>
      %68 = arith.addf %65, %67 : vector<1x256x8xf32>
      %cst_30 = arith.constant 0.000000e+00 : f32
      %69 = vector.broadcast %cst_30 : f32 to vector<1x256x8xf32>
      %70 = arith.maximumf %68, %69 : vector<1x256x8xf32>
      %c0_31 = arith.constant 0 : index
      %c0_32 = arith.constant 0 : index
      %c0_33 = arith.constant 0 : index
      %71 = vector.load %arg7[%c0_31, %c0_32, %c0_33] : memref<1x256x8xf32, #tpu.memory_space<vmem>>, vector<1x256x8xf32>
      tpu.vector_store %arg7[%c0_31, %c0_32, %c0_33], %70 {strides = array<i32>} : memref<1x256x8xf32, #tpu.memory_space<vmem>>, vector<1x256x8xf32>,
    } else {
    }
    return
  }
  func.func @transform_0(%arg0: i32, %arg1: i32) -> (i32, i32, i32, i32) {
    %c0_i32 = arith.constant 0 : i32
    %0 = arith.cmpi eq, %arg0, %c0_i32 : i32
    %c0_i32_0 = arith.constant 0 : i32
    %1 = arith.select %0, %arg1, %c0_i32_0 : i32
    %c0_i32_1 = arith.constant 0 : i32
    %c0_i32_2 = arith.constant 0 : i32
    %c0_i32_3 = arith.constant 0 : i32
    %c0_i32_4 = arith.constant 0 : i32
    return %1, %c0_i32_1, %c0_i32_2, %c0_i32_3 : i32, i32, i32, i32
  }
  func.func @transform_1(%arg0: i32, %arg1: i32) -> (i32, i32) {
    %c0_i32 = arith.constant 0 : i32
    %c0_i32_0 = arith.constant 0 : i32
    %c0_i32_1 = arith.constant 0 : i32
    return %c0_i32, %c0_i32_0 : i32, i32
  }
  func.func @transform_2(%arg0: i32, %arg1: i32) -> (i32, i32) {
    %c0_i32 = arith.constant 0 : i32
    %c0_i32_0 = arith.constant 0 : i32
    %c0_i32_1 = arith.constant 0 : i32
    return %c0_i32, %c0_i32_0 : i32, i32
  }
  func.func @transform_3(%arg0: i32, %arg1: i32) -> (i32, i32) {
    %c0_i32 = arith.constant 0 : i32
    %c0_i32_0 = arith.constant 0 : i32
    %c0_i32_1 = arith.constant 0 : i32
    return %c0_i32, %c0_i32_0 : i32, i32
  }
  func.func @transform_4(%arg0: i32, %arg1: i32) -> (i32, i32) {
    %c0_i32 = arith.constant 0 : i32
    %c0_i32_0 = arith.constant 0 : i32
    %c0_i32_1 = arith.constant 0 : i32
    return %c0_i32, %c0_i32_0 : i32, i32
  }
  func.func @transform_5(%arg0: i32, %arg1: i32) -> (i32, i32, i32) {
    %c2_i32 = arith.constant 2 : i32
    %0 = arith.cmpi eq, %arg0, %c2_i32 : i32
    %c0_i32 = arith.constant 0 : i32
    %1 = arith.select %0, %arg1, %c0_i32 : i32
    %c0_i32_0 = arith.constant 0 : i32
    %c0_i32_1 = arith.constant 0 : i32
    %c0_i32_2 = arith.constant 0 : i32
    return %1, %c0_i32_0, %c0_i32_1 : i32, i32, i32
  }
}

</mosaic_0001>

<llo_original>
// kernel: tpu_custom_call.1
$region0: #{tpu_custom_call.1}
  #allocation0 [shape = 'u32[]', space=smem, size = 0x4, offset = 0x4, fixed_abs, tag = 'smem constant byte address 0x4 - core index']
  #allocation1 [shape = 'u32[72,128]{1,0:T(1,128)}', space=vmem, size = 0x9000, scoped, tag = 'internal scratch']
  #allocation2 [shape = 'f32[2,256,8]{2,1,0:T(8,128)}', space=vmem, size = 0x40000, scoped, tag = 'scratch operand']
  #allocation3 [shape = 'f32[2,256,8]{2,1,0:T(8,128)}', space=vmem, size = 0x40000, scoped, tag = 'scratch operand']
  #allocation4 [shape = 'f32[2,256,8]{2,1,0:T(8,128)}', space=vmem, size = 0x40000, scoped, tag = 'scratch operand']
  #allocation5 [shape = 'f32[8,8]{1,0:T(8,128)}', space=vmem, size = 0x1000, scoped, tag = 'scratch operand']
  %s0 = inlined_call_operand.vmem [shape: f32[2,16,16,4], index: 0, kind: input, shape index: {}]
  %s1 = inlined_call_operand.vmem [shape: f32[36,8], index: 1, kind: input, shape index: {}]
  %s2 = inlined_call_operand.vmem [shape: f32[72,8], index: 2, kind: input, shape index: {}]
  %s3 = inlined_call_operand.vmem [shape: f32[36,8], index: 3, kind: input, shape index: {}]
  %s4 = inlined_call_operand.vmem [shape: f32[6,8], index: 4, kind: input, shape index: {}]
  %s5 = inlined_call_operand.vmem [shape: f32[2,256,8], index: 5, kind: output, shape index: {}]
  %s6 = sld [smem:[#allocation0]]
  $region69: #{tpu_custom_call.1} parent=0
    _
  %s8 = ssub.s32 1, %s6
  %s9 = scalar_select 0, %s8, %s6
  loop: start=0, step=1, limit=8
  $region2: #{tpu_custom_call.1} parent=0 // loop_pre_header
    _
  $region3: #{tpu_custom_call.1} parent=0 // loop_header
    %s11 = sphi 0, %s15
    %p12 = scmp.ge.s32.totalorder %s11, 8
    %s18 = sphi 0, %s30
    %s19 = sphi 0, %s26
    %s20 = sphi 0, %s18
    %s21 = sphi 0, %s19
    %s22 = sphi 0, %s20
    %s23 = sphi 0, %s21
    %s37 = sphi 0, %s39
    %s40 = sphi 0, %s37
    %s41 = sphi 0, %s40
    %s57 = sphi 0, %s41
    %s61 = sphi 0, %s61
    %s63 = sphi 0, %s61
    %s64 = sphi 0, %s63
    %s78 = sphi 0, %s64
    %s82 = sphi 0, %s82
    %s84 = sphi 0, %s82
    %s85 = sphi 0, %s84
    %s99 = sphi 0, %s85
    %s103 = sphi 0, %s103
    %s105 = sphi 0, %s103
    %s106 = sphi 0, %s105
    %s120 = sphi 0, %s106
    %s124 = sphi 0, %s124
    %s126 = sphi 0, %s124
    %s127 = sphi 0, %s126
    %s141 = sphi 0, %s127
    %s151 = sphi 0, %s153
    %s154 = sphi 0, %s151
    %s155 = sphi 0, %s154
    %s171 = sphi 0, %s155
  $region4: #{tpu_custom_call.1} parent=0 // loop_header_branch
    %14 = sbr.rel (%p12) target = $region8
  $region5: #{tpu_custom_call.1} parent=0 // loop_body
    %s16 = ssub.s32 %s11, 1
    %s17 = ssub.s32 %s11, 2
    %s24 = sadd.s32 1, %s19
    %p25 = scmp.ge.s32.totalorder %s24, 2
    %s26 = scalar_select %p25, 0, %s24
    %s27 = sadd.s32 1, %s18
    %s28 = scalar_select %p25, %s27, %s18
    %p29 = scmp.ge.s32.totalorder %s28, 3
    %s30 = scalar_select %p29, 0, %s28
    %p31 = scmp.eq.s32.totalorder %s18, 0
    %s32 = scalar_select %p31, %s19, 0
    %p33 = scmp.eq.s32.totalorder %s30, 0
    %s34 = scalar_select %p33, %s26, 0
    %s35 = ssub.s32 %s32, %s34
    %p36 = scmp.eq.s32.totalorder %s35, 0
    %s38 = sadd.s32 %s37, 1
    %s39 = scalar_select %p36, %s37, %s38
    %p42 = pneg %p36
    %p43 = scmp.eq.s32.totalorder %s11, 5
    %p44 = por %p42, %p43
    %p45 = scmp.ne.s32.totalorder %s37, %s40
    %p46 = scmp.eq.s32.totalorder %s11, 0
    %p47 = por %p45, %p46
    %p48 = scmp.ne.s32.totalorder %s37, %s40
    %p49 = scmp.eq.s32.totalorder %s16, 5
    %p50 = por %p48, %p49
    %p51 = scmp.ne.s32.totalorder %s40, %s41
    %p52 = scmp.eq.s32.totalorder %s16, 0
    %p53 = por %p51, %p52
    %p54 = scmp.ne.s32.totalorder %s40, %s41
    %p55 = scmp.eq.s32.totalorder %s17, 5
    %p56 = por %p54, %p55
    %p58 = scmp.ne.s32.totalorder %s41, %s57
    %p59 = scmp.eq.s32.totalorder %s17, 0
    %p60 = por %p58, %p59
    %s62 = sadd.s32 %s61, 1
    %p65 = scmp.eq.s32.totalorder %s11, 5
    %p66 = scmp.ne.s32.totalorder %s61, %s63
    %p67 = scmp.eq.s32.totalorder %s11, 0
    %p68 = por %p66, %p67
    %p69 = scmp.ne.s32.totalorder %s61, %s63
    %p70 = scmp.eq.s32.totalorder %s16, 5
    %p71 = por %p69, %p70
    %p72 = scmp.ne.s32.totalorder %s63, %s64
    %p73 = scmp.eq.s32.totalorder %s16, 0
    %p74 = por %p72, %p73
    %p75 = scmp.ne.s32.totalorder %s63, %s64
    %p76 = scmp.eq.s32.totalorder %s17, 5
    %p77 = por %p75, %p76
    %p79 = scmp.ne.s32.totalorder %s64, %s78
    %p80 = scmp.eq.s32.totalorder %s17, 0
    %p81 = por %p79, %p80
    %s83 = sadd.s32 %s82, 1
    %p86 = scmp.eq.s32.totalorder %s11, 5
    %p87 = scmp.ne.s32.totalorder %s82, %s84
    %p88 = scmp.eq.s32.totalorder %s11, 0
    %p89 = por %p87, %p88
    %p90 = scmp.ne.s32.totalorder %s82, %s84
    %p91 = scmp.eq.s32.totalorder %s16, 5
    %p92 = por %p90, %p91
    %p93 = scmp.ne.s32.totalorder %s84, %s85
    %p94 = scmp.eq.s32.totalorder %s16, 0
    %p95 = por %p93, %p94
    %p96 = scmp.ne.s32.totalorder %s84, %s85
    %p97 = scmp.eq.s32.totalorder %s17, 5
    %p98 = por %p96, %p97
    %p100 = scmp.ne.s32.totalorder %s85, %s99
    %p101 = scmp.eq.s32.totalorder %s17, 0
    %p102 = por %p100, %p101
    %s104 = sadd.s32 %s103, 1
    %p107 = scmp.eq.s32.totalorder %s11, 5
    %p108 = scmp.ne.s32.totalorder %s103, %s105
    %p109 = scmp.eq.s32.totalorder %s11, 0
    %p110 = por %p108, %p109
    %p111 = scmp.ne.s32.totalorder %s103, %s105
    %p112 = scmp.eq.s32.totalorder %s16, 5
    %p113 = por %p111, %p112
    %p114 = scmp.ne.s32.totalorder %s105, %s106
    %p115 = scmp.eq.s32.totalorder %s16, 0
    %p116 = por %p114, %p115
    %p117 = scmp.ne.s32.totalorder %s105, %s106
    %p118 = scmp.eq.s32.totalorder %s17, 5
    %p119 = por %p117, %p118
    %p121 = scmp.ne.s32.totalorder %s106, %s120
    %p122 = scmp.eq.s32.totalorder %s17, 0
    %p123 = por %p121, %p122
    %s125 = sadd.s32 %s124, 1
    %p128 = scmp.eq.s32.totalorder %s11, 5
    %p129 = scmp.ne.s32.totalorder %s124, %s126
    %p130 = scmp.eq.s32.totalorder %s11, 0
    %p131 = por %p129, %p130
    %p132 = scmp.ne.s32.totalorder %s124, %s126
    %p133 = scmp.eq.s32.totalorder %s16, 5
    %p134 = por %p132, %p133
    %p135 = scmp.ne.s32.totalorder %s126, %s127
    %p136 = scmp.eq.s32.totalorder %s16, 0
    %p137 = por %p135, %p136
    %p138 = scmp.ne.s32.totalorder %s126, %s127
    %p139 = scmp.eq.s32.totalorder %s17, 5
    %p140 = por %p138, %p139
    %p142 = scmp.ne.s32.totalorder %s127, %s141
    %p143 = scmp.eq.s32.totalorder %s17, 0
    %p144 = por %p142, %p143
    %p145 = scmp.eq.s32.totalorder %s18, 2
    %s146 = scalar_select %p145, %s19, 0
    %p147 = scmp.eq.s32.totalorder %s30, 2
    %s148 = scalar_select %p147, %s26, 0
    %s149 = ssub.s32 %s146, %s148
    %p150 = scmp.eq.s32.totalorder %s149, 0
    %s152 = sadd.s32 %s151, 1
    %s153 = scalar_select %p150, %s151, %s152
    %p156 = pneg %p150
    %p157 = scmp.eq.s32.totalorder %s11, 5
    %p158 = por %p156, %p157
    %p159 = scmp.ne.s32.totalorder %s151, %s154
    %p160 = scmp.eq.s32.totalorder %s11, 0
    %p161 = por %p159, %p160
    %p162 = scmp.ne.s32.totalorder %s151, %s154
    %p163 = scmp.eq.s32.totalorder %s16, 5
    %p164 = por %p162, %p163
    %p165 = scmp.ne.s32.totalorder %s154, %s155
    %p166 = scmp.eq.s32.totalorder %s16, 0
    %p167 = por %p165, %p166
    %p168 = scmp.ne.s32.totalorder %s154, %s155
    %p169 = scmp.eq.s32.totalorder %s17, 5
    %p170 = por %p168, %p169
    %p172 = scmp.ne.s32.totalorder %s155, %s171
    %p173 = scmp.eq.s32.totalorder %s17, 0
    %p174 = por %p172, %p173
    %p175 = scmp.le.s32.totalorder 1, %s11
    %p176 = scmp.lt.s32.totalorder %s11, 7
    %p177 = pnand %p175, %p176
    %p178 = pneg %p177
    // Predicated region
    $region9: #{tpu_custom_call.1} parent=5 // pred_check
      _
    $region10: #{tpu_custom_call.1} parent=5 // pred_check_branch
      %180 = sbr.rel (%p177) target = $region12
    $region11: #{tpu_custom_call.1} parent=5 // pred_region
      %s181 = ssub.s32 %s11, 1
      // Predicated region
      $region13: #{tpu_custom_call.1} parent=11 // pred_check
        %p182 = pneg %p74
      $region14: #{tpu_custom_call.1} parent=11 // pred_check_branch
        %184 = sbr.rel (%p182) target = $region16
      $region15: #{tpu_custom_call.1} parent=11 // pred_region
        _
      $region16: #{tpu_custom_call.1} parent=11 // pred_fallthru
        _
      // Predicated region
      $region17: #{tpu_custom_call.1} parent=11 // pred_check
        %p185 = pneg %p95
      $region18: #{tpu_custom_call.1} parent=11 // pred_check_branch
        %187 = sbr.rel (%p185) target = $region20
      $region19: #{tpu_custom_call.1} parent=11 // pred_region
        _
      $region20: #{tpu_custom_call.1} parent=11 // pred_fallthru
        _
      // Predicated region
      $region21: #{tpu_custom_call.1} parent=11 // pred_check
        %p188 = pneg %p116
      $region22: #{tpu_custom_call.1} parent=11 // pred_check_branch
        %190 = sbr.rel (%p188) target = $region24
      $region23: #{tpu_custom_call.1} parent=11 // pred_region
        _
      $region24: #{tpu_custom_call.1} parent=11 // pred_fallthru
        _
      // Predicated region
      $region25: #{tpu_custom_call.1} parent=11 // pred_check
        %p191 = pneg %p137
      $region26: #{tpu_custom_call.1} parent=11 // pred_check_branch
        %193 = sbr.rel (%p191) target = $region28
      $region27: #{tpu_custom_call.1} parent=11 // pred_region
        _
      $region28: #{tpu_custom_call.1} parent=11 // pred_fallthru
        _
    $region12: #{tpu_custom_call.1} parent=5 // pred_fallthru
      _
    %p194 = scmp.lt.s32.totalorder %s11, 6
    // Predicated region
    $region29: #{tpu_custom_call.1} parent=5 // pred_check
      %p195 = pneg %p194
    $region30: #{tpu_custom_call.1} parent=5 // pred_check_branch
      %197 = sbr.rel (%p195) target = $region32
    $region31: #{tpu_custom_call.1} parent=5 // pred_region
      // Predicated region
      $region33: #{tpu_custom_call.1} parent=31 // pred_check
        %p198 = pneg %p47
      $region34: #{tpu_custom_call.1} parent=31 // pred_check_branch
        %200 = sbr.rel (%p198) target = $region36
      $region35: #{tpu_custom_call.1} parent=31 // pred_region
        %p201 = scmp.eq.s32.totalorder %s18, 0
        %s202 = scalar_select %p201, %s19, 0
        %p203 = scmp.lt.s32.totalorder %s202, 1
        %s204 = scalar_select %p203, %s202, 1
        %s205 = smul.addr %s204, 32
        %s206 = smul.addr %s205, 8
        %s207 = scalar_lea.vmem %s0, %s206
        %p208 = scmp.eq.s32.totalorder %s18, 0
        %s209 = scalar_select %p208, %s19, 0
      $region36: #{tpu_custom_call.1} parent=31 // pred_fallthru
        _
    $region32: #{tpu_custom_call.1} parent=5 // pred_fallthru
      _
    %p210 = scmp.le.s32.totalorder 1, %s11
    %p211 = scmp.lt.s32.totalorder %s11, 7
    %p212 = pnand %p210, %p211
    %p213 = pneg %p212
    // Predicated region
    $region37: #{tpu_custom_call.1} parent=5 // pred_check
      _
    $region38: #{tpu_custom_call.1} parent=5 // pred_check_branch
      %215 = sbr.rel (%p212) target = $region40
    $region39: #{tpu_custom_call.1} parent=5 // pred_region
      %s216 = ssub.s32 %s11, 1
      %p217 = scmp.eq.s32.totalorder %s20, 0
      %s218 = scalar_select %p217, %s21, 0
      %p219 = scmp.lt.s32.totalorder %s218, 1
      %s220 = scalar_select %p219, %s218, 1
      %s221 = smul.addr %s220, 32
      %s222 = smul.addr %s221, 8
      %s223 = scalar_lea.vmem %s0, %s222
      %p224 = pneg %p53
      %p225 = pneg %p50
      %p226 = pneg %p74
      %p227 = pneg %p71
      %p228 = pneg %p95
      %p229 = pneg %p92
      %p230 = pneg %p116
      %p231 = pneg %p113
      %p232 = pneg %p137
      %p233 = pneg %p134
      %p234 = pneg %p167
      %p235 = pneg %p164
      %p236 = scmp.eq.s32.totalorder %s20, 2
      %s237 = scalar_select %p236, %s21, 0
      %p238 = scmp.lt.s32.totalorder %s237, 1
      %s239 = scalar_select %p238, %s237, 1
      %s240 = smul.addr %s239, 32
      %s241 = smul.addr %s240, 8
      %s242 = scalar_lea.vmem %s5, %s241
      %p243 = scmp.eq.s32.totalorder %s20, 0
      %s244 = scalar_select %p243, %s21, 0
      %p245 = scmp.lt.s32.totalorder %s244, 1
      %s246 = scalar_select %p245, %s244, 1
      %s247 = smul.addr %s246, 32
      %s248 = smul.addr %s247, 8
      %s249 = scalar_lea.vmem %s0, %s248
      %p250 = scmp.eq.s32.totalorder %s20, 0
      %s251 = scalar_select %p250, %s21, 0
      %p252 = scmp.eq.s32.totalorder %s20, 2
      %s253 = scalar_select %p252, %s21, 0
      %p254 = scmp.lt.s32.totalorder %s253, 1
      %s255 = scalar_select %p254, %s253, 1
      %s256 = smul.addr %s255, 32
      %s257 = smul.addr %s256, 8
      %s258 = scalar_lea.vmem %s5, %s257
      %p259 = scmp.eq.s32.totalorder %s20, 2
      %s260 = scalar_select %p259, %s21, 0
      %p261 = scmp.eq.s32.totalorder %s20, 0
      %p262 = scmp.eq.s32.totalorder %s21, 0
      %p263 = pnand %p261, %p262
      %p264 = pneg %p263
      // Predicated region
      $region41: #{tpu_custom_call.1} parent=39 // pred_check
        _
      $region42: #{tpu_custom_call.1} parent=39 // pred_check_branch
        %266 = sbr.rel (%p263) target = $region44
      $region43: #{tpu_custom_call.1} parent=39 // pred_region
        %vm267 = vcmask 64512
        %268 = vst.msk [vmem:[#allocation5] sm:$0xff] %vm267, 0.0
      $region44: #{tpu_custom_call.1} parent=39 // pred_fallthru
        _
      // Predicated region
      $region45: #{tpu_custom_call.1} parent=39 // pred_check
        %p269 = pneg %p261
      $region46: #{tpu_custom_call.1} parent=39 // pred_check_branch
        %271 = sbr.rel (%p269) target = $region48
      $region47: #{tpu_custom_call.1} parent=39 // pred_region
        %v272 = vld [vmem:[%s249] sm:$0xff]
        %v273 = vld [vmem:[%s249 + $0x8] sm:$0xff]
        %v274 = vld [vmem:[%s249 + $0x10] sm:$0xff]
        %v275 = vld [vmem:[%s249 + $0x18] sm:$0xff]
        %v276 = vld [vmem:[%s249 + $0x20] sm:$0xff]
        %v277 = vld [vmem:[%s249 + $0x28] sm:$0xff]
        %v278 = vld [vmem:[%s249 + $0x30] sm:$0xff]
        %v279 = vld [vmem:[%s249 + $0x38] sm:$0xff]
        %v280 = vld [vmem:[%s249 + $0x40] sm:$0xff]
        %v281 = vld [vmem:[%s249 + $0x48] sm:$0xff]
        %v282 = vld [vmem:[%s249 + $0x50] sm:$0xff]
        %v283 = vld [vmem:[%s249 + $0x58] sm:$0xff]
        %v284 = vld [vmem:[%s249 + $0x60] sm:$0xff]
        %v285 = vld [vmem:[%s249 + $0x68] sm:$0xff]
        %v286 = vld [vmem:[%s249 + $0x70] sm:$0xff]
        %v287 = vld [vmem:[%s249 + $0x78] sm:$0xff]
        %v288 = vld [vmem:[%s249 + $0x80] sm:$0xff]
        %v289 = vld [vmem:[%s249 + $0x88] sm:$0xff]
        %v290 = vld [vmem:[%s249 + $0x90] sm:$0xff]
        %v291 = vld [vmem:[%s249 + $0x98] sm:$0xff]
        %v292 = vld [vmem:[%s249 + $0xa0] sm:$0xff]
        %v293 = vld [vmem:[%s249 + $0xa8] sm:$0xff]
        %v294 = vld [vmem:[%s249 + $0xb0] sm:$0xff]
        %v295 = vld [vmem:[%s249 + $0xb8] sm:$0xff]
        %v296 = vld [vmem:[%s249 + $0xc0] sm:$0xff]
        %v297 = vld [vmem:[%s249 + $0xc8] sm:$0xff]
        %v298 = vld [vmem:[%s249 + $0xd0] sm:$0xff]
        %v299 = vld [vmem:[%s249 + $0xd8] sm:$0xff]
        %v300 = vld [vmem:[%s249 + $0xe0] sm:$0xff]
        %v301 = vld [vmem:[%s249 + $0xe8] sm:$0xff]
        %v302 = vld [vmem:[%s249 + $0xf0] sm:$0xff]
        %v303 = vld [vmem:[%s249 + $0xf8] sm:$0xff]
        %vm337 = vcmask 1040384
        %v338 = vrot.slane 0.0, 7
        %v339 = vsel %vm337, %v338, %v338
        %v340 = vrot.slane %v272, 7
        %v341 = vrot.slane %v273, 7
        %v342 = vsel %vm337, %v340, %v341
        %v343 = vrot.slane %v274, 7
        %v344 = vrot.slane %v275, 7
        %v345 = vsel %vm337, %v343, %v344
        %v346 = vrot.slane %v276, 7
        %v347 = vrot.slane %v277, 7
        %v348 = vsel %vm337, %v346, %v347
        %v349 = vrot.slane %v278, 7
        %v350 = vrot.slane %v279, 7
        %v351 = vsel %vm337, %v349, %v350
        %v352 = vrot.slane %v280, 7
        %v353 = vrot.slane %v281, 7
        %v354 = vsel %vm337, %v352, %v353
        %v355 = vrot.slane %v282, 7
        %v356 = vrot.slane %v283, 7
        %v357 = vsel %vm337, %v355, %v356
        %v358 = vrot.slane %v284, 7
        %v359 = vrot.slane %v285, 7
        %v360 = vsel %vm337, %v358, %v359
        %v361 = vrot.slane %v286, 7
        %v362 = vrot.slane %v287, 7
        %v363 = vsel %vm337, %v361, %v362
        %v364 = vrot.slane %v288, 7
        %v365 = vrot.slane %v289, 7
        %v366 = vsel %vm337, %v364, %v365
        %v367 = vrot.slane %v290, 7
        %v368 = vrot.slane %v291, 7
        %v369 = vsel %vm337, %v367, %v368
        %v370 = vrot.slane %v292, 7
        %v371 = vrot.slane %v293, 7
        %v372 = vsel %vm337, %v370, %v371
        %v373 = vrot.slane %v294, 7
        %v374 = vrot.slane %v295, 7
        %v375 = vsel %vm337, %v373, %v374
        %v376 = vrot.slane %v296, 7
        %v377 = vrot.slane %v297, 7
        %v378 = vsel %vm337, %v376, %v377
        %v379 = vrot.slane %v298, 7
        %v380 = vrot.slane %v299, 7
        %v381 = vsel %vm337, %v379, %v380
        %v382 = vrot.slane %v300, 7
        %v383 = vrot.slane %v301, 7
        %v384 = vsel %vm337, %v382, %v383
        %v385 = vrot.slane %v302, 7
        %v386 = vrot.slane %v303, 7
        %v387 = vsel %vm337, %v385, %v386
        %v437 = vsel %vm337, 0.0, %v338
        %v438 = vsel %vm337, 0.0, %v340
        %v439 = vsel %vm337, 0.0, %v343
        %v440 = vsel %vm337, 0.0, %v346
        %v441 = vsel %vm337, 0.0, %v349
        %v442 = vsel %vm337, 0.0, %v352
        %v443 = vsel %vm337, 0.0, %v355
        %v444 = vsel %vm337, 0.0, %v358
        %v445 = vsel %vm337, 0.0, %v361
        %v446 = vsel %vm337, 0.0, %v364
        %v447 = vsel %vm337, 0.0, %v367
        %v448 = vsel %vm337, 0.0, %v370
        %v449 = vsel %vm337, 0.0, %v373
        %v450 = vsel %vm337, 0.0, %v376
        %v451 = vsel %vm337, 0.0, %v379
        %v452 = vsel %vm337, 0.0, %v382
        %v453 = vsel %vm337, 0.0, %v385
        %v454 = vsel %vm337, %v338, 0.0
        %v455 = vsel %vm337, %v341, 0.0
        %v456 = vsel %vm337, %v344, 0.0
        %v457 = vsel %vm337, %v347, 0.0
        %v458 = vsel %vm337, %v350, 0.0
        %v459 = vsel %vm337, %v353, 0.0
        %v460 = vsel %vm337, %v356, 0.0
        %v461 = vsel %vm337, %v359, 0.0
        %v462 = vsel %vm337, %v362, 0.0
        %v463 = vsel %vm337, %v365, 0.0
        %v464 = vsel %vm337, %v368, 0.0
        %v465 = vsel %vm337, %v371, 0.0
        %v466 = vsel %vm337, %v374, 0.0
        %v467 = vsel %vm337, %v377, 0.0
        %v468 = vsel %vm337, %v380, 0.0
        %v469 = vsel %vm337, %v383, 0.0
        %v470 = vsel %vm337, %v386, 0.0
        %v471 = vld [vmem:[%s1] sm:$0xff]
        %v472 = vld [vmem:[%s1 + $0x8] sm:$0xff]
        %v473 = vld [vmem:[%s1 + $0x10] sm:$0xff]
        %v474 = vld [vmem:[%s1 + $0x18] sm:$0xff]
        %v475 = vld [vmem:[%s1 + $0x20] sm:$0xf]
        %vm508 = vcmask 1046528
        %v509 = vrot.slane %v437, 1
        %v510 = vrot.slane %v339, 1
        %v511 = vsel %vm508, %v509, %v510
        %v512 = vrot.slane %v454, 1
        %v513 = vsel %vm508, %v510, %v512
        %v514 = vrot.slane %v438, 1
        %v515 = vrot.slane %v342, 1
        %v516 = vsel %vm508, %v514, %v515
        %v517 = vrot.slane %v455, 1
        %v518 = vsel %vm508, %v515, %v517
        %v519 = vrot.slane %v439, 1
        %v520 = vrot.slane %v345, 1
        %v521 = vsel %vm508, %v519, %v520
        %v522 = vrot.slane %v456, 1
        %v523 = vsel %vm508, %v520, %v522
        %v524 = vrot.slane %v440, 1
        %v525 = vrot.slane %v348, 1
        %v526 = vsel %vm508, %v524, %v525
        %v527 = vrot.slane %v457, 1
        %v528 = vsel %vm508, %v525, %v527
        %v529 = vrot.slane %v441, 1
        %v530 = vrot.slane %v351, 1
        %v531 = vsel %vm508, %v529, %v530
        %v532 = vrot.slane %v458, 1
        %v533 = vsel %vm508, %v530, %v532
        %v534 = vrot.slane %v442, 1
        %v535 = vrot.slane %v354, 1
        %v536 = vsel %vm508, %v534, %v535
        %v537 = vrot.slane %v459, 1
        %v538 = vsel %vm508, %v535, %v537
        %v539 = vrot.slane %v443, 1
        %v540 = vrot.slane %v357, 1
        %v541 = vsel %vm508, %v539, %v540
        %v542 = vrot.slane %v460, 1
        %v543 = vsel %vm508, %v540, %v542
        %v544 = vrot.slane %v444, 1
        %v545 = vrot.slane %v360, 1
        %v546 = vsel %vm508, %v544, %v545
        %v547 = vrot.slane %v461, 1
        %v548 = vsel %vm508, %v545, %v547
        %v549 = vrot.slane %v445, 1
        %v550 = vrot.slane %v363, 1
        %v551 = vsel %vm508, %v549, %v550
        %v552 = vrot.slane %v462, 1
        %v553 = vsel %vm508, %v550, %v552
        %v554 = vrot.slane %v446, 1
        %v555 = vrot.slane %v366, 1
        %v556 = vsel %vm508, %v554, %v555
        %v557 = vrot.slane %v463, 1
        %v558 = vsel %vm508, %v555, %v557
        %v559 = vrot.slane %v447, 1
        %v560 = vrot.slane %v369, 1
        %v561 = vsel %vm508, %v559, %v560
        %v562 = vrot.slane %v464, 1
        %v563 = vsel %vm508, %v560, %v562
        %v564 = vrot.slane %v448, 1
        %v565 = vrot.slane %v372, 1
        %v566 = vsel %vm508, %v564, %v565
        %v567 = vrot.slane %v465, 1
        %v568 = vsel %vm508, %v565, %v567
        %v569 = vrot.slane %v449, 1
        %v570 = vrot.slane %v375, 1
        %v571 = vsel %vm508, %v569, %v570
        %v572 = vrot.slane %v466, 1
        %v573 = vsel %vm508, %v570, %v572
        %v574 = vrot.slane %v450, 1
        %v575 = vrot.slane %v378, 1
        %v576 = vsel %vm508, %v574, %v575
        %v577 = vrot.slane %v467, 1
        %v578 = vsel %vm508, %v575, %v577
        %v579 = vrot.slane %v451, 1
        %v580 = vrot.slane %v381, 1
        %v581 = vsel %vm508, %v579, %v580
        %v582 = vrot.slane %v468, 1
        %v583 = vsel %vm508, %v580, %v582
        %v584 = vrot.slane %v452, 1
        %v585 = vrot.slane %v384, 1
        %v586 = vsel %vm508, %v584, %v585
        %v587 = vrot.slane %v469, 1
        %v588 = vsel %vm508, %v585, %v587
        %589 = vrot.lane.b32.xlu0 %v511, 4
        %v590 = vpop.permute.xlu0 %589
        %591 = vrot.lane.b32.xlu0 %v513, 4
        %v592 = vpop.permute.xlu0 %591
        %593 = vrot.lane.b32.xlu0 %v516, 4
        %v594 = vpop.permute.xlu0 %593
        %595 = vrot.lane.b32.xlu0 %v518, 4
        %v596 = vpop.permute.xlu0 %595
        %597 = vrot.lane.b32.xlu0 %v521, 4
        %v598 = vpop.permute.xlu0 %597
        %599 = vrot.lane.b32.xlu0 %v523, 4
        %v600 = vpop.permute.xlu0 %599
        %601 = vrot.lane.b32.xlu0 %v526, 4
        %v602 = vpop.permute.xlu0 %601
        %603 = vrot.lane.b32.xlu0 %v528, 4
        %v604 = vpop.permute.xlu0 %603
        %605 = vrot.lane.b32.xlu0 %v531, 4
        %v606 = vpop.permute.xlu0 %605
        %607 = vrot.lane.b32.xlu0 %v533, 4
        %v608 = vpop.permute.xlu0 %607
        %609 = vrot.lane.b32.xlu0 %v536, 4
        %v610 = vpop.permute.xlu0 %609
        %611 = vrot.lane.b32.xlu0 %v538, 4
        %v612 = vpop.permute.xlu0 %611
        %613 = vrot.lane.b32.xlu0 %v541, 4
        %v614 = vpop.permute.xlu0 %613
        %615 = vrot.lane.b32.xlu0 %v543, 4
        %v616 = vpop.permute.xlu0 %615
        %617 = vrot.lane.b32.xlu0 %v546, 4
        %v618 = vpop.permute.xlu0 %617
        %619 = vrot.lane.b32.xlu0 %v548, 4
        %v620 = vpop.permute.xlu0 %619
        %621 = vrot.lane.b32.xlu0 %v551, 4
        %v622 = vpop.permute.xlu0 %621
        %623 = vrot.lane.b32.xlu0 %v553, 4
        %v624 = vpop.permute.xlu0 %623
        %625 = vrot.lane.b32.xlu0 %v556, 4
        %v626 = vpop.permute.xlu0 %625
        %627 = vrot.lane.b32.xlu0 %v558, 4
        %v628 = vpop.permute.xlu0 %627
        %629 = vrot.lane.b32.xlu0 %v561, 4
        %v630 = vpop.permute.xlu0 %629
        %631 = vrot.lane.b32.xlu0 %v563, 4
        %v632 = vpop.permute.xlu0 %631
        %633 = vrot.lane.b32.xlu0 %v566, 4
        %v634 = vpop.permute.xlu0 %633
        %635 = vrot.lane.b32.xlu0 %v568, 4
        %v636 = vpop.permute.xlu0 %635
        %637 = vrot.lane.b32.xlu0 %v571, 4
        %v638 = vpop.permute.xlu0 %637
        %639 = vrot.lane.b32.xlu0 %v573, 4
        %v640 = vpop.permute.xlu0 %639
        %641 = vrot.lane.b32.xlu0 %v576, 4
        %v642 = vpop.permute.xlu0 %641
        %643 = vrot.lane.b32.xlu0 %v578, 4
        %v644 = vpop.permute.xlu0 %643
        %645 = vrot.lane.b32.xlu0 %v581, 4
        %v646 = vpop.permute.xlu0 %645
        %647 = vrot.lane.b32.xlu0 %v583, 4
        %v648 = vpop.permute.xlu0 %647
        %649 = vrot.lane.b32.xlu0 %v586, 4
        %v650 = vpop.permute.xlu0 %649
        %651 = vrot.lane.b32.xlu0 %v588, 4
        %v652 = vpop.permute.xlu0 %651
        %vm685 = vcmask 1045504
        %v686 = vrot.slane %v437, 2
        %v687 = vrot.slane %v339, 2
        %v688 = vsel %vm685, %v686, %v687
        %v689 = vrot.slane %v454, 2
        %v690 = vsel %vm685, %v687, %v689
        %v691 = vrot.slane %v438, 2
        %v692 = vrot.slane %v342, 2
        %v693 = vsel %vm685, %v691, %v692
        %v694 = vrot.slane %v455, 2
        %v695 = vsel %vm685, %v692, %v694
        %v696 = vrot.slane %v439, 2
        %v697 = vrot.slane %v345, 2
        %v698 = vsel %vm685, %v696, %v697
        %v699 = vrot.slane %v456, 2
        %v700 = vsel %vm685, %v697, %v699
        %v701 = vrot.slane %v440, 2
        %v702 = vrot.slane %v348, 2
        %v703 = vsel %vm685, %v701, %v702
        %v704 = vrot.slane %v457, 2
        %v705 = vsel %vm685, %v702, %v704
        %v706 = vrot.slane %v441, 2
        %v707 = vrot.slane %v351, 2
        %v708 = vsel %vm685, %v706, %v707
        %v709 = vrot.slane %v458, 2
        %v710 = vsel %vm685, %v707, %v709
        %v711 = vrot.slane %v442, 2
        %v712 = vrot.slane %v354, 2
        %v713 = vsel %vm685, %v711, %v712
        %v714 = vrot.slane %v459, 2
        %v715 = vsel %vm685, %v712, %v714
        %v716 = vrot.slane %v443, 2
        %v717 = vrot.slane %v357, 2
        %v718 = vsel %vm685, %v716, %v717
        %v719 = vrot.slane %v460, 2
        %v720 = vsel %vm685, %v717, %v719
        %v721 = vrot.slane %v444, 2
        %v722 = vrot.slane %v360, 2
        %v723 = vsel %vm685, %v721, %v722
        %v724 = vrot.slane %v461, 2
        %v725 = vsel %vm685, %v722, %v724
        %v726 = vrot.slane %v445, 2
        %v727 = vrot.slane %v363, 2
        %v728 = vsel %vm685, %v726, %v727
        %v729 = vrot.slane %v462, 2
        %v730 = vsel %vm685, %v727, %v729
        %v731 = vrot.slane %v446, 2
        %v732 = vrot.slane %v366, 2
        %v733 = vsel %vm685, %v731, %v732
        %v734 = vrot.slane %v463, 2
        %v735 = vsel %vm685, %v732, %v734
        %v736 = vrot.slane %v447, 2
        %v737 = vrot.slane %v369, 2
        %v738 = vsel %vm685, %v736, %v737
        %v739 = vrot.slane %v464, 2
        %v740 = vsel %vm685, %v737, %v739
        %v741 = vrot.slane %v448, 2
        %v742 = vrot.slane %v372, 2
        %v743 = vsel %vm685, %v741, %v742
        %v744 = vrot.slane %v465, 2
        %v745 = vsel %vm685, %v742, %v744
        %v746 = vrot.slane %v449, 2
        %v747 = vrot.slane %v375, 2
        %v748 = vsel %vm685, %v746, %v747
        %v749 = vrot.slane %v466, 2
        %v750 = vsel %vm685, %v747, %v749
        %v751 = vrot.slane %v450, 2
        %v752 = vrot.slane %v378, 2
        %v753 = vsel %vm685, %v751, %v752
        %v754 = vrot.slane %v467, 2
        %v755 = vsel %vm685, %v752, %v754
        %v756 = vrot.slane %v451, 2
        %v757 = vrot.slane %v381, 2
        %v758 = vsel %vm685, %v756, %v757
        %v759 = vrot.slane %v468, 2
        %v760 = vsel %vm685, %v757, %v759
        %v761 = vrot.slane %v452, 2
        %v762 = vrot.slane %v384, 2
        %v763 = vsel %vm685, %v761, %v762
        %v764 = vrot.slane %v469, 2
        %v765 = vsel %vm685, %v762, %v764
        %766 = vrot.lane.b32.xlu0 %v688, 8
        %v767 = vpop.permute.xlu0 %766
        %768 = vrot.lane.b32.xlu0 %v690, 8
        %v769 = vpop.permute.xlu0 %768
        %770 = vrot.lane.b32.xlu0 %v693, 8
        %v771 = vpop.permute.xlu0 %770
        %772 = vrot.lane.b32.xlu0 %v695, 8
        %v773 = vpop.permute.xlu0 %772
        %774 = vrot.lane.b32.xlu0 %v698, 8
        %v775 = vpop.permute.xlu0 %774
        %776 = vrot.lane.b32.xlu0 %v700, 8
        %v777 = vpop.permute.xlu0 %776
        %778 = vrot.lane.b32.xlu0 %v703, 8
        %v779 = vpop.permute.xlu0 %778
        %780 = vrot.lane.b32.xlu0 %v705, 8
        %v781 = vpop.permute.xlu0 %780
        %782 = vrot.lane.b32.xlu0 %v708, 8
        %v783 = vpop.permute.xlu0 %782
        %784 = vrot.lane.b32.xlu0 %v710, 8
        %v785 = vpop.permute.xlu0 %784
        %786 = vrot.lane.b32.xlu0 %v713, 8
        %v787 = vpop.permute.xlu0 %786
        %788 = vrot.lane.b32.xlu0 %v715, 8
        %v789 = vpop.permute.xlu0 %788
        %790 = vrot.lane.b32.xlu0 %v718, 8
        %v791 = vpop.permute.xlu0 %790
        %792 = vrot.lane.b32.xlu0 %v720, 8
        %v793 = vpop.permute.xlu0 %792
        %794 = vrot.lane.b32.xlu0 %v723, 8
        %v795 = vpop.permute.xlu0 %794
        %796 = vrot.lane.b32.xlu0 %v725, 8
        %v797 = vpop.permute.xlu0 %796
        %798 = vrot.lane.b32.xlu0 %v728, 8
        %v799 = vpop.permute.xlu0 %798
        %800 = vrot.lane.b32.xlu0 %v730, 8
        %v801 = vpop.permute.xlu0 %800
        %802 = vrot.lane.b32.xlu0 %v733, 8
        %v803 = vpop.permute.xlu0 %802
        %804 = vrot.lane.b32.xlu0 %v735, 8
        %v805 = vpop.permute.xlu0 %804
        %806 = vrot.lane.b32.xlu0 %v738, 8
        %v807 = vpop.permute.xlu0 %806
        %808 = vrot.lane.b32.xlu0 %v740, 8
        %v809 = vpop.permute.xlu0 %808
        %810 = vrot.lane.b32.xlu0 %v743, 8
        %v811 = vpop.permute.xlu0 %810
        %812 = vrot.lane.b32.xlu0 %v745, 8
        %v813 = vpop.permute.xlu0 %812
        %814 = vrot.lane.b32.xlu0 %v748, 8
        %v815 = vpop.permute.xlu0 %814
        %816 = vrot.lane.b32.xlu0 %v750, 8
        %v817 = vpop.permute.xlu0 %816
        %818 = vrot.lane.b32.xlu0 %v753, 8
        %v819 = vpop.permute.xlu0 %818
        %820 = vrot.lane.b32.xlu0 %v755, 8
        %v821 = vpop.permute.xlu0 %820
        %822 = vrot.lane.b32.xlu0 %v758, 8
        %v823 = vpop.permute.xlu0 %822
        %824 = vrot.lane.b32.xlu0 %v760, 8
        %v825 = vpop.permute.xlu0 %824
        %826 = vrot.lane.b32.xlu0 %v763, 8
        %v827 = vpop.permute.xlu0 %826
        %828 = vrot.lane.b32.xlu0 %v765, 8
        %v829 = vpop.permute.xlu0 %828
        %863 = vrot.lane.b32.xlu0 %v438, 12
        %v864 = vpop.permute.xlu0 %863
        %865 = vrot.lane.b32.xlu0 %v342, 12
        %v866 = vpop.permute.xlu0 %865
        %867 = vrot.lane.b32.xlu0 %v439, 12
        %v868 = vpop.permute.xlu0 %867
        %869 = vrot.lane.b32.xlu0 %v345, 12
        %v870 = vpop.permute.xlu0 %869
        %871 = vrot.lane.b32.xlu0 %v440, 12
        %v872 = vpop.permute.xlu0 %871
        %873 = vrot.lane.b32.xlu0 %v348, 12
        %v874 = vpop.permute.xlu0 %873
        %875 = vrot.lane.b32.xlu0 %v441, 12
        %v876 = vpop.permute.xlu0 %875
        %877 = vrot.lane.b32.xlu0 %v351, 12
        %v878 = vpop.permute.xlu0 %877
        %879 = vrot.lane.b32.xlu0 %v442, 12
        %v880 = vpop.permute.xlu0 %879
        %881 = vrot.lane.b32.xlu0 %v354, 12
        %v882 = vpop.permute.xlu0 %881
        %883 = vrot.lane.b32.xlu0 %v443, 12
        %v884 = vpop.permute.xlu0 %883
        %885 = vrot.lane.b32.xlu0 %v357, 12
        %v886 = vpop.permute.xlu0 %885
        %887 = vrot.lane.b32.xlu0 %v444, 12
        %v888 = vpop.permute.xlu0 %887
        %889 = vrot.lane.b32.xlu0 %v360, 12
        %v890 = vpop.permute.xlu0 %889
        %891 = vrot.lane.b32.xlu0 %v445, 12
        %v892 = vpop.permute.xlu0 %891
        %893 = vrot.lane.b32.xlu0 %v363, 12
        %v894 = vpop.permute.xlu0 %893
        %895 = vrot.lane.b32.xlu0 %v446, 12
        %v896 = vpop.permute.xlu0 %895
        %897 = vrot.lane.b32.xlu0 %v366, 12
        %v898 = vpop.permute.xlu0 %897
        %899 = vrot.lane.b32.xlu0 %v447, 12
        %v900 = vpop.permute.xlu0 %899
        %901 = vrot.lane.b32.xlu0 %v369, 12
        %v902 = vpop.permute.xlu0 %901
        %903 = vrot.lane.b32.xlu0 %v448, 12
        %v904 = vpop.permute.xlu0 %903
        %905 = vrot.lane.b32.xlu0 %v372, 12
        %v906 = vpop.permute.xlu0 %905
        %907 = vrot.lane.b32.xlu0 %v449, 12
        %v908 = vpop.permute.xlu0 %907
        %909 = vrot.lane.b32.xlu0 %v375, 12
        %v910 = vpop.permute.xlu0 %909
        %911 = vrot.lane.b32.xlu0 %v450, 12
        %v912 = vpop.permute.xlu0 %911
        %913 = vrot.lane.b32.xlu0 %v378, 12
        %v914 = vpop.permute.xlu0 %913
        %915 = vrot.lane.b32.xlu0 %v451, 12
        %v916 = vpop.permute.xlu0 %915
        %917 = vrot.lane.b32.xlu0 %v381, 12
        %v918 = vpop.permute.xlu0 %917
        %919 = vrot.lane.b32.xlu0 %v452, 12
        %v920 = vpop.permute.xlu0 %919
        %921 = vrot.lane.b32.xlu0 %v384, 12
        %v922 = vpop.permute.xlu0 %921
        %923 = vrot.lane.b32.xlu0 %v453, 12
        %v924 = vpop.permute.xlu0 %923
        %925 = vrot.lane.b32.xlu0 %v387, 12
        %v926 = vpop.permute.xlu0 %925
        %v960 = vrot.slane %v453, 1
        %v961 = vrot.slane %v387, 1
        %v962 = vsel %vm508, %v960, %v961
        %v963 = vrot.slane %v470, 1
        %v964 = vsel %vm508, %v961, %v963
        %965 = vrot.lane.b32.xlu0 %v516, 16
        %v966 = vpop.permute.xlu0 %965
        %967 = vrot.lane.b32.xlu0 %v518, 16
        %v968 = vpop.permute.xlu0 %967
        %969 = vrot.lane.b32.xlu0 %v521, 16
        %v970 = vpop.permute.xlu0 %969
        %971 = vrot.lane.b32.xlu0 %v523, 16
        %v972 = vpop.permute.xlu0 %971
        %973 = vrot.lane.b32.xlu0 %v526, 16
        %v974 = vpop.permute.xlu0 %973
        %975 = vrot.lane.b32.xlu0 %v528, 16
        %v976 = vpop.permute.xlu0 %975
        %977 = vrot.lane.b32.xlu0 %v531, 16
        %v978 = vpop.permute.xlu0 %977
        %979 = vrot.lane.b32.xlu0 %v533, 16
        %v980 = vpop.permute.xlu0 %979
        %981 = vrot.lane.b32.xlu0 %v536, 16
        %v982 = vpop.permute.xlu0 %981
        %983 = vrot.lane.b32.xlu0 %v538, 16
        %v984 = vpop.permute.xlu0 %983
        %985 = vrot.lane.b32.xlu0 %v541, 16
        %v986 = vpop.permute.xlu0 %985
        %987 = vrot.lane.b32.xlu0 %v543, 16
        %v988 = vpop.permute.xlu0 %987
        %989 = vrot.lane.b32.xlu0 %v546, 16
        %v990 = vpop.permute.xlu0 %989
        %991 = vrot.lane.b32.xlu0 %v548, 16
        %v992 = vpop.permute.xlu0 %991
        %993 = vrot.lane.b32.xlu0 %v551, 16
        %v994 = vpop.permute.xlu0 %993
        %995 = vrot.lane.b32.xlu0 %v553, 16
        %v996 = vpop.permute.xlu0 %995
        %997 = vrot.lane.b32.xlu0 %v556, 16
        %v998 = vpop.permute.xlu0 %997
        %999 = vrot.lane.b32.xlu0 %v558, 16
        %v1000 = vpop.permute.xlu0 %999
        %1001 = vrot.lane.b32.xlu0 %v561, 16
        %v1002 = vpop.permute.xlu0 %1001
        %1003 = vrot.lane.b32.xlu0 %v563, 16
        %v1004 = vpop.permute.xlu0 %1003
        %1005 = vrot.lane.b32.xlu0 %v566, 16
        %v1006 = vpop.permute.xlu0 %1005
        %1007 = vrot.lane.b32.xlu0 %v568, 16
        %v1008 = vpop.permute.xlu0 %1007
        %1009 = vrot.lane.b32.xlu0 %v571, 16
        %v1010 = vpop.permute.xlu0 %1009
        %1011 = vrot.lane.b32.xlu0 %v573, 16
        %v1012 = vpop.permute.xlu0 %1011
        %1013 = vrot.lane.b32.xlu0 %v576, 16
        %v1014 = vpop.permute.xlu0 %1013
        %1015 = vrot.lane.b32.xlu0 %v578, 16
        %v1016 = vpop.permute.xlu0 %1015
        %1017 = vrot.lane.b32.xlu0 %v581, 16
        %v1018 = vpop.permute.xlu0 %1017
        %1019 = vrot.lane.b32.xlu0 %v583, 16
        %v1020 = vpop.permute.xlu0 %1019
        %1021 = vrot.lane.b32.xlu0 %v586, 16
        %v1022 = vpop.permute.xlu0 %1021
        %1023 = vrot.lane.b32.xlu0 %v588, 16
        %v1024 = vpop.permute.xlu0 %1023
        %1025 = vrot.lane.b32.xlu0 %v962, 16
        %v1026 = vpop.permute.xlu0 %1025
        %1027 = vrot.lane.b32.xlu0 %v964, 16
        %v1028 = vpop.permute.xlu0 %1027
        %v1061 = vrot.slane %v453, 2
        %v1062 = vrot.slane %v387, 2
        %v1063 = vsel %vm685, %v1061, %v1062
        %v1064 = vrot.slane %v470, 2
        %v1065 = vsel %vm685, %v1062, %v1064
        %1066 = vrot.lane.b32.xlu0 %v693, 20
        %v1067 = vpop.permute.xlu0 %1066
        %1068 = vrot.lane.b32.xlu0 %v695, 20
        %v1069 = vpop.permute.xlu0 %1068
        %1070 = vrot.lane.b32.xlu0 %v698, 20
        %v1071 = vpop.permute.xlu0 %1070
        %1072 = vrot.lane.b32.xlu0 %v700, 20
        %v1073 = vpop.permute.xlu0 %1072
        %1074 = vrot.lane.b32.xlu0 %v703, 20
        %v1075 = vpop.permute.xlu0 %1074
        %1076 = vrot.lane.b32.xlu0 %v705, 20
        %v1077 = vpop.permute.xlu0 %1076
        %1078 = vrot.lane.b32.xlu0 %v708, 20
        %v1079 = vpop.permute.xlu0 %1078
        %1080 = vrot.lane.b32.xlu0 %v710, 20
        %v1081 = vpop.permute.xlu0 %1080
        %1082 = vrot.lane.b32.xlu0 %v713, 20
        %v1083 = vpop.permute.xlu0 %1082
        %1084 = vrot.lane.b32.xlu0 %v715, 20
        %v1085 = vpop.permute.xlu0 %1084
        %1086 = vrot.lane.b32.xlu0 %v718, 20
        %v1087 = vpop.permute.xlu0 %1086
        %1088 = vrot.lane.b32.xlu0 %v720, 20
        %v1089 = vpop.permute.xlu0 %1088
        %1090 = vrot.lane.b32.xlu0 %v723, 20
        %v1091 = vpop.permute.xlu0 %1090
        %1092 = vrot.lane.b32.xlu0 %v725, 20
        %v1093 = vpop.permute.xlu0 %1092
        %1094 = vrot.lane.b32.xlu0 %v728, 20
        %v1095 = vpop.permute.xlu0 %1094
        %1096 = vrot.lane.b32.xlu0 %v730, 20
        %v1097 = vpop.permute.xlu0 %1096
        %1098 = vrot.lane.b32.xlu0 %v733, 20
        %v1099 = vpop.permute.xlu0 %1098
        %1100 = vrot.lane.b32.xlu0 %v735, 20
        %v1101 = vpop.permute.xlu0 %1100
        %1102 = vrot.lane.b32.xlu0 %v738, 20
        %v1103 = vpop.permute.xlu0 %1102
        %1104 = vrot.lane.b32.xlu0 %v740, 20
        %v1105 = vpop.permute.xlu0 %1104
        %1106 = vrot.lane.b32.xlu0 %v743, 20
        %v1107 = vpop.permute.xlu0 %1106
        %1108 = vrot.lane.b32.xlu0 %v745, 20
        %v1109 = vpop.permute.xlu0 %1108
        %1110 = vrot.lane.b32.xlu0 %v748, 20
        %v1111 = vpop.permute.xlu0 %1110
        %1112 = vrot.lane.b32.xlu0 %v750, 20
        %v1113 = vpop.permute.xlu0 %1112
        %1114 = vrot.lane.b32.xlu0 %v753, 20
        %v1115 = vpop.permute.xlu0 %1114
        %1116 = vrot.lane.b32.xlu0 %v755, 20
        %v1117 = vpop.permute.xlu0 %1116
        %1118 = vrot.lane.b32.xlu0 %v758, 20
        %v1119 = vpop.permute.xlu0 %1118
        %1120 = vrot.lane.b32.xlu0 %v760, 20
        %v1121 = vpop.permute.xlu0 %1120
        %1122 = vrot.lane.b32.xlu0 %v763, 20
        %v1123 = vpop.permute.xlu0 %1122
        %1124 = vrot.lane.b32.xlu0 %v765, 20
        %v1125 = vpop.permute.xlu0 %1124
        %1126 = vrot.lane.b32.xlu0 %v1063, 20
        %v1127 = vpop.permute.xlu0 %1126
        %1128 = vrot.lane.b32.xlu0 %v1065, 20
        %v1129 = vpop.permute.xlu0 %1128
        %1162 = vrot.lane.b32.xlu0 %v439, 24
        %v1163 = vpop.permute.xlu0 %1162
        %1164 = vrot.lane.b32.xlu0 %v345, 24
        %v1165 = vpop.permute.xlu0 %1164
        %1166 = vrot.lane.b32.xlu0 %v440, 24
        %v1167 = vpop.permute.xlu0 %1166
        %1168 = vrot.lane.b32.xlu0 %v348, 24
        %v1169 = vpop.permute.xlu0 %1168
        %1170 = vrot.lane.b32.xlu0 %v441, 24
        %v1171 = vpop.permute.xlu0 %1170
        %1172 = vrot.lane.b32.xlu0 %v351, 24
        %v1173 = vpop.permute.xlu0 %1172
        %1174 = vrot.lane.b32.xlu0 %v442, 24
        %v1175 = vpop.permute.xlu0 %1174
        %1176 = vrot.lane.b32.xlu0 %v354, 24
        %v1177 = vpop.permute.xlu0 %1176
        %1178 = vrot.lane.b32.xlu0 %v443, 24
        %v1179 = vpop.permute.xlu0 %1178
        %1180 = vrot.lane.b32.xlu0 %v357, 24
        %v1181 = vpop.permute.xlu0 %1180
        %1182 = vrot.lane.b32.xlu0 %v444, 24
        %v1183 = vpop.permute.xlu0 %1182
        %1184 = vrot.lane.b32.xlu0 %v360, 24
        %v1185 = vpop.permute.xlu0 %1184
        %1186 = vrot.lane.b32.xlu0 %v445, 24
        %v1187 = vpop.permute.xlu0 %1186
        %1188 = vrot.lane.b32.xlu0 %v363, 24
        %v1189 = vpop.permute.xlu0 %1188
        %1190 = vrot.lane.b32.xlu0 %v446, 24
        %v1191 = vpop.permute.xlu0 %1190
        %1192 = vrot.lane.b32.xlu0 %v366, 24
        %v1193 = vpop.permute.xlu0 %1192
        %1194 = vrot.lane.b32.xlu0 %v447, 24
        %v1195 = vpop.permute.xlu0 %1194
        %1196 = vrot.lane.b32.xlu0 %v369, 24
        %v1197 = vpop.permute.xlu0 %1196
        %1198 = vrot.lane.b32.xlu0 %v448, 24
        %v1199 = vpop.permute.xlu0 %1198
        %1200 = vrot.lane.b32.xlu0 %v372, 24
        %v1201 = vpop.permute.xlu0 %1200
        %1202 = vrot.lane.b32.xlu0 %v449, 24
        %v1203 = vpop.permute.xlu0 %1202
        %1204 = vrot.lane.b32.xlu0 %v375, 24
        %v1205 = vpop.permute.xlu0 %1204
        %1206 = vrot.lane.b32.xlu0 %v450, 24
        %v1207 = vpop.permute.xlu0 %1206
        %1208 = vrot.lane.b32.xlu0 %v378, 24
        %v1209 = vpop.permute.xlu0 %1208
        %1210 = vrot.lane.b32.xlu0 %v451, 24
        %v1211 = vpop.permute.xlu0 %1210
        %1212 = vrot.lane.b32.xlu0 %v381, 24
        %v1213 = vpop.permute.xlu0 %1212
        %1214 = vrot.lane.b32.xlu0 %v452, 24
        %v1215 = vpop.permute.xlu0 %1214
        %1216 = vrot.lane.b32.xlu0 %v384, 24
        %v1217 = vpop.permute.xlu0 %1216
        %1218 = vrot.lane.b32.xlu0 %v453, 24
        %v1219 = vpop.permute.xlu0 %1218
        %1220 = vrot.lane.b32.xlu0 %v387, 24
        %v1221 = vpop.permute.xlu0 %1220
        %1222 = vrot.lane.b32.xlu0 %v437, 24
        %v1223 = vpop.permute.xlu0 %1222
        %1224 = vrot.lane.b32.xlu0 %v339, 24
        %v1225 = vpop.permute.xlu0 %1224
        %1258 = vrot.lane.b32.xlu0 %v521, 28
        %v1259 = vpop.permute.xlu0 %1258
        %1260 = vrot.lane.b32.xlu0 %v523, 28
        %v1261 = vpop.permute.xlu0 %1260
        %1262 = vrot.lane.b32.xlu0 %v526, 28
        %v1263 = vpop.permute.xlu0 %1262
        %1264 = vrot.lane.b32.xlu0 %v528, 28
        %v1265 = vpop.permute.xlu0 %1264
        %1266 = vrot.lane.b32.xlu0 %v531, 28
        %v1267 = vpop.permute.xlu0 %1266
        %1268 = vrot.lane.b32.xlu0 %v533, 28
        %v1269 = vpop.permute.xlu0 %1268
        %1270 = vrot.lane.b32.xlu0 %v536, 28
        %v1271 = vpop.permute.xlu0 %1270
        %1272 = vrot.lane.b32.xlu0 %v538, 28
        %v1273 = vpop.permute.xlu0 %1272
        %1274 = vrot.lane.b32.xlu0 %v541, 28
        %v1275 = vpop.permute.xlu0 %1274
        %1276 = vrot.lane.b32.xlu0 %v543, 28
        %v1277 = vpop.permute.xlu0 %1276
        %1278 = vrot.lane.b32.xlu0 %v546, 28
        %v1279 = vpop.permute.xlu0 %1278
        %1280 = vrot.lane.b32.xlu0 %v548, 28
        %v1281 = vpop.permute.xlu0 %1280
        %1282 = vrot.lane.b32.xlu0 %v551, 28
        %v1283 = vpop.permute.xlu0 %1282
        %1284 = vrot.lane.b32.xlu0 %v553, 28
        %v1285 = vpop.permute.xlu0 %1284
        %1286 = vrot.lane.b32.xlu0 %v556, 28
        %v1287 = vpop.permute.xlu0 %1286
        %1288 = vrot.lane.b32.xlu0 %v558, 28
        %v1289 = vpop.permute.xlu0 %1288
        %1290 = vrot.lane.b32.xlu0 %v561, 28
        %v1291 = vpop.permute.xlu0 %1290
        %1292 = vrot.lane.b32.xlu0 %v563, 28
        %v1293 = vpop.permute.xlu0 %1292
        %1294 = vrot.lane.b32.xlu0 %v566, 28
        %v1295 = vpop.permute.xlu0 %1294
        %1296 = vrot.lane.b32.xlu0 %v568, 28
        %v1297 = vpop.permute.xlu0 %1296
        %1298 = vrot.lane.b32.xlu0 %v571, 28
        %v1299 = vpop.permute.xlu0 %1298
        %1300 = vrot.lane.b32.xlu0 %v573, 28
        %v1301 = vpop.permute.xlu0 %1300
        %1302 = vrot.lane.b32.xlu0 %v576, 28
        %v1303 = vpop.permute.xlu0 %1302
        %1304 = vrot.lane.b32.xlu0 %v578, 28
        %v1305 = vpop.permute.xlu0 %1304
        %1306 = vrot.lane.b32.xlu0 %v581, 28
        %v1307 = vpop.permute.xlu0 %1306
        %1308 = vrot.lane.b32.xlu0 %v583, 28
        %v1309 = vpop.permute.xlu0 %1308
        %1310 = vrot.lane.b32.xlu0 %v586, 28
        %v1311 = vpop.permute.xlu0 %1310
        %1312 = vrot.lane.b32.xlu0 %v588, 28
        %v1313 = vpop.permute.xlu0 %1312
        %1314 = vrot.lane.b32.xlu0 %v962, 28
        %v1315 = vpop.permute.xlu0 %1314
        %1316 = vrot.lane.b32.xlu0 %v964, 28
        %v1317 = vpop.permute.xlu0 %1316
        %1318 = vrot.lane.b32.xlu0 %v511, 28
        %v1319 = vpop.permute.xlu0 %1318
        %1320 = vrot.lane.b32.xlu0 %v513, 28
        %v1321 = vpop.permute.xlu0 %1320
        %1354 = vrot.lane.b32.xlu0 %v698, 32
        %v1355 = vpop.permute.xlu0 %1354
        %1356 = vrot.lane.b32.xlu0 %v700, 32
        %v1357 = vpop.permute.xlu0 %1356
        %1358 = vrot.lane.b32.xlu0 %v703, 32
        %v1359 = vpop.permute.xlu0 %1358
        %1360 = vrot.lane.b32.xlu0 %v705, 32
        %v1361 = vpop.permute.xlu0 %1360
        %1362 = vrot.lane.b32.xlu0 %v708, 32
        %v1363 = vpop.permute.xlu0 %1362
        %1364 = vrot.lane.b32.xlu0 %v710, 32
        %v1365 = vpop.permute.xlu0 %1364
        %1366 = vrot.lane.b32.xlu0 %v713, 32
        %v1367 = vpop.permute.xlu0 %1366
        %1368 = vrot.lane.b32.xlu0 %v715, 32
        %v1369 = vpop.permute.xlu0 %1368
        %1370 = vrot.lane.b32.xlu0 %v718, 32
        %v1371 = vpop.permute.xlu0 %1370
        %1372 = vrot.lane.b32.xlu0 %v720, 32
        %v1373 = vpop.permute.xlu0 %1372
        %1374 = vrot.lane.b32.xlu0 %v723, 32
        %v1375 = vpop.permute.xlu0 %1374
        %1376 = vrot.lane.b32.xlu0 %v725, 32
        %v1377 = vpop.permute.xlu0 %1376
        %1378 = vrot.lane.b32.xlu0 %v728, 32
        %v1379 = vpop.permute.xlu0 %1378
        %1380 = vrot.lane.b32.xlu0 %v730, 32
        %v1381 = vpop.permute.xlu0 %1380
        %1382 = vrot.lane.b32.xlu0 %v733, 32
        %v1383 = vpop.permute.xlu0 %1382
        %1384 = vrot.lane.b32.xlu0 %v735, 32
        %v1385 = vpop.permute.xlu0 %1384
        %1386 = vrot.lane.b32.xlu0 %v738, 32
        %v1387 = vpop.permute.xlu0 %1386
        %1388 = vrot.lane.b32.xlu0 %v740, 32
        %v1389 = vpop.permute.xlu0 %1388
        %1390 = vrot.lane.b32.xlu0 %v743, 32
        %v1391 = vpop.permute.xlu0 %1390
        %1392 = vrot.lane.b32.xlu0 %v745, 32
        %v1393 = vpop.permute.xlu0 %1392
        %1394 = vrot.lane.b32.xlu0 %v748, 32
        %v1395 = vpop.permute.xlu0 %1394
        %1396 = vrot.lane.b32.xlu0 %v750, 32
        %v1397 = vpop.permute.xlu0 %1396
        %1398 = vrot.lane.b32.xlu0 %v753, 32
        %v1399 = vpop.permute.xlu0 %1398
        %1400 = vrot.lane.b32.xlu0 %v755, 32
        %v1401 = vpop.permute.xlu0 %1400
        %1402 = vrot.lane.b32.xlu0 %v758, 32
        %v1403 = vpop.permute.xlu0 %1402
        %1404 = vrot.lane.b32.xlu0 %v760, 32
        %v1405 = vpop.permute.xlu0 %1404
        %1406 = vrot.lane.b32.xlu0 %v763, 32
        %v1407 = vpop.permute.xlu0 %1406
        %1408 = vrot.lane.b32.xlu0 %v765, 32
        %v1409 = vpop.permute.xlu0 %1408
        %1410 = vrot.lane.b32.xlu0 %v1063, 32
        %v1411 = vpop.permute.xlu0 %1410
        %1412 = vrot.lane.b32.xlu0 %v1065, 32
        %v1413 = vpop.permute.xlu0 %1412
        %1414 = vrot.lane.b32.xlu0 %v688, 32
        %v1415 = vpop.permute.xlu0 %1414
        %1416 = vrot.lane.b32.xlu0 %v690, 32
        %v1417 = vpop.permute.xlu0 %1416
        %vm1450 = vcmask 31744
        %v1451 = vsel %vm1450, %v437, %v590
        %v1452 = vsel %vm1450, %v339, %v592
        %v1453 = vsel %vm1450, %v438, %v594
        %v1454 = vsel %vm1450, %v342, %v596
        %v1455 = vsel %vm1450, %v439, %v598
        %v1456 = vsel %vm1450, %v345, %v600
        %v1457 = vsel %vm1450, %v440, %v602
        %v1458 = vsel %vm1450, %v348, %v604
        %v1459 = vsel %vm1450, %v441, %v606
        %v1460 = vsel %vm1450, %v351, %v608
        %v1461 = vsel %vm1450, %v442, %v610
        %v1462 = vsel %vm1450, %v354, %v612
        %v1463 = vsel %vm1450, %v443, %v614
        %v1464 = vsel %vm1450, %v357, %v616
        %v1465 = vsel %vm1450, %v444, %v618
        %v1466 = vsel %vm1450, %v360, %v620
        %v1467 = vsel %vm1450, %v445, %v622
        %v1468 = vsel %vm1450, %v363, %v624
        %v1469 = vsel %vm1450, %v446, %v626
        %v1470 = vsel %vm1450, %v366, %v628
        %v1471 = vsel %vm1450, %v447, %v630
        %v1472 = vsel %vm1450, %v369, %v632
        %v1473 = vsel %vm1450, %v448, %v634
        %v1474 = vsel %vm1450, %v372, %v636
        %v1475 = vsel %vm1450, %v449, %v638
        %v1476 = vsel %vm1450, %v375, %v640
        %v1477 = vsel %vm1450, %v450, %v642
        %v1478 = vsel %vm1450, %v378, %v644
        %v1479 = vsel %vm1450, %v451, %v646
        %v1480 = vsel %vm1450, %v381, %v648
        %v1481 = vsel %vm1450, %v452, %v650
        %v1482 = vsel %vm1450, %v384, %v652
        %vm1483 = vcmask 64512
        %v1484 = vsel %vm1483, %v1451, %v767
        %v1485 = vsel %vm1483, %v1452, %v769
        %v1486 = vsel %vm1483, %v1453, %v771
        %v1487 = vsel %vm1483, %v1454, %v773
        %v1488 = vsel %vm1483, %v1455, %v775
        %v1489 = vsel %vm1483, %v1456, %v777
        %v1490 = vsel %vm1483, %v1457, %v779
        %v1491 = vsel %vm1483, %v1458, %v781
        %v1492 = vsel %vm1483, %v1459, %v783
        %v1493 = vsel %vm1483, %v1460, %v785
        %v1494 = vsel %vm1483, %v1461, %v787
        %v1495 = vsel %vm1483, %v1462, %v789
        %v1496 = vsel %vm1483, %v1463, %v791
        %v1497 = vsel %vm1483, %v1464, %v793
        %v1498 = vsel %vm1483, %v1465, %v795
        %v1499 = vsel %vm1483, %v1466, %v797
        %v1500 = vsel %vm1483, %v1467, %v799
        %v1501 = vsel %vm1483, %v1468, %v801
        %v1502 = vsel %vm1483, %v1469, %v803
        %v1503 = vsel %vm1483, %v1470, %v805
        %v1504 = vsel %vm1483, %v1471, %v807
        %v1505 = vsel %vm1483, %v1472, %v809
        %v1506 = vsel %vm1483, %v1473, %v811
        %v1507 = vsel %vm1483, %v1474, %v813
        %v1508 = vsel %vm1483, %v1475, %v815
        %v1509 = vsel %vm1483, %v1476, %v817
        %v1510 = vsel %vm1483, %v1477, %v819
        %v1511 = vsel %vm1483, %v1478, %v821
        %v1512 = vsel %vm1483, %v1479, %v823
        %v1513 = vsel %vm1483, %v1480, %v825
        %v1514 = vsel %vm1483, %v1481, %v827
        %v1515 = vsel %vm1483, %v1482, %v829
        %vm1516 = vcmask 97280
        %v1517 = vsel %vm1516, %v1484, %v864
        %v1518 = vsel %vm1516, %v1485, %v866
        %v1519 = vsel %vm1516, %v1486, %v868
        %v1520 = vsel %vm1516, %v1487, %v870
        %v1521 = vsel %vm1516, %v1488, %v872
        %v1522 = vsel %vm1516, %v1489, %v874
        %v1523 = vsel %vm1516, %v1490, %v876
        %v1524 = vsel %vm1516, %v1491, %v878
        %v1525 = vsel %vm1516, %v1492, %v880
        %v1526 = vsel %vm1516, %v1493, %v882
        %v1527 = vsel %vm1516, %v1494, %v884
        %v1528 = vsel %vm1516, %v1495, %v886
        %v1529 = vsel %vm1516, %v1496, %v888
        %v1530 = vsel %vm1516, %v1497, %v890
        %v1531 = vsel %vm1516, %v1498, %v892
        %v1532 = vsel %vm1516, %v1499, %v894
        %v1533 = vsel %vm1516, %v1500, %v896
        %v1534 = vsel %vm1516, %v1501, %v898
        %v1535 = vsel %vm1516, %v1502, %v900
        %v1536 = vsel %vm1516, %v1503, %v902
        %v1537 = vsel %vm1516, %v1504, %v904
        %v1538 = vsel %vm1516, %v1505, %v906
        %v1539 = vsel %vm1516, %v1506, %v908
        %v1540 = vsel %vm1516, %v1507, %v910
        %v1541 = vsel %vm1516, %v1508, %v912
        %v1542 = vsel %vm1516, %v1509, %v914
        %v1543 = vsel %vm1516, %v1510, %v916
        %v1544 = vsel %vm1516, %v1511, %v918
        %v1545 = vsel %vm1516, %v1512, %v920
        %v1546 = vsel %vm1516, %v1513, %v922
        %v1547 = vsel %vm1516, %v1514, %v924
        %v1548 = vsel %vm1516, %v1515, %v926
        %vm1549 = vcmask 130048
        %v1550 = vsel %vm1549, %v1517, %v966
        %v1551 = vsel %vm1549, %v1518, %v968
        %v1552 = vsel %vm1549, %v1519, %v970
        %v1553 = vsel %vm1549, %v1520, %v972
        %v1554 = vsel %vm1549, %v1521, %v974
        %v1555 = vsel %vm1549, %v1522, %v976
        %v1556 = vsel %vm1549, %v1523, %v978
        %v1557 = vsel %vm1549, %v1524, %v980
        %v1558 = vsel %vm1549, %v1525, %v982
        %v1559 = vsel %vm1549, %v1526, %v984
        %v1560 = vsel %vm1549, %v1527, %v986
        %v1561 = vsel %vm1549, %v1528, %v988
        %v1562 = vsel %vm1549, %v1529, %v990
        %v1563 = vsel %vm1549, %v1530, %v992
        %v1564 = vsel %vm1549, %v1531, %v994
        %v1565 = vsel %vm1549, %v1532, %v996
        %v1566 = vsel %vm1549, %v1533, %v998
        %v1567 = vsel %vm1549, %v1534, %v1000
        %v1568 = vsel %vm1549, %v1535, %v1002
        %v1569 = vsel %vm1549, %v1536, %v1004
        %v1570 = vsel %vm1549, %v1537, %v1006
        %v1571 = vsel %vm1549, %v1538, %v1008
        %v1572 = vsel %vm1549, %v1539, %v1010
        %v1573 = vsel %vm1549, %v1540, %v1012
        %v1574 = vsel %vm1549, %v1541, %v1014
        %v1575 = vsel %vm1549, %v1542, %v1016
        %v1576 = vsel %vm1549, %v1543, %v1018
        %v1577 = vsel %vm1549, %v1544, %v1020
        %v1578 = vsel %vm1549, %v1545, %v1022
        %v1579 = vsel %vm1549, %v1546, %v1024
        %v1580 = vsel %vm1549, %v1547, %v1026
        %v1581 = vsel %vm1549, %v1548, %v1028
        %vm1582 = vcmask 162816
        %v1583 = vsel %vm1582, %v1550, %v1067
        %v1584 = vsel %vm1582, %v1551, %v1069
        %v1585 = vsel %vm1582, %v1552, %v1071
        %v1586 = vsel %vm1582, %v1553, %v1073
        %v1587 = vsel %vm1582, %v1554, %v1075
        %v1588 = vsel %vm1582, %v1555, %v1077
        %v1589 = vsel %vm1582, %v1556, %v1079
        %v1590 = vsel %vm1582, %v1557, %v1081
        %v1591 = vsel %vm1582, %v1558, %v1083
        %v1592 = vsel %vm1582, %v1559, %v1085
        %v1593 = vsel %vm1582, %v1560, %v1087
        %v1594 = vsel %vm1582, %v1561, %v1089
        %v1595 = vsel %vm1582, %v1562, %v1091
        %v1596 = vsel %vm1582, %v1563, %v1093
        %v1597 = vsel %vm1582, %v1564, %v1095
        %v1598 = vsel %vm1582, %v1565, %v1097
        %v1599 = vsel %vm1582, %v1566, %v1099
        %v1600 = vsel %vm1582, %v1567, %v1101
        %v1601 = vsel %vm1582, %v1568, %v1103
        %v1602 = vsel %vm1582, %v1569, %v1105
        %v1603 = vsel %vm1582, %v1570, %v1107
        %v1604 = vsel %vm1582, %v1571, %v1109
        %v1605 = vsel %vm1582, %v1572, %v1111
        %v1606 = vsel %vm1582, %v1573, %v1113
        %v1607 = vsel %vm1582, %v1574, %v1115
        %v1608 = vsel %vm1582, %v1575, %v1117
        %v1609 = vsel %vm1582, %v1576, %v1119
        %v1610 = vsel %vm1582, %v1577, %v1121
        %v1611 = vsel %vm1582, %v1578, %v1123
        %v1612 = vsel %vm1582, %v1579, %v1125
        %v1613 = vsel %vm1582, %v1580, %v1127
        %v1614 = vsel %vm1582, %v1581, %v1129
        %vm1615 = vcmask 195584
        %v1616 = vsel %vm1615, %v1583, %v1163
        %v1617 = vsel %vm1615, %v1584, %v1165
        %v1618 = vsel %vm1615, %v1585, %v1167
        %v1619 = vsel %vm1615, %v1586, %v1169
        %v1620 = vsel %vm1615, %v1587, %v1171
        %v1621 = vsel %vm1615, %v1588, %v1173
        %v1622 = vsel %vm1615, %v1589, %v1175
        %v1623 = vsel %vm1615, %v1590, %v1177
        %v1624 = vsel %vm1615, %v1591, %v1179
        %v1625 = vsel %vm1615, %v1592, %v1181
        %v1626 = vsel %vm1615, %v1593, %v1183
        %v1627 = vsel %vm1615, %v1594, %v1185
        %v1628 = vsel %vm1615, %v1595, %v1187
        %v1629 = vsel %vm1615, %v1596, %v1189
        %v1630 = vsel %vm1615, %v1597, %v1191
        %v1631 = vsel %vm1615, %v1598, %v1193
        %v1632 = vsel %vm1615, %v1599, %v1195
        %v1633 = vsel %vm1615, %v1600, %v1197
        %v1634 = vsel %vm1615, %v1601, %v1199
        %v1635 = vsel %vm1615, %v1602, %v1201
        %v1636 = vsel %vm1615, %v1603, %v1203
        %v1637 = vsel %vm1615, %v1604, %v1205
        %v1638 = vsel %vm1615, %v1605, %v1207
        %v1639 = vsel %vm1615, %v1606, %v1209
        %v1640 = vsel %vm1615, %v1607, %v1211
        %v1641 = vsel %vm1615, %v1608, %v1213
        %v1642 = vsel %vm1615, %v1609, %v1215
        %v1643 = vsel %vm1615, %v1610, %v1217
        %v1644 = vsel %vm1615, %v1611, %v1219
        %v1645 = vsel %vm1615, %v1612, %v1221
        %v1646 = vsel %vm1615, %v1613, %v1223
        %v1647 = vsel %vm1615, %v1614, %v1225
        %vm1648 = vcmask 228352
        %v1649 = vsel %vm1648, %v1616, %v1259
        %v1650 = vsel %vm1648, %v1617, %v1261
        %v1651 = vsel %vm1648, %v1618, %v1263
        %v1652 = vsel %vm1648, %v1619, %v1265
        %v1653 = vsel %vm1648, %v1620, %v1267
        %v1654 = vsel %vm1648, %v1621, %v1269
        %v1655 = vsel %vm1648, %v1622, %v1271
        %v1656 = vsel %vm1648, %v1623, %v1273
        %v1657 = vsel %vm1648, %v1624, %v1275
        %v1658 = vsel %vm1648, %v1625, %v1277
        %v1659 = vsel %vm1648, %v1626, %v1279
        %v1660 = vsel %vm1648, %v1627, %v1281
        %v1661 = vsel %vm1648, %v1628, %v1283
        %v1662 = vsel %vm1648, %v1629, %v1285
        %v1663 = vsel %vm1648, %v1630, %v1287
        %v1664 = vsel %vm1648, %v1631, %v1289
        %v1665 = vsel %vm1648, %v1632, %v1291
        %v1666 = vsel %vm1648, %v1633, %v1293
        %v1667 = vsel %vm1648, %v1634, %v1295
        %v1668 = vsel %vm1648, %v1635, %v1297
        %v1669 = vsel %vm1648, %v1636, %v1299
        %v1670 = vsel %vm1648, %v1637, %v1301
        %v1671 = vsel %vm1648, %v1638, %v1303
        %v1672 = vsel %vm1648, %v1639, %v1305
        %v1673 = vsel %vm1648, %v1640, %v1307
        %v1674 = vsel %vm1648, %v1641, %v1309
        %v1675 = vsel %vm1648, %v1642, %v1311
        %v1676 = vsel %vm1648, %v1643, %v1313
        %v1677 = vsel %vm1648, %v1644, %v1315
        %v1678 = vsel %vm1648, %v1645, %v1317
        %v1679 = vsel %vm1648, %v1646, %v1319
        %v1680 = vsel %vm1648, %v1647, %v1321
        %vm1681 = vcmask 261120
        %v1682 = vsel %vm1681, %v1649, %v1355
        %v1683 = vsel %vm1681, %v1650, %v1357
        %v1684 = vsel %vm1681, %v1651, %v1359
        %v1685 = vsel %vm1681, %v1652, %v1361
        %v1686 = vsel %vm1681, %v1653, %v1363
        %v1687 = vsel %vm1681, %v1654, %v1365
        %v1688 = vsel %vm1681, %v1655, %v1367
        %v1689 = vsel %vm1681, %v1656, %v1369
        %v1690 = vsel %vm1681, %v1657, %v1371
        %v1691 = vsel %vm1681, %v1658, %v1373
        %v1692 = vsel %vm1681, %v1659, %v1375
        %v1693 = vsel %vm1681, %v1660, %v1377
        %v1694 = vsel %vm1681, %v1661, %v1379
        %v1695 = vsel %vm1681, %v1662, %v1381
        %v1696 = vsel %vm1681, %v1663, %v1383
        %v1697 = vsel %vm1681, %v1664, %v1385
        %v1698 = vsel %vm1681, %v1665, %v1387
        %v1699 = vsel %vm1681, %v1666, %v1389
        %v1700 = vsel %vm1681, %v1667, %v1391
        %v1701 = vsel %vm1681, %v1668, %v1393
        %v1702 = vsel %vm1681, %v1669, %v1395
        %v1703 = vsel %vm1681, %v1670, %v1397
        %v1704 = vsel %vm1681, %v1671, %v1399
        %v1705 = vsel %vm1681, %v1672, %v1401
        %v1706 = vsel %vm1681, %v1673, %v1403
        %v1707 = vsel %vm1681, %v1674, %v1405
        %v1708 = vsel %vm1681, %v1675, %v1407
        %v1709 = vsel %vm1681, %v1676, %v1409
        %v1710 = vsel %vm1681, %v1677, %v1411
        %v1711 = vsel %vm1681, %v1678, %v1413
        %v1712 = vsel %vm1681, %v1679, %v1415
        %v1713 = vsel %vm1681, %v1680, %v1417
        %vm1714 = vcmask 293888
        %v1716 = vsel %vm1714, %v1682, 0
        %v1719 = vsel %vm1714, %v1683, 0
        %v1722 = vsel %vm1714, %v1684, 0
        %v1725 = vsel %vm1714, %v1685, 0
        %v1728 = vsel %vm1714, %v1686, 0
        %v1731 = vsel %vm1714, %v1687, 0
        %v1734 = vsel %vm1714, %v1688, 0
        %v1737 = vsel %vm1714, %v1689, 0
        %v1740 = vsel %vm1714, %v1690, 0
        %v1743 = vsel %vm1714, %v1691, 0
        %v1746 = vsel %vm1714, %v1692, 0
        %v1749 = vsel %vm1714, %v1693, 0
        %v1752 = vsel %vm1714, %v1694, 0
        %v1755 = vsel %vm1714, %v1695, 0
        %v1758 = vsel %vm1714, %v1696, 0
        %v1761 = vsel %vm1714, %v1697, 0
        %v1764 = vsel %vm1714, %v1698, 0
        %v1767 = vsel %vm1714, %v1699, 0
        %v1770 = vsel %vm1714, %v1700, 0
        %v1773 = vsel %vm1714, %v1701, 0
        %v1776 = vsel %vm1714, %v1702, 0
        %v1779 = vsel %vm1714, %v1703, 0
        %v1782 = vsel %vm1714, %v1704, 0
        %v1785 = vsel %vm1714, %v1705, 0
        %v1788 = vsel %vm1714, %v1706, 0
        %v1791 = vsel %vm1714, %v1707, 0
        %v1794 = vsel %vm1714, %v1708, 0
        %v1797 = vsel %vm1714, %v1709, 0
        %v1800 = vsel %vm1714, %v1710, 0
        %v1803 = vsel %vm1714, %v1711, 0
        %v1806 = vsel %vm1714, %v1712, 0
        %v1809 = vsel %vm1714, %v1713, 0
        %vm1811 = vcmask 1043456
        %v1813 = vsel %vm1811, %v475, 0
        %1815 = vmatpush.msra.mxu0 0.0
        %1816 = vmatpush.msra.mxu0 0.0
        %1817 = vmatpush.msra.mxu0 0.0
        %1818 = vmatpush.msra.mxu0 0.0
        %1819 = vmatpush.msra.mxu0 0.0
        %1820 = vmatpush.msra.mxu0 0.0
        %1821 = vmatpush.msra.mxu0 0.0
        %1822 = vmatpush.msra.mxu0 0.0
        %1823 = vmatpush.msra.mxu0 0.0
        %1824 = vmatpush.msra.mxu0 0.0
        %1825 = vmatpush.msra.mxu0 0.0
        %1826 = vmatpush.msra.mxu0 %v1813
        %1827 = vmatpush.msra.mxu0 %v474
        %1828 = vmatpush.msra.mxu0 %v473
        %1829 = vmatpush.msra.mxu0 %v472
        %1830 = vmatpush.msra.mxu0 %v471
        %1831 = vmatmul.f32.gmra.mxu0 %v1716
        %v1832 = vpop.f32.mrf.mxu0
        %v1833 = vadd.f32 0.0, %v1832
        %1834 = vmatmul.f32.gmra.mxu0 %v1719
        %v1835 = vpop.f32.mrf.mxu0
        %v1836 = vadd.f32 0.0, %v1835
        %1837 = vmatmul.f32.gmra.mxu0 %v1722
        %v1838 = vpop.f32.mrf.mxu0
        %v1839 = vadd.f32 0.0, %v1838
        %1840 = vmatmul.f32.gmra.mxu0 %v1725
        %v1841 = vpop.f32.mrf.mxu0
        %v1842 = vadd.f32 0.0, %v1841
        %1843 = vmatmul.f32.gmra.mxu0 %v1728
        %v1844 = vpop.f32.mrf.mxu0
        %v1845 = vadd.f32 0.0, %v1844
        %1846 = vmatmul.f32.gmra.mxu0 %v1731
        %v1847 = vpop.f32.mrf.mxu0
        %v1848 = vadd.f32 0.0, %v1847
        %1849 = vmatmul.f32.gmra.mxu0 %v1734
        %v1850 = vpop.f32.mrf.mxu0
        %v1851 = vadd.f32 0.0, %v1850
        %1852 = vmatmul.f32.gmra.mxu0 %v1737
        %v1853 = vpop.f32.mrf.mxu0
        %v1854 = vadd.f32 0.0, %v1853
        %1855 = vmatmul.f32.gmra.mxu0 %v1740
        %v1856 = vpop.f32.mrf.mxu0
        %v1857 = vadd.f32 0.0, %v1856
        %1858 = vmatmul.f32.gmra.mxu0 %v1743
        %v1859 = vpop.f32.mrf.mxu0
        %v1860 = vadd.f32 0.0, %v1859
        %1861 = vmatmul.f32.gmra.mxu0 %v1746
        %v1862 = vpop.f32.mrf.mxu0
        %v1863 = vadd.f32 0.0, %v1862
        %1864 = vmatmul.f32.gmra.mxu0 %v1749
        %v1865 = vpop.f32.mrf.mxu0
        %v1866 = vadd.f32 0.0, %v1865
        %1867 = vmatmul.f32.gmra.mxu0 %v1752
        %v1868 = vpop.f32.mrf.mxu0
        %v1869 = vadd.f32 0.0, %v1868
        %1870 = vmatmul.f32.gmra.mxu0 %v1755
        %v1871 = vpop.f32.mrf.mxu0
        %v1872 = vadd.f32 0.0, %v1871
        %1873 = vmatmul.f32.gmra.mxu0 %v1758
        %v1874 = vpop.f32.mrf.mxu0
        %v1875 = vadd.f32 0.0, %v1874
        %1876 = vmatmul.f32.gmra.mxu0 %v1761
        %v1877 = vpop.f32.mrf.mxu0
        %v1878 = vadd.f32 0.0, %v1877
        %1879 = vmatmul.f32.gmra.mxu0 %v1764
        %v1880 = vpop.f32.mrf.mxu0
        %v1881 = vadd.f32 0.0, %v1880
        %1882 = vmatmul.f32.gmra.mxu0 %v1767
        %v1883 = vpop.f32.mrf.mxu0
        %v1884 = vadd.f32 0.0, %v1883
        %1885 = vmatmul.f32.gmra.mxu0 %v1770
        %v1886 = vpop.f32.mrf.mxu0
        %v1887 = vadd.f32 0.0, %v1886
        %1888 = vmatmul.f32.gmra.mxu0 %v1773
        %v1889 = vpop.f32.mrf.mxu0
        %v1890 = vadd.f32 0.0, %v1889
        %1891 = vmatmul.f32.gmra.mxu0 %v1776
        %v1892 = vpop.f32.mrf.mxu0
        %v1893 = vadd.f32 0.0, %v1892
        %1894 = vmatmul.f32.gmra.mxu0 %v1779
        %v1895 = vpop.f32.mrf.mxu0
        %v1896 = vadd.f32 0.0, %v1895
        %1897 = vmatmul.f32.gmra.mxu0 %v1782
        %v1898 = vpop.f32.mrf.mxu0
        %v1899 = vadd.f32 0.0, %v1898
        %1900 = vmatmul.f32.gmra.mxu0 %v1785
        %v1901 = vpop.f32.mrf.mxu0
        %v1902 = vadd.f32 0.0, %v1901
        %1903 = vmatmul.f32.gmra.mxu0 %v1788
        %v1904 = vpop.f32.mrf.mxu0
        %v1905 = vadd.f32 0.0, %v1904
        %1906 = vmatmul.f32.gmra.mxu0 %v1791
        %v1907 = vpop.f32.mrf.mxu0
        %v1908 = vadd.f32 0.0, %v1907
        %1909 = vmatmul.f32.gmra.mxu0 %v1794
        %v1910 = vpop.f32.mrf.mxu0
        %v1911 = vadd.f32 0.0, %v1910
        %1912 = vmatmul.f32.gmra.mxu0 %v1797
        %v1913 = vpop.f32.mrf.mxu0
        %v1914 = vadd.f32 0.0, %v1913
        %1915 = vmatmul.f32.gmra.mxu0 %v1800
        %v1916 = vpop.f32.mrf.mxu0
        %v1917 = vadd.f32 0.0, %v1916
        %1918 = vmatmul.f32.gmra.mxu0 %v1803
        %v1919 = vpop.f32.mrf.mxu0
        %v1920 = vadd.f32 0.0, %v1919
        %1921 = vmatmul.f32.gmra.mxu0 %v1806
        %v1922 = vpop.f32.mrf.mxu0
        %v1923 = vadd.f32 0.0, %v1922
        %1924 = vmatmul.f32.gmra.mxu0 %v1809
        %v1925 = vpop.f32.mrf.mxu0
        %v1926 = vadd.f32 0.0, %v1925
        %1927 = vdwg.mxu0
        %v1928 = vld [vmem:[%s3] sm:$0xff]
        %v1929 = vld [vmem:[%s3 + $0x8] sm:$0xff]
        %v1930 = vld [vmem:[%s3 + $0x10] sm:$0xff]
        %v1931 = vld [vmem:[%s3 + $0x18] sm:$0xff]
        %v1932 = vld [vmem:[%s3 + $0x20] sm:$0xf]
        %v1934 = vsel %vm1811, %v1932, 0
        %1936 = vmatpush.msra.mxu0 0.0
        %1937 = vmatpush.msra.mxu0 0.0
        %1938 = vmatpush.msra.mxu0 0.0
        %1939 = vmatpush.msra.mxu0 0.0
        %1940 = vmatpush.msra.mxu0 0.0
        %1941 = vmatpush.msra.mxu0 0.0
        %1942 = vmatpush.msra.mxu0 0.0
        %1943 = vmatpush.msra.mxu0 0.0
        %1944 = vmatpush.msra.mxu0 0.0
        %1945 = vmatpush.msra.mxu0 0.0
        %1946 = vmatpush.msra.mxu0 0.0
        %1947 = vmatpush.msra.mxu0 %v1934
        %1948 = vmatpush.msra.mxu0 %v1931
        %1949 = vmatpush.msra.mxu0 %v1930
        %1950 = vmatpush.msra.mxu0 %v1929
        %1951 = vmatpush.msra.mxu0 %v1928
        %1952 = vmatmul.f32.gmra.mxu0 %v1716
        %v1953 = vpop.f32.mrf.mxu0
        %v1954 = vadd.f32 0.0, %v1953
        %1955 = vmatmul.f32.gmra.mxu0 %v1719
        %v1956 = vpop.f32.mrf.mxu0
        %v1957 = vadd.f32 0.0, %v1956
        %1958 = vmatmul.f32.gmra.mxu0 %v1722
        %v1959 = vpop.f32.mrf.mxu0
        %v1960 = vadd.f32 0.0, %v1959
        %1961 = vmatmul.f32.gmra.mxu0 %v1725
        %v1962 = vpop.f32.mrf.mxu0
        %v1963 = vadd.f32 0.0, %v1962
        %1964 = vmatmul.f32.gmra.mxu0 %v1728
        %v1965 = vpop.f32.mrf.mxu0
        %v1966 = vadd.f32 0.0, %v1965
        %1967 = vmatmul.f32.gmra.mxu0 %v1731
        %v1968 = vpop.f32.mrf.mxu0
        %v1969 = vadd.f32 0.0, %v1968
        %1970 = vmatmul.f32.gmra.mxu0 %v1734
        %v1971 = vpop.f32.mrf.mxu0
        %v1972 = vadd.f32 0.0, %v1971
        %1973 = vmatmul.f32.gmra.mxu0 %v1737
        %v1974 = vpop.f32.mrf.mxu0
        %v1975 = vadd.f32 0.0, %v1974
        %1976 = vmatmul.f32.gmra.mxu0 %v1740
        %v1977 = vpop.f32.mrf.mxu0
        %v1978 = vadd.f32 0.0, %v1977
        %1979 = vmatmul.f32.gmra.mxu0 %v1743
        %v1980 = vpop.f32.mrf.mxu0
        %v1981 = vadd.f32 0.0, %v1980
        %1982 = vmatmul.f32.gmra.mxu0 %v1746
        %v1983 = vpop.f32.mrf.mxu0
        %v1984 = vadd.f32 0.0, %v1983
        %1985 = vmatmul.f32.gmra.mxu0 %v1749
        %v1986 = vpop.f32.mrf.mxu0
        %v1987 = vadd.f32 0.0, %v1986
        %1988 = vmatmul.f32.gmra.mxu0 %v1752
        %v1989 = vpop.f32.mrf.mxu0
        %v1990 = vadd.f32 0.0, %v1989
        %1991 = vmatmul.f32.gmra.mxu0 %v1755
        %v1992 = vpop.f32.mrf.mxu0
        %v1993 = vadd.f32 0.0, %v1992
        %1994 = vmatmul.f32.gmra.mxu0 %v1758
        %v1995 = vpop.f32.mrf.mxu0
        %v1996 = vadd.f32 0.0, %v1995
        %1997 = vmatmul.f32.gmra.mxu0 %v1761
        %v1998 = vpop.f32.mrf.mxu0
        %v1999 = vadd.f32 0.0, %v1998
        %2000 = vmatmul.f32.gmra.mxu0 %v1764
        %v2001 = vpop.f32.mrf.mxu0
        %v2002 = vadd.f32 0.0, %v2001
        %2003 = vmatmul.f32.gmra.mxu0 %v1767
        %v2004 = vpop.f32.mrf.mxu0
        %v2005 = vadd.f32 0.0, %v2004
        %2006 = vmatmul.f32.gmra.mxu0 %v1770
        %v2007 = vpop.f32.mrf.mxu0
        %v2008 = vadd.f32 0.0, %v2007
        %2009 = vmatmul.f32.gmra.mxu0 %v1773
        %v2010 = vpop.f32.mrf.mxu0
        %v2011 = vadd.f32 0.0, %v2010
        %2012 = vmatmul.f32.gmra.mxu0 %v1776
        %v2013 = vpop.f32.mrf.mxu0
        %v2014 = vadd.f32 0.0, %v2013
        %2015 = vmatmul.f32.gmra.mxu0 %v1779
        %v2016 = vpop.f32.mrf.mxu0
        %v2017 = vadd.f32 0.0, %v2016
        %2018 = vmatmul.f32.gmra.mxu0 %v1782
        %v2019 = vpop.f32.mrf.mxu0
        %v2020 = vadd.f32 0.0, %v2019
        %2021 = vmatmul.f32.gmra.mxu0 %v1785
        %v2022 = vpop.f32.mrf.mxu0
        %v2023 = vadd.f32 0.0, %v2022
        %2024 = vmatmul.f32.gmra.mxu0 %v1788
        %v2025 = vpop.f32.mrf.mxu0
        %v2026 = vadd.f32 0.0, %v2025
        %2027 = vmatmul.f32.gmra.mxu0 %v1791
        %v2028 = vpop.f32.mrf.mxu0
        %v2029 = vadd.f32 0.0, %v2028
        %2030 = vmatmul.f32.gmra.mxu0 %v1794
        %v2031 = vpop.f32.mrf.mxu0
        %v2032 = vadd.f32 0.0, %v2031
        %2033 = vmatmul.f32.gmra.mxu0 %v1797
        %v2034 = vpop.f32.mrf.mxu0
        %v2035 = vadd.f32 0.0, %v2034
        %2036 = vmatmul.f32.gmra.mxu0 %v1800
        %v2037 = vpop.f32.mrf.mxu0
        %v2038 = vadd.f32 0.0, %v2037
        %2039 = vmatmul.f32.gmra.mxu0 %v1803
        %v2040 = vpop.f32.mrf.mxu0
        %v2041 = vadd.f32 0.0, %v2040
        %2042 = vmatmul.f32.gmra.mxu0 %v1806
        %v2043 = vpop.f32.mrf.mxu0
        %v2044 = vadd.f32 0.0, %v2043
        %2045 = vmatmul.f32.gmra.mxu0 %v1809
        %v2046 = vpop.f32.mrf.mxu0
        %v2047 = vadd.f32 0.0, %v2046
        %2048 = vdwg.mxu0
        %s2049 = smul.u32 %s21, 256
        %s2050 = scalar_lea.vmem [#allocation2], %s2049
        %2051 = vst.msk [vmem:[%s2050] sm:$0xff] %vm1483, %v1833
        %2052 = vst.msk [vmem:[%s2050 + $0x8] sm:$0xff] %vm1483, %v1836
        %2053 = vst.msk [vmem:[%s2050 + $0x10] sm:$0xff] %vm1483, %v1839
        %2054 = vst.msk [vmem:[%s2050 + $0x18] sm:$0xff] %vm1483, %v1842
        %2055 = vst.msk [vmem:[%s2050 + $0x20] sm:$0xff] %vm1483, %v1845
        %2056 = vst.msk [vmem:[%s2050 + $0x28] sm:$0xff] %vm1483, %v1848
        %2057 = vst.msk [vmem:[%s2050 + $0x30] sm:$0xff] %vm1483, %v1851
        %2058 = vst.msk [vmem:[%s2050 + $0x38] sm:$0xff] %vm1483, %v1854
        %2059 = vst.msk [vmem:[%s2050 + $0x40] sm:$0xff] %vm1483, %v1857
        %2060 = vst.msk [vmem:[%s2050 + $0x48] sm:$0xff] %vm1483, %v1860
        %2061 = vst.msk [vmem:[%s2050 + $0x50] sm:$0xff] %vm1483, %v1863
        %2062 = vst.msk [vmem:[%s2050 + $0x58] sm:$0xff] %vm1483, %v1866
        %2063 = vst.msk [vmem:[%s2050 + $0x60] sm:$0xff] %vm1483, %v1869
        %2064 = vst.msk [vmem:[%s2050 + $0x68] sm:$0xff] %vm1483, %v1872
        %2065 = vst.msk [vmem:[%s2050 + $0x70] sm:$0xff] %vm1483, %v1875
        %2066 = vst.msk [vmem:[%s2050 + $0x78] sm:$0xff] %vm1483, %v1878
        %2067 = vst.msk [vmem:[%s2050 + $0x80] sm:$0xff] %vm1483, %v1881
        %2068 = vst.msk [vmem:[%s2050 + $0x88] sm:$0xff] %vm1483, %v1884
        %2069 = vst.msk [vmem:[%s2050 + $0x90] sm:$0xff] %vm1483, %v1887
        %2070 = vst.msk [vmem:[%s2050 + $0x98] sm:$0xff] %vm1483, %v1890
        %2071 = vst.msk [vmem:[%s2050 + $0xa0] sm:$0xff] %vm1483, %v1893
        %2072 = vst.msk [vmem:[%s2050 + $0xa8] sm:$0xff] %vm1483, %v1896
        %2073 = vst.msk [vmem:[%s2050 + $0xb0] sm:$0xff] %vm1483, %v1899
        %2074 = vst.msk [vmem:[%s2050 + $0xb8] sm:$0xff] %vm1483, %v1902
        %2075 = vst.msk [vmem:[%s2050 + $0xc0] sm:$0xff] %vm1483, %v1905
        %2076 = vst.msk [vmem:[%s2050 + $0xc8] sm:$0xff] %vm1483, %v1908
        %2077 = vst.msk [vmem:[%s2050 + $0xd0] sm:$0xff] %vm1483, %v1911
        %2078 = vst.msk [vmem:[%s2050 + $0xd8] sm:$0xff] %vm1483, %v1914
        %2079 = vst.msk [vmem:[%s2050 + $0xe0] sm:$0xff] %vm1483, %v1917
        %2080 = vst.msk [vmem:[%s2050 + $0xe8] sm:$0xff] %vm1483, %v1920
        %2081 = vst.msk [vmem:[%s2050 + $0xf0] sm:$0xff] %vm1483, %v1923
        %2082 = vst.msk [vmem:[%s2050 + $0xf8] sm:$0xff] %vm1483, %v1926
        %s2083 = scalar_lea.vmem [#allocation3], %s2049
        %2084 = vst.msk [vmem:[%s2083] sm:$0xff] %vm1483, %v1954
        %2085 = vst.msk [vmem:[%s2083 + $0x8] sm:$0xff] %vm1483, %v1957
        %2086 = vst.msk [vmem:[%s2083 + $0x10] sm:$0xff] %vm1483, %v1960
        %2087 = vst.msk [vmem:[%s2083 + $0x18] sm:$0xff] %vm1483, %v1963
        %2088 = vst.msk [vmem:[%s2083 + $0x20] sm:$0xff] %vm1483, %v1966
        %2089 = vst.msk [vmem:[%s2083 + $0x28] sm:$0xff] %vm1483, %v1969
        %2090 = vst.msk [vmem:[%s2083 + $0x30] sm:$0xff] %vm1483, %v1972
        %2091 = vst.msk [vmem:[%s2083 + $0x38] sm:$0xff] %vm1483, %v1975
        %2092 = vst.msk [vmem:[%s2083 + $0x40] sm:$0xff] %vm1483, %v1978
        %2093 = vst.msk [vmem:[%s2083 + $0x48] sm:$0xff] %vm1483, %v1981
        %2094 = vst.msk [vmem:[%s2083 + $0x50] sm:$0xff] %vm1483, %v1984
        %2095 = vst.msk [vmem:[%s2083 + $0x58] sm:$0xff] %vm1483, %v1987
        %2096 = vst.msk [vmem:[%s2083 + $0x60] sm:$0xff] %vm1483, %v1990
        %2097 = vst.msk [vmem:[%s2083 + $0x68] sm:$0xff] %vm1483, %v1993
        %2098 = vst.msk [vmem:[%s2083 + $0x70] sm:$0xff] %vm1483, %v1996
        %2099 = vst.msk [vmem:[%s2083 + $0x78] sm:$0xff] %vm1483, %v1999
        %2100 = vst.msk [vmem:[%s2083 + $0x80] sm:$0xff] %vm1483, %v2002
        %2101 = vst.msk [vmem:[%s2083 + $0x88] sm:$0xff] %vm1483, %v2005
        %2102 = vst.msk [vmem:[%s2083 + $0x90] sm:$0xff] %vm1483, %v2008
        %2103 = vst.msk [vmem:[%s2083 + $0x98] sm:$0xff] %vm1483, %v2011
        %2104 = vst.msk [vmem:[%s2083 + $0xa0] sm:$0xff] %vm1483, %v2014
        %2105 = vst.msk [vmem:[%s2083 + $0xa8] sm:$0xff] %vm1483, %v2017
        %2106 = vst.msk [vmem:[%s2083 + $0xb0] sm:$0xff] %vm1483, %v2020
        %2107 = vst.msk [vmem:[%s2083 + $0xb8] sm:$0xff] %vm1483, %v2023
        %2108 = vst.msk [vmem:[%s2083 + $0xc0] sm:$0xff] %vm1483, %v2026
        %2109 = vst.msk [vmem:[%s2083 + $0xc8] sm:$0xff] %vm1483, %v2029
        %2110 = vst.msk [vmem:[%s2083 + $0xd0] sm:$0xff] %vm1483, %v2032
        %2111 = vst.msk [vmem:[%s2083 + $0xd8] sm:$0xff] %vm1483, %v2035
        %2112 = vst.msk [vmem:[%s2083 + $0xe0] sm:$0xff] %vm1483, %v2038
        %2113 = vst.msk [vmem:[%s2083 + $0xe8] sm:$0xff] %vm1483, %v2041
        %2114 = vst.msk [vmem:[%s2083 + $0xf0] sm:$0xff] %vm1483, %v2044
        %2115 = vst.msk [vmem:[%s2083 + $0xf8] sm:$0xff] %vm1483, %v2047
        %v2116 = vld [vmem:[#allocation5] sm:$0x1]
        %v2117 = vsel %vm1483, %v1833, 0.0
        %v2118 = vsel %vm1483, %v1836, 0.0
        %v2119 = vadd.f32 %v2117, %v2118
        %v2120 = vsel %vm1483, %v1839, 0.0
        %v2121 = vadd.f32 %v2119, %v2120
        %v2122 = vsel %vm1483, %v1842, 0.0
        %v2123 = vadd.f32 %v2121, %v2122
        %v2124 = vsel %vm1483, %v1845, 0.0
        %v2125 = vadd.f32 %v2123, %v2124
        %v2126 = vsel %vm1483, %v1848, 0.0
        %v2127 = vadd.f32 %v2125, %v2126
        %v2128 = vsel %vm1483, %v1851, 0.0
        %v2129 = vadd.f32 %v2127, %v2128
        %v2130 = vsel %vm1483, %v1854, 0.0
        %v2131 = vadd.f32 %v2129, %v2130
        %v2132 = vsel %vm1483, %v1857, 0.0
        %v2133 = vadd.f32 %v2131, %v2132
        %v2134 = vsel %vm1483, %v1860, 0.0
        %v2135 = vadd.f32 %v2133, %v2134
        %v2136 = vsel %vm1483, %v1863, 0.0
        %v2137 = vadd.f32 %v2135, %v2136
        %v2138 = vsel %vm1483, %v1866, 0.0
        %v2139 = vadd.f32 %v2137, %v2138
        %v2140 = vsel %vm1483, %v1869, 0.0
        %v2141 = vadd.f32 %v2139, %v2140
        %v2142 = vsel %vm1483, %v1872, 0.0
        %v2143 = vadd.f32 %v2141, %v2142
        %v2144 = vsel %vm1483, %v1875, 0.0
        %v2145 = vadd.f32 %v2143, %v2144
        %v2146 = vsel %vm1483, %v1878, 0.0
        %v2147 = vadd.f32 %v2145, %v2146
        %v2148 = vsel %vm1483, %v1881, 0.0
        %v2149 = vadd.f32 %v2147, %v2148
        %v2150 = vsel %vm1483, %v1884, 0.0
        %v2151 = vadd.f32 %v2149, %v2150
        %v2152 = vsel %vm1483, %v1887, 0.0
        %v2153 = vadd.f32 %v2151, %v2152
        %v2154 = vsel %vm1483, %v1890, 0.0
        %v2155 = vadd.f32 %v2153, %v2154
        %v2156 = vsel %vm1483, %v1893, 0.0
        %v2157 = vadd.f32 %v2155, %v2156
        %v2158 = vsel %vm1483, %v1896, 0.0
        %v2159 = vadd.f32 %v2157, %v2158
        %v2160 = vsel %vm1483, %v1899, 0.0
        %v2161 = vadd.f32 %v2159, %v2160
        %v2162 = vsel %vm1483, %v1902, 0.0
        %v2163 = vadd.f32 %v2161, %v2162
        %v2164 = vsel %vm1483, %v1905, 0.0
        %v2165 = vadd.f32 %v2163, %v2164
        %v2166 = vsel %vm1483, %v1908, 0.0
        %v2167 = vadd.f32 %v2165, %v2166
        %v2168 = vsel %vm1483, %v1911, 0.0
        %v2169 = vadd.f32 %v2167, %v2168
        %v2170 = vsel %vm1483, %v1914, 0.0
        %v2171 = vadd.f32 %v2169, %v2170
        %v2172 = vsel %vm1483, %v1917, 0.0
        %v2173 = vadd.f32 %v2171, %v2172
        %v2174 = vsel %vm1483, %v1920, 0.0
        %v2175 = vadd.f32 %v2173, %v2174
        %v2176 = vsel %vm1483, %v1923, 0.0
        %v2177 = vadd.f32 %v2175, %v2176
        %v2178 = vsel %vm1483, %v1926, 0.0
        %v2179 = vadd.f32 %v2177, %v2178
        %v2180 = vrot.slane %v2179, 4
        %v2181 = vadd.f32 %v2179, %v2180
        %v2182 = vrot.slane %v2181, 2
        %v2183 = vadd.f32 %v2181, %v2182
        %v2184 = vrot.slane %v2183, 1
        %v2185 = vadd.f32 %v2183, %v2184
        %v2186 = vadd.f32 %v2116, %v2185
        %vm2187 = vcmask 57344
        %2188 = vst.msk [vmem:[#allocation5] sm:$0x1] %vm2187, %v2186
        %v2189 = vld [vmem:[#allocation5 + $0x1] sm:$0x1]
        %v2190 = vmul.f32 %v1833, %v1833
        %v2191 = vmul.f32 %v1836, %v1836
        %v2192 = vmul.f32 %v1839, %v1839
        %v2193 = vmul.f32 %v1842, %v1842
        %v2194 = vmul.f32 %v1845, %v1845
        %v2195 = vmul.f32 %v1848, %v1848
        %v2196 = vmul.f32 %v1851, %v1851
        %v2197 = vmul.f32 %v1854, %v1854
        %v2198 = vmul.f32 %v1857, %v1857
        %v2199 = vmul.f32 %v1860, %v1860
        %v2200 = vmul.f32 %v1863, %v1863
        %v2201 = vmul.f32 %v1866, %v1866
        %v2202 = vmul.f32 %v1869, %v1869
        %v2203 = vmul.f32 %v1872, %v1872
        %v2204 = vmul.f32 %v1875, %v1875
        %v2205 = vmul.f32 %v1878, %v1878
        %v2206 = vmul.f32 %v1881, %v1881
        %v2207 = vmul.f32 %v1884, %v1884
        %v2208 = vmul.f32 %v1887, %v1887
        %v2209 = vmul.f32 %v1890, %v1890
        %v2210 = vmul.f32 %v1893, %v1893
        %v2211 = vmul.f32 %v1896, %v1896
        %v2212 = vmul.f32 %v1899, %v1899
        %v2213 = vmul.f32 %v1902, %v1902
        %v2214 = vmul.f32 %v1905, %v1905
        %v2215 = vmul.f32 %v1908, %v1908
        %v2216 = vmul.f32 %v1911, %v1911
        %v2217 = vmul.f32 %v1914, %v1914
        %v2218 = vmul.f32 %v1917, %v1917
        %v2219 = vmul.f32 %v1920, %v1920
        %v2220 = vmul.f32 %v1923, %v1923
        %v2221 = vmul.f32 %v1926, %v1926
        %v2222 = vsel %vm1483, %v2190, 0.0
        %v2223 = vsel %vm1483, %v2191, 0.0
        %v2224 = vadd.f32 %v2222, %v2223
        %v2225 = vsel %vm1483, %v2192, 0.0
        %v2226 = vadd.f32 %v2224, %v2225
        %v2227 = vsel %vm1483, %v2193, 0.0
        %v2228 = vadd.f32 %v2226, %v2227
        %v2229 = vsel %vm1483, %v2194, 0.0
        %v2230 = vadd.f32 %v2228, %v2229
        %v2231 = vsel %vm1483, %v2195, 0.0
        %v2232 = vadd.f32 %v2230, %v2231
        %v2233 = vsel %vm1483, %v2196, 0.0
        %v2234 = vadd.f32 %v2232, %v2233
        %v2235 = vsel %vm1483, %v2197, 0.0
        %v2236 = vadd.f32 %v2234, %v2235
        %v2237 = vsel %vm1483, %v2198, 0.0
        %v2238 = vadd.f32 %v2236, %v2237
        %v2239 = vsel %vm1483, %v2199, 0.0
        %v2240 = vadd.f32 %v2238, %v2239
        %v2241 = vsel %vm1483, %v2200, 0.0
        %v2242 = vadd.f32 %v2240, %v2241
        %v2243 = vsel %vm1483, %v2201, 0.0
        %v2244 = vadd.f32 %v2242, %v2243
        %v2245 = vsel %vm1483, %v2202, 0.0
        %v2246 = vadd.f32 %v2244, %v2245
        %v2247 = vsel %vm1483, %v2203, 0.0
        %v2248 = vadd.f32 %v2246, %v2247
        %v2249 = vsel %vm1483, %v2204, 0.0
        %v2250 = vadd.f32 %v2248, %v2249
        %v2251 = vsel %vm1483, %v2205, 0.0
        %v2252 = vadd.f32 %v2250, %v2251
        %v2253 = vsel %vm1483, %v2206, 0.0
        %v2254 = vadd.f32 %v2252, %v2253
        %v2255 = vsel %vm1483, %v2207, 0.0
        %v2256 = vadd.f32 %v2254, %v2255
        %v2257 = vsel %vm1483, %v2208, 0.0
        %v2258 = vadd.f32 %v2256, %v2257
        %v2259 = vsel %vm1483, %v2209, 0.0
        %v2260 = vadd.f32 %v2258, %v2259
        %v2261 = vsel %vm1483, %v2210, 0.0
        %v2262 = vadd.f32 %v2260, %v2261
        %v2263 = vsel %vm1483, %v2211, 0.0
        %v2264 = vadd.f32 %v2262, %v2263
        %v2265 = vsel %vm1483, %v2212, 0.0
        %v2266 = vadd.f32 %v2264, %v2265
        %v2267 = vsel %vm1483, %v2213, 0.0
        %v2268 = vadd.f32 %v2266, %v2267
        %v2269 = vsel %vm1483, %v2214, 0.0
        %v2270 = vadd.f32 %v2268, %v2269
        %v2271 = vsel %vm1483, %v2215, 0.0
        %v2272 = vadd.f32 %v2270, %v2271
        %v2273 = vsel %vm1483, %v2216, 0.0
        %v2274 = vadd.f32 %v2272, %v2273
        %v2275 = vsel %vm1483, %v2217, 0.0
        %v2276 = vadd.f32 %v2274, %v2275
        %v2277 = vsel %vm1483, %v2218, 0.0
        %v2278 = vadd.f32 %v2276, %v2277
        %v2279 = vsel %vm1483, %v2219, 0.0
        %v2280 = vadd.f32 %v2278, %v2279
        %v2281 = vsel %vm1483, %v2220, 0.0
        %v2282 = vadd.f32 %v2280, %v2281
        %v2283 = vsel %vm1483, %v2221, 0.0
        %v2284 = vadd.f32 %v2282, %v2283
        %v2285 = vrot.slane %v2284, 4
        %v2286 = vadd.f32 %v2284, %v2285
        %v2287 = vrot.slane %v2286, 2
        %v2288 = vadd.f32 %v2286, %v2287
        %v2289 = vrot.slane %v2288, 1
        %v2290 = vadd.f32 %v2288, %v2289
        %v2291 = vadd.f32 %v2189, %v2290
        %2292 = vst.msk [vmem:[#allocation5 + $0x1] sm:$0x1] %vm2187, %v2291
        %v2293 = vld [vmem:[#allocation5 + $0x2] sm:$0x1]
        %v2294 = vsel %vm1483, %v1954, 0.0
        %v2295 = vsel %vm1483, %v1957, 0.0
        %v2296 = vadd.f32 %v2294, %v2295
        %v2297 = vsel %vm1483, %v1960, 0.0
        %v2298 = vadd.f32 %v2296, %v2297
        %v2299 = vsel %vm1483, %v1963, 0.0
        %v2300 = vadd.f32 %v2298, %v2299
        %v2301 = vsel %vm1483, %v1966, 0.0
        %v2302 = vadd.f32 %v2300, %v2301
        %v2303 = vsel %vm1483, %v1969, 0.0
        %v2304 = vadd.f32 %v2302, %v2303
        %v2305 = vsel %vm1483, %v1972, 0.0
        %v2306 = vadd.f32 %v2304, %v2305
        %v2307 = vsel %vm1483, %v1975, 0.0
        %v2308 = vadd.f32 %v2306, %v2307
        %v2309 = vsel %vm1483, %v1978, 0.0
        %v2310 = vadd.f32 %v2308, %v2309
        %v2311 = vsel %vm1483, %v1981, 0.0
        %v2312 = vadd.f32 %v2310, %v2311
        %v2313 = vsel %vm1483, %v1984, 0.0
        %v2314 = vadd.f32 %v2312, %v2313
        %v2315 = vsel %vm1483, %v1987, 0.0
        %v2316 = vadd.f32 %v2314, %v2315
        %v2317 = vsel %vm1483, %v1990, 0.0
        %v2318 = vadd.f32 %v2316, %v2317
        %v2319 = vsel %vm1483, %v1993, 0.0
        %v2320 = vadd.f32 %v2318, %v2319
        %v2321 = vsel %vm1483, %v1996, 0.0
        %v2322 = vadd.f32 %v2320, %v2321
        %v2323 = vsel %vm1483, %v1999, 0.0
        %v2324 = vadd.f32 %v2322, %v2323
        %v2325 = vsel %vm1483, %v2002, 0.0
        %v2326 = vadd.f32 %v2324, %v2325
        %v2327 = vsel %vm1483, %v2005, 0.0
        %v2328 = vadd.f32 %v2326, %v2327
        %v2329 = vsel %vm1483, %v2008, 0.0
        %v2330 = vadd.f32 %v2328, %v2329
        %v2331 = vsel %vm1483, %v2011, 0.0
        %v2332 = vadd.f32 %v2330, %v2331
        %v2333 = vsel %vm1483, %v2014, 0.0
        %v2334 = vadd.f32 %v2332, %v2333
        %v2335 = vsel %vm1483, %v2017, 0.0
        %v2336 = vadd.f32 %v2334, %v2335
        %v2337 = vsel %vm1483, %v2020, 0.0
        %v2338 = vadd.f32 %v2336, %v2337
        %v2339 = vsel %vm1483, %v2023, 0.0
        %v2340 = vadd.f32 %v2338, %v2339
        %v2341 = vsel %vm1483, %v2026, 0.0
        %v2342 = vadd.f32 %v2340, %v2341
        %v2343 = vsel %vm1483, %v2029, 0.0
        %v2344 = vadd.f32 %v2342, %v2343
        %v2345 = vsel %vm1483, %v2032, 0.0
        %v2346 = vadd.f32 %v2344, %v2345
        %v2347 = vsel %vm1483, %v2035, 0.0
        %v2348 = vadd.f32 %v2346, %v2347
        %v2349 = vsel %vm1483, %v2038, 0.0
        %v2350 = vadd.f32 %v2348, %v2349
        %v2351 = vsel %vm1483, %v2041, 0.0
        %v2352 = vadd.f32 %v2350, %v2351
        %v2353 = vsel %vm1483, %v2044, 0.0
        %v2354 = vadd.f32 %v2352, %v2353
        %v2355 = vsel %vm1483, %v2047, 0.0
        %v2356 = vadd.f32 %v2354, %v2355
        %v2357 = vrot.slane %v2356, 4
        %v2358 = vadd.f32 %v2356, %v2357
        %v2359 = vrot.slane %v2358, 2
        %v2360 = vadd.f32 %v2358, %v2359
        %v2361 = vrot.slane %v2360, 1
        %v2362 = vadd.f32 %v2360, %v2361
        %v2363 = vadd.f32 %v2293, %v2362
        %2364 = vst.msk [vmem:[#allocation5 + $0x2] sm:$0x1] %vm2187, %v2363
        %v2365 = vld [vmem:[#allocation5 + $0x3] sm:$0x1]
        %v2366 = vmul.f32 %v1954, %v1954
        %v2367 = vmul.f32 %v1957, %v1957
        %v2368 = vmul.f32 %v1960, %v1960
        %v2369 = vmul.f32 %v1963, %v1963
        %v2370 = vmul.f32 %v1966, %v1966
        %v2371 = vmul.f32 %v1969, %v1969
        %v2372 = vmul.f32 %v1972, %v1972
        %v2373 = vmul.f32 %v1975, %v1975
        %v2374 = vmul.f32 %v1978, %v1978
        %v2375 = vmul.f32 %v1981, %v1981
        %v2376 = vmul.f32 %v1984, %v1984
        %v2377 = vmul.f32 %v1987, %v1987
        %v2378 = vmul.f32 %v1990, %v1990
        %v2379 = vmul.f32 %v1993, %v1993
        %v2380 = vmul.f32 %v1996, %v1996
        %v2381 = vmul.f32 %v1999, %v1999
        %v2382 = vmul.f32 %v2002, %v2002
        %v2383 = vmul.f32 %v2005, %v2005
        %v2384 = vmul.f32 %v2008, %v2008
        %v2385 = vmul.f32 %v2011, %v2011
        %v2386 = vmul.f32 %v2014, %v2014
        %v2387 = vmul.f32 %v2017, %v2017
        %v2388 = vmul.f32 %v2020, %v2020
        %v2389 = vmul.f32 %v2023, %v2023
        %v2390 = vmul.f32 %v2026, %v2026
        %v2391 = vmul.f32 %v2029, %v2029
        %v2392 = vmul.f32 %v2032, %v2032
        %v2393 = vmul.f32 %v2035, %v2035
        %v2394 = vmul.f32 %v2038, %v2038
        %v2395 = vmul.f32 %v2041, %v2041
        %v2396 = vmul.f32 %v2044, %v2044
        %v2397 = vmul.f32 %v2047, %v2047
        %v2398 = vsel %vm1483, %v2366, 0.0
        %v2399 = vsel %vm1483, %v2367, 0.0
        %v2400 = vadd.f32 %v2398, %v2399
        %v2401 = vsel %vm1483, %v2368, 0.0
        %v2402 = vadd.f32 %v2400, %v2401
        %v2403 = vsel %vm1483, %v2369, 0.0
        %v2404 = vadd.f32 %v2402, %v2403
        %v2405 = vsel %vm1483, %v2370, 0.0
        %v2406 = vadd.f32 %v2404, %v2405
        %v2407 = vsel %vm1483, %v2371, 0.0
        %v2408 = vadd.f32 %v2406, %v2407
        %v2409 = vsel %vm1483, %v2372, 0.0
        %v2410 = vadd.f32 %v2408, %v2409
        %v2411 = vsel %vm1483, %v2373, 0.0
        %v2412 = vadd.f32 %v2410, %v2411
        %v2413 = vsel %vm1483, %v2374, 0.0
        %v2414 = vadd.f32 %v2412, %v2413
        %v2415 = vsel %vm1483, %v2375, 0.0
        %v2416 = vadd.f32 %v2414, %v2415
        %v2417 = vsel %vm1483, %v2376, 0.0
        %v2418 = vadd.f32 %v2416, %v2417
        %v2419 = vsel %vm1483, %v2377, 0.0
        %v2420 = vadd.f32 %v2418, %v2419
        %v2421 = vsel %vm1483, %v2378, 0.0
        %v2422 = vadd.f32 %v2420, %v2421
        %v2423 = vsel %vm1483, %v2379, 0.0
        %v2424 = vadd.f32 %v2422, %v2423
        %v2425 = vsel %vm1483, %v2380, 0.0
        %v2426 = vadd.f32 %v2424, %v2425
        %v2427 = vsel %vm1483, %v2381, 0.0
        %v2428 = vadd.f32 %v2426, %v2427
        %v2429 = vsel %vm1483, %v2382, 0.0
        %v2430 = vadd.f32 %v2428, %v2429
        %v2431 = vsel %vm1483, %v2383, 0.0
        %v2432 = vadd.f32 %v2430, %v2431
        %v2433 = vsel %vm1483, %v2384, 0.0
        %v2434 = vadd.f32 %v2432, %v2433
        %v2435 = vsel %vm1483, %v2385, 0.0
        %v2436 = vadd.f32 %v2434, %v2435
        %v2437 = vsel %vm1483, %v2386, 0.0
        %v2438 = vadd.f32 %v2436, %v2437
        %v2439 = vsel %vm1483, %v2387, 0.0
        %v2440 = vadd.f32 %v2438, %v2439
        %v2441 = vsel %vm1483, %v2388, 0.0
        %v2442 = vadd.f32 %v2440, %v2441
        %v2443 = vsel %vm1483, %v2389, 0.0
        %v2444 = vadd.f32 %v2442, %v2443
        %v2445 = vsel %vm1483, %v2390, 0.0
        %v2446 = vadd.f32 %v2444, %v2445
        %v2447 = vsel %vm1483, %v2391, 0.0
        %v2448 = vadd.f32 %v2446, %v2447
        %v2449 = vsel %vm1483, %v2392, 0.0
        %v2450 = vadd.f32 %v2448, %v2449
        %v2451 = vsel %vm1483, %v2393, 0.0
        %v2452 = vadd.f32 %v2450, %v2451
        %v2453 = vsel %vm1483, %v2394, 0.0
        %v2454 = vadd.f32 %v2452, %v2453
        %v2455 = vsel %vm1483, %v2395, 0.0
        %v2456 = vadd.f32 %v2454, %v2455
        %v2457 = vsel %vm1483, %v2396, 0.0
        %v2458 = vadd.f32 %v2456, %v2457
        %v2459 = vsel %vm1483, %v2397, 0.0
        %v2460 = vadd.f32 %v2458, %v2459
        %v2461 = vrot.slane %v2460, 4
        %v2462 = vadd.f32 %v2460, %v2461
        %v2463 = vrot.slane %v2462, 2
        %v2464 = vadd.f32 %v2462, %v2463
        %v2465 = vrot.slane %v2464, 1
        %v2466 = vadd.f32 %v2464, %v2465
        %v2467 = vadd.f32 %v2365, %v2466
        %2468 = vst.msk [vmem:[#allocation5 + $0x3] sm:$0x1] %vm2187, %v2467
      $region48: #{tpu_custom_call.1} parent=39 // pred_fallthru
        _
      %p2469 = scmp.eq.s32.totalorder %s20, 1
      // Predicated region
      $region49: #{tpu_custom_call.1} parent=39 // pred_check
        %p2470 = pneg %p2469
      $region50: #{tpu_custom_call.1} parent=39 // pred_check_branch
        %2472 = sbr.rel (%p2470) target = $region52
      $region51: #{tpu_custom_call.1} parent=39 // pred_region
        %v2473 = vld [vmem:[#allocation5] sm:$0x1]
        %v2474 = vld [vmem:[#allocation5 + $0x1] sm:$0x1]
        %v2475 = vld [vmem:[%s4] sm:$0x1]
        %v2476 = vld [vmem:[%s4 + $0x1] sm:$0x1]
        %v2477 = vmul.f32 %v2473, 0.001953125
        %v2478 = vmul.f32 %v2474, 0.001953125
        %v2479 = vmul.f32 %v2477, %v2477
        %v2480 = vsub.f32 %v2478, %v2479
        %v2481 = vmax.f32 %v2480, 0.0
        %v2482 = vadd.f32 %v2481, 1e-05
        %v2483 = vrsqrt.pop %v2482
        %v2484 = vmul.f32 %v2483, %v2482
        %v2485 = vmul.f32 %v2484, %v2483
        %v2486 = vmul.f32 0.5, %v2485
        %v2487 = vsub.f32 1.5, %v2486
        %v2488 = vmul.f32 %v2483, %v2487
        %vm2489 = vweird.f32 %v2482
        %vm2490 = vweird.f32 %v2483
        %vm2491 = vmor %vm2489, %vm2490
        %v2492 = vsel %vm2491, %v2483, %v2488
        %v2493 = vmul.f32 %v2475, %v2492
        %v2494 = vmul.f32 %v2477, %v2493
        %v2495 = vsub.f32 %v2476, %v2494
        %s2496 = smul.u32 %s21, 256
        %s2497 = scalar_lea.vmem [#allocation2], %s2496
        %v2498 = vld [vmem:[%s2497] sm:$0xff]
        %v2499 = vld [vmem:[%s2497 + $0x8] sm:$0xff]
        %v2500 = vld [vmem:[%s2497 + $0x10] sm:$0xff]
        %v2501 = vld [vmem:[%s2497 + $0x18] sm:$0xff]
        %v2502 = vld [vmem:[%s2497 + $0x20] sm:$0xff]
        %v2503 = vld [vmem:[%s2497 + $0x28] sm:$0xff]
        %v2504 = vld [vmem:[%s2497 + $0x30] sm:$0xff]
        %v2505 = vld [vmem:[%s2497 + $0x38] sm:$0xff]
        %v2506 = vld [vmem:[%s2497 + $0x40] sm:$0xff]
        %v2507 = vld [vmem:[%s2497 + $0x48] sm:$0xff]
        %v2508 = vld [vmem:[%s2497 + $0x50] sm:$0xff]
        %v2509 = vld [vmem:[%s2497 + $0x58] sm:$0xff]
        %v2510 = vld [vmem:[%s2497 + $0x60] sm:$0xff]
        %v2511 = vld [vmem:[%s2497 + $0x68] sm:$0xff]
        %v2512 = vld [vmem:[%s2497 + $0x70] sm:$0xff]
        %v2513 = vld [vmem:[%s2497 + $0x78] sm:$0xff]
        %v2514 = vld [vmem:[%s2497 + $0x80] sm:$0xff]
        %v2515 = vld [vmem:[%s2497 + $0x88] sm:$0xff]
        %v2516 = vld [vmem:[%s2497 + $0x90] sm:$0xff]
        %v2517 = vld [vmem:[%s2497 + $0x98] sm:$0xff]
        %v2518 = vld [vmem:[%s2497 + $0xa0] sm:$0xff]
        %v2519 = vld [vmem:[%s2497 + $0xa8] sm:$0xff]
        %v2520 = vld [vmem:[%s2497 + $0xb0] sm:$0xff]
        %v2521 = vld [vmem:[%s2497 + $0xb8] sm:$0xff]
        %v2522 = vld [vmem:[%s2497 + $0xc0] sm:$0xff]
        %v2523 = vld [vmem:[%s2497 + $0xc8] sm:$0xff]
        %v2524 = vld [vmem:[%s2497 + $0xd0] sm:$0xff]
        %v2525 = vld [vmem:[%s2497 + $0xd8] sm:$0xff]
        %v2526 = vld [vmem:[%s2497 + $0xe0] sm:$0xff]
        %v2527 = vld [vmem:[%s2497 + $0xe8] sm:$0xff]
        %v2528 = vld [vmem:[%s2497 + $0xf0] sm:$0xff]
        %v2529 = vld [vmem:[%s2497 + $0xf8] sm:$0xff]
        %v2530 = vperm.slane %v2493, 0
        %v2531 = vmul.f32 %v2498, %v2530
        %v2532 = vmul.f32 %v2499, %v2530
        %v2533 = vmul.f32 %v2500, %v2530
        %v2534 = vmul.f32 %v2501, %v2530
        %v2535 = vmul.f32 %v2502, %v2530
        %v2536 = vmul.f32 %v2503, %v2530
        %v2537 = vmul.f32 %v2504, %v2530
        %v2538 = vmul.f32 %v2505, %v2530
        %v2539 = vmul.f32 %v2506, %v2530
        %v2540 = vmul.f32 %v2507, %v2530
        %v2541 = vmul.f32 %v2508, %v2530
        %v2542 = vmul.f32 %v2509, %v2530
        %v2543 = vmul.f32 %v2510, %v2530
        %v2544 = vmul.f32 %v2511, %v2530
        %v2545 = vmul.f32 %v2512, %v2530
        %v2546 = vmul.f32 %v2513, %v2530
        %v2547 = vmul.f32 %v2514, %v2530
        %v2548 = vmul.f32 %v2515, %v2530
        %v2549 = vmul.f32 %v2516, %v2530
        %v2550 = vmul.f32 %v2517, %v2530
        %v2551 = vmul.f32 %v2518, %v2530
        %v2552 = vmul.f32 %v2519, %v2530
        %v2553 = vmul.f32 %v2520, %v2530
        %v2554 = vmul.f32 %v2521, %v2530
        %v2555 = vmul.f32 %v2522, %v2530
        %v2556 = vmul.f32 %v2523, %v2530
        %v2557 = vmul.f32 %v2524, %v2530
        %v2558 = vmul.f32 %v2525, %v2530
        %v2559 = vmul.f32 %v2526, %v2530
        %v2560 = vmul.f32 %v2527, %v2530
        %v2561 = vmul.f32 %v2528, %v2530
        %v2562 = vmul.f32 %v2529, %v2530
        %v2563 = vperm.slane %v2495, 0
        %v2564 = vadd.f32 %v2531, %v2563
        %v2565 = vadd.f32 %v2532, %v2563
        %v2566 = vadd.f32 %v2533, %v2563
        %v2567 = vadd.f32 %v2534, %v2563
        %v2568 = vadd.f32 %v2535, %v2563
        %v2569 = vadd.f32 %v2536, %v2563
        %v2570 = vadd.f32 %v2537, %v2563
        %v2571 = vadd.f32 %v2538, %v2563
        %v2572 = vadd.f32 %v2539, %v2563
        %v2573 = vadd.f32 %v2540, %v2563
        %v2574 = vadd.f32 %v2541, %v2563
        %v2575 = vadd.f32 %v2542, %v2563
        %v2576 = vadd.f32 %v2543, %v2563
        %v2577 = vadd.f32 %v2544, %v2563
        %v2578 = vadd.f32 %v2545, %v2563
        %v2579 = vadd.f32 %v2546, %v2563
        %v2580 = vadd.f32 %v2547, %v2563
        %v2581 = vadd.f32 %v2548, %v2563
        %v2582 = vadd.f32 %v2549, %v2563
        %v2583 = vadd.f32 %v2550, %v2563
        %v2584 = vadd.f32 %v2551, %v2563
        %v2585 = vadd.f32 %v2552, %v2563
        %v2586 = vadd.f32 %v2553, %v2563
        %v2587 = vadd.f32 %v2554, %v2563
        %v2588 = vadd.f32 %v2555, %v2563
        %v2589 = vadd.f32 %v2556, %v2563
        %v2590 = vadd.f32 %v2557, %v2563
        %v2591 = vadd.f32 %v2558, %v2563
        %v2592 = vadd.f32 %v2559, %v2563
        %v2593 = vadd.f32 %v2560, %v2563
        %v2594 = vadd.f32 %v2561, %v2563
        %v2595 = vadd.f32 %v2562, %v2563
        %v2596 = vmax.f32 %v2564, 0.0
        %v2597 = vmax.f32 %v2565, 0.0
        %v2598 = vmax.f32 %v2566, 0.0
        %v2599 = vmax.f32 %v2567, 0.0
        %v2600 = vmax.f32 %v2568, 0.0
        %v2601 = vmax.f32 %v2569, 0.0
        %v2602 = vmax.f32 %v2570, 0.0
        %v2603 = vmax.f32 %v2571, 0.0
        %v2604 = vmax.f32 %v2572, 0.0
        %v2605 = vmax.f32 %v2573, 0.0
        %v2606 = vmax.f32 %v2574, 0.0
        %v2607 = vmax.f32 %v2575, 0.0
        %v2608 = vmax.f32 %v2576, 0.0
        %v2609 = vmax.f32 %v2577, 0.0
        %v2610 = vmax.f32 %v2578, 0.0
        %v2611 = vmax.f32 %v2579, 0.0
        %v2612 = vmax.f32 %v2580, 0.0
        %v2613 = vmax.f32 %v2581, 0.0
        %v2614 = vmax.f32 %v2582, 0.0
        %v2615 = vmax.f32 %v2583, 0.0
        %v2616 = vmax.f32 %v2584, 0.0
        %v2617 = vmax.f32 %v2585, 0.0
        %v2618 = vmax.f32 %v2586, 0.0
        %v2619 = vmax.f32 %v2587, 0.0
        %v2620 = vmax.f32 %v2588, 0.0
        %v2621 = vmax.f32 %v2589, 0.0
        %v2622 = vmax.f32 %v2590, 0.0
        %v2623 = vmax.f32 %v2591, 0.0
        %v2624 = vmax.f32 %v2592, 0.0
        %v2625 = vmax.f32 %v2593, 0.0
        %v2626 = vmax.f32 %v2594, 0.0
        %v2627 = vmax.f32 %v2595, 0.0
        %vm2661 = vcmask 1040384
        %v2662 = vrot.slane 0.0, 7
        %v2663 = vsel %vm2661, %v2662, %v2662
        %v2664 = vrot.slane %v2596, 7
        %v2665 = vrot.slane %v2597, 7
        %v2666 = vsel %vm2661, %v2664, %v2665
        %v2667 = vrot.slane %v2598, 7
        %v2668 = vrot.slane %v2599, 7
        %v2669 = vsel %vm2661, %v2667, %v2668
        %v2670 = vrot.slane %v2600, 7
        %v2671 = vrot.slane %v2601, 7
        %v2672 = vsel %vm2661, %v2670, %v2671
        %v2673 = vrot.slane %v2602, 7
        %v2674 = vrot.slane %v2603, 7
        %v2675 = vsel %vm2661, %v2673, %v2674
        %v2676 = vrot.slane %v2604, 7
        %v2677 = vrot.slane %v2605, 7
        %v2678 = vsel %vm2661, %v2676, %v2677
        %v2679 = vrot.slane %v2606, 7
        %v2680 = vrot.slane %v2607, 7
        %v2681 = vsel %vm2661, %v2679, %v2680
        %v2682 = vrot.slane %v2608, 7
        %v2683 = vrot.slane %v2609, 7
        %v2684 = vsel %vm2661, %v2682, %v2683
        %v2685 = vrot.slane %v2610, 7
        %v2686 = vrot.slane %v2611, 7
        %v2687 = vsel %vm2661, %v2685, %v2686
        %v2688 = vrot.slane %v2612, 7
        %v2689 = vrot.slane %v2613, 7
        %v2690 = vsel %vm2661, %v2688, %v2689
        %v2691 = vrot.slane %v2614, 7
        %v2692 = vrot.slane %v2615, 7
        %v2693 = vsel %vm2661, %v2691, %v2692
        %v2694 = vrot.slane %v2616, 7
        %v2695 = vrot.slane %v2617, 7
        %v2696 = vsel %vm2661, %v2694, %v2695
        %v2697 = vrot.slane %v2618, 7
        %v2698 = vrot.slane %v2619, 7
        %v2699 = vsel %vm2661, %v2697, %v2698
        %v2700 = vrot.slane %v2620, 7
        %v2701 = vrot.slane %v2621, 7
        %v2702 = vsel %vm2661, %v2700, %v2701
        %v2703 = vrot.slane %v2622, 7
        %v2704 = vrot.slane %v2623, 7
        %v2705 = vsel %vm2661, %v2703, %v2704
        %v2706 = vrot.slane %v2624, 7
        %v2707 = vrot.slane %v2625, 7
        %v2708 = vsel %vm2661, %v2706, %v2707
        %v2709 = vrot.slane %v2626, 7
        %v2710 = vrot.slane %v2627, 7
        %v2711 = vsel %vm2661, %v2709, %v2710
        %v2761 = vsel %vm2661, 0.0, %v2662
        %v2762 = vsel %vm2661, 0.0, %v2664
        %v2763 = vsel %vm2661, 0.0, %v2667
        %v2764 = vsel %vm2661, 0.0, %v2670
        %v2765 = vsel %vm2661, 0.0, %v2673
        %v2766 = vsel %vm2661, 0.0, %v2676
        %v2767 = vsel %vm2661, 0.0, %v2679
        %v2768 = vsel %vm2661, 0.0, %v2682
        %v2769 = vsel %vm2661, 0.0, %v2685
        %v2770 = vsel %vm2661, 0.0, %v2688
        %v2771 = vsel %vm2661, 0.0, %v2691
        %v2772 = vsel %vm2661, 0.0, %v2694
        %v2773 = vsel %vm2661, 0.0, %v2697
        %v2774 = vsel %vm2661, 0.0, %v2700
        %v2775 = vsel %vm2661, 0.0, %v2703
        %v2776 = vsel %vm2661, 0.0, %v2706
        %v2777 = vsel %vm2661, 0.0, %v2709
        %v2778 = vsel %vm2661, %v2662, 0.0
        %v2779 = vsel %vm2661, %v2665, 0.0
        %v2780 = vsel %vm2661, %v2668, 0.0
        %v2781 = vsel %vm2661, %v2671, 0.0
        %v2782 = vsel %vm2661, %v2674, 0.0
        %v2783 = vsel %vm2661, %v2677, 0.0
        %v2784 = vsel %vm2661, %v2680, 0.0
        %v2785 = vsel %vm2661, %v2683, 0.0
        %v2786 = vsel %vm2661, %v2686, 0.0
        %v2787 = vsel %vm2661, %v2689, 0.0
        %v2788 = vsel %vm2661, %v2692, 0.0
        %v2789 = vsel %vm2661, %v2695, 0.0
        %v2790 = vsel %vm2661, %v2698, 0.0
        %v2791 = vsel %vm2661, %v2701, 0.0
        %v2792 = vsel %vm2661, %v2704, 0.0
        %v2793 = vsel %vm2661, %v2707, 0.0
        %v2794 = vsel %vm2661, %v2710, 0.0
        %v2795 = vld [vmem:[%s2] sm:$0xff]
        %v2796 = vld [vmem:[%s2 + $0x8] sm:$0xff]
        %v2797 = vld [vmem:[%s2 + $0x10] sm:$0xff]
        %v2798 = vld [vmem:[%s2 + $0x18] sm:$0xff]
        %v2799 = vld [vmem:[%s2 + $0x20] sm:$0xff]
        %v2800 = vld [vmem:[%s2 + $0x28] sm:$0xff]
        %v2801 = vld [vmem:[%s2 + $0x30] sm:$0xff]
        %v2802 = vld [vmem:[%s2 + $0x38] sm:$0xff]
        %v2803 = vld [vmem:[%s2 + $0x40] sm:$0xff]
        %vm2836 = vcmask 1046528
        %v2837 = vrot.slane %v2761, 1
        %v2838 = vrot.slane %v2663, 1
        %v2839 = vsel %vm2836, %v2837, %v2838
        %v2840 = vrot.slane %v2778, 1
        %v2841 = vsel %vm2836, %v2838, %v2840
        %v2842 = vrot.slane %v2762, 1
        %v2843 = vrot.slane %v2666, 1
        %v2844 = vsel %vm2836, %v2842, %v2843
        %v2845 = vrot.slane %v2779, 1
        %v2846 = vsel %vm2836, %v2843, %v2845
        %v2847 = vrot.slane %v2763, 1
        %v2848 = vrot.slane %v2669, 1
        %v2849 = vsel %vm2836, %v2847, %v2848
        %v2850 = vrot.slane %v2780, 1
        %v2851 = vsel %vm2836, %v2848, %v2850
        %v2852 = vrot.slane %v2764, 1
        %v2853 = vrot.slane %v2672, 1
        %v2854 = vsel %vm2836, %v2852, %v2853
        %v2855 = vrot.slane %v2781, 1
        %v2856 = vsel %vm2836, %v2853, %v2855
        %v2857 = vrot.slane %v2765, 1
        %v2858 = vrot.slane %v2675, 1
        %v2859 = vsel %vm2836, %v2857, %v2858
        %v2860 = vrot.slane %v2782, 1
        %v2861 = vsel %vm2836, %v2858, %v2860
        %v2862 = vrot.slane %v2766, 1
        %v2863 = vrot.slane %v2678, 1
        %v2864 = vsel %vm2836, %v2862, %v2863
        %v2865 = vrot.slane %v2783, 1
        %v2866 = vsel %vm2836, %v2863, %v2865
        %v2867 = vrot.slane %v2767, 1
        %v2868 = vrot.slane %v2681, 1
        %v2869 = vsel %vm2836, %v2867, %v2868
        %v2870 = vrot.slane %v2784, 1
        %v2871 = vsel %vm2836, %v2868, %v2870
        %v2872 = vrot.slane %v2768, 1
        %v2873 = vrot.slane %v2684, 1
        %v2874 = vsel %vm2836, %v2872, %v2873
        %v2875 = vrot.slane %v2785, 1
        %v2876 = vsel %vm2836, %v2873, %v2875
        %v2877 = vrot.slane %v2769, 1
        %v2878 = vrot.slane %v2687, 1
        %v2879 = vsel %vm2836, %v2877, %v2878
        %v2880 = vrot.slane %v2786, 1
        %v2881 = vsel %vm2836, %v2878, %v2880
        %v2882 = vrot.slane %v2770, 1
        %v2883 = vrot.slane %v2690, 1
        %v2884 = vsel %vm2836, %v2882, %v2883
        %v2885 = vrot.slane %v2787, 1
        %v2886 = vsel %vm2836, %v2883, %v2885
        %v2887 = vrot.slane %v2771, 1
        %v2888 = vrot.slane %v2693, 1
        %v2889 = vsel %vm2836, %v2887, %v2888
        %v2890 = vrot.slane %v2788, 1
        %v2891 = vsel %vm2836, %v2888, %v2890
        %v2892 = vrot.slane %v2772, 1
        %v2893 = vrot.slane %v2696, 1
        %v2894 = vsel %vm2836, %v2892, %v2893
        %v2895 = vrot.slane %v2789, 1
        %v2896 = vsel %vm2836, %v2893, %v2895
        %v2897 = vrot.slane %v2773, 1
        %v2898 = vrot.slane %v2699, 1
        %v2899 = vsel %vm2836, %v2897, %v2898
        %v2900 = vrot.slane %v2790, 1
        %v2901 = vsel %vm2836, %v2898, %v2900
        %v2902 = vrot.slane %v2774, 1
        %v2903 = vrot.slane %v2702, 1
        %v2904 = vsel %vm2836, %v2902, %v2903
        %v2905 = vrot.slane %v2791, 1
        %v2906 = vsel %vm2836, %v2903, %v2905
        %v2907 = vrot.slane %v2775, 1
        %v2908 = vrot.slane %v2705, 1
        %v2909 = vsel %vm2836, %v2907, %v2908
        %v2910 = vrot.slane %v2792, 1
        %v2911 = vsel %vm2836, %v2908, %v2910
        %v2912 = vrot.slane %v2776, 1
        %v2913 = vrot.slane %v2708, 1
        %v2914 = vsel %vm2836, %v2912, %v2913
        %v2915 = vrot.slane %v2793, 1
        %v2916 = vsel %vm2836, %v2913, %v2915
        %2917 = vrot.lane.b32.xlu0 %v2839, 8
        %v2918 = vpop.permute.xlu0 %2917
        %2919 = vrot.lane.b32.xlu0 %v2841, 8
        %v2920 = vpop.permute.xlu0 %2919
        %2921 = vrot.lane.b32.xlu0 %v2844, 8
        %v2922 = vpop.permute.xlu0 %2921
        %2923 = vrot.lane.b32.xlu0 %v2846, 8
        %v2924 = vpop.permute.xlu0 %2923
        %2925 = vrot.lane.b32.xlu0 %v2849, 8
        %v2926 = vpop.permute.xlu0 %2925
        %2927 = vrot.lane.b32.xlu0 %v2851, 8
        %v2928 = vpop.permute.xlu0 %2927
        %2929 = vrot.lane.b32.xlu0 %v2854, 8
        %v2930 = vpop.permute.xlu0 %2929
        %2931 = vrot.lane.b32.xlu0 %v2856, 8
        %v2932 = vpop.permute.xlu0 %2931
        %2933 = vrot.lane.b32.xlu0 %v2859, 8
        %v2934 = vpop.permute.xlu0 %2933
        %2935 = vrot.lane.b32.xlu0 %v2861, 8
        %v2936 = vpop.permute.xlu0 %2935
        %2937 = vrot.lane.b32.xlu0 %v2864, 8
        %v2938 = vpop.permute.xlu0 %2937
        %2939 = vrot.lane.b32.xlu0 %v2866, 8
        %v2940 = vpop.permute.xlu0 %2939
        %2941 = vrot.lane.b32.xlu0 %v2869, 8
        %v2942 = vpop.permute.xlu0 %2941
        %2943 = vrot.lane.b32.xlu0 %v2871, 8
        %v2944 = vpop.permute.xlu0 %2943
        %2945 = vrot.lane.b32.xlu0 %v2874, 8
        %v2946 = vpop.permute.xlu0 %2945
        %2947 = vrot.lane.b32.xlu0 %v2876, 8
        %v2948 = vpop.permute.xlu0 %2947
        %2949 = vrot.lane.b32.xlu0 %v2879, 8
        %v2950 = vpop.permute.xlu0 %2949
        %2951 = vrot.lane.b32.xlu0 %v2881, 8
        %v2952 = vpop.permute.xlu0 %2951
        %2953 = vrot.lane.b32.xlu0 %v2884, 8
        %v2954 = vpop.permute.xlu0 %2953
        %2955 = vrot.lane.b32.xlu0 %v2886, 8
        %v2956 = vpop.permute.xlu0 %2955
        %2957 = vrot.lane.b32.xlu0 %v2889, 8
        %v2958 = vpop.permute.xlu0 %2957
        %2959 = vrot.lane.b32.xlu0 %v2891, 8
        %v2960 = vpop.permute.xlu0 %2959
        %2961 = vrot.lane.b32.xlu0 %v2894, 8
        %v2962 = vpop.permute.xlu0 %2961
        %2963 = vrot.lane.b32.xlu0 %v2896, 8
        %v2964 = vpop.permute.xlu0 %2963
        %2965 = vrot.lane.b32.xlu0 %v2899, 8
        %v2966 = vpop.permute.xlu0 %2965
        %2967 = vrot.lane.b32.xlu0 %v2901, 8
        %v2968 = vpop.permute.xlu0 %2967
        %2969 = vrot.lane.b32.xlu0 %v2904, 8
        %v2970 = vpop.permute.xlu0 %2969
        %2971 = vrot.lane.b32.xlu0 %v2906, 8
        %v2972 = vpop.permute.xlu0 %2971
        %2973 = vrot.lane.b32.xlu0 %v2909, 8
        %v2974 = vpop.permute.xlu0 %2973
        %2975 = vrot.lane.b32.xlu0 %v2911, 8
        %v2976 = vpop.permute.xlu0 %2975
        %2977 = vrot.lane.b32.xlu0 %v2914, 8
        %v2978 = vpop.permute.xlu0 %2977
        %2979 = vrot.lane.b32.xlu0 %v2916, 8
        %v2980 = vpop.permute.xlu0 %2979
        %vm3013 = vcmask 1045504
        %v3014 = vrot.slane %v2761, 2
        %v3015 = vrot.slane %v2663, 2
        %v3016 = vsel %vm3013, %v3014, %v3015
        %v3017 = vrot.slane %v2778, 2
        %v3018 = vsel %vm3013, %v3015, %v3017
        %v3019 = vrot.slane %v2762, 2
        %v3020 = vrot.slane %v2666, 2
        %v3021 = vsel %vm3013, %v3019, %v3020
        %v3022 = vrot.slane %v2779, 2
        %v3023 = vsel %vm3013, %v3020, %v3022
        %v3024 = vrot.slane %v2763, 2
        %v3025 = vrot.slane %v2669, 2
        %v3026 = vsel %vm3013, %v3024, %v3025
        %v3027 = vrot.slane %v2780, 2
        %v3028 = vsel %vm3013, %v3025, %v3027
        %v3029 = vrot.slane %v2764, 2
        %v3030 = vrot.slane %v2672, 2
        %v3031 = vsel %vm3013, %v3029, %v3030
        %v3032 = vrot.slane %v2781, 2
        %v3033 = vsel %vm3013, %v3030, %v3032
        %v3034 = vrot.slane %v2765, 2
        %v3035 = vrot.slane %v2675, 2
        %v3036 = vsel %vm3013, %v3034, %v3035
        %v3037 = vrot.slane %v2782, 2
        %v3038 = vsel %vm3013, %v3035, %v3037
        %v3039 = vrot.slane %v2766, 2
        %v3040 = vrot.slane %v2678, 2
        %v3041 = vsel %vm3013, %v3039, %v3040
        %v3042 = vrot.slane %v2783, 2
        %v3043 = vsel %vm3013, %v3040, %v3042
        %v3044 = vrot.slane %v2767, 2
        %v3045 = vrot.slane %v2681, 2
        %v3046 = vsel %vm3013, %v3044, %v3045
        %v3047 = vrot.slane %v2784, 2
        %v3048 = vsel %vm3013, %v3045, %v3047
        %v3049 = vrot.slane %v2768, 2
        %v3050 = vrot.slane %v2684, 2
        %v3051 = vsel %vm3013, %v3049, %v3050
        %v3052 = vrot.slane %v2785, 2
        %v3053 = vsel %vm3013, %v3050, %v3052
        %v3054 = vrot.slane %v2769, 2
        %v3055 = vrot.slane %v2687, 2
        %v3056 = vsel %vm3013, %v3054, %v3055
        %v3057 = vrot.slane %v2786, 2
        %v3058 = vsel %vm3013, %v3055, %v3057
        %v3059 = vrot.slane %v2770, 2
        %v3060 = vrot.slane %v2690, 2
        %v3061 = vsel %vm3013, %v3059, %v3060
        %v3062 = vrot.slane %v2787, 2
        %v3063 = vsel %vm3013, %v3060, %v3062
        %v3064 = vrot.slane %v2771, 2
        %v3065 = vrot.slane %v2693, 2
        %v3066 = vsel %vm3013, %v3064, %v3065
        %v3067 = vrot.slane %v2788, 2
        %v3068 = vsel %vm3013, %v3065, %v3067
        %v3069 = vrot.slane %v2772, 2
        %v3070 = vrot.slane %v2696, 2
        %v3071 = vsel %vm3013, %v3069, %v3070
        %v3072 = vrot.slane %v2789, 2
        %v3073 = vsel %vm3013, %v3070, %v3072
        %v3074 = vrot.slane %v2773, 2
        %v3075 = vrot.slane %v2699, 2
        %v3076 = vsel %vm3013, %v3074, %v3075
        %v3077 = vrot.slane %v2790, 2
        %v3078 = vsel %vm3013, %v3075, %v3077
        %v3079 = vrot.slane %v2774, 2
        %v3080 = vrot.slane %v2702, 2
        %v3081 = vsel %vm3013, %v3079, %v3080
        %v3082 = vrot.slane %v2791, 2
        %v3083 = vsel %vm3013, %v3080, %v3082
        %v3084 = vrot.slane %v2775, 2
        %v3085 = vrot.slane %v2705, 2
        %v3086 = vsel %vm3013, %v3084, %v3085
        %v3087 = vrot.slane %v2792, 2
        %v3088 = vsel %vm3013, %v3085, %v3087
        %v3089 = vrot.slane %v2776, 2
        %v3090 = vrot.slane %v2708, 2
        %v3091 = vsel %vm3013, %v3089, %v3090
        %v3092 = vrot.slane %v2793, 2
        %v3093 = vsel %vm3013, %v3090, %v3092
        %3094 = vrot.lane.b32.xlu0 %v3016, 16
        %v3095 = vpop.permute.xlu0 %3094
        %3096 = vrot.lane.b32.xlu0 %v3018, 16
        %v3097 = vpop.permute.xlu0 %3096
        %3098 = vrot.lane.b32.xlu0 %v3021, 16
        %v3099 = vpop.permute.xlu0 %3098
        %3100 = vrot.lane.b32.xlu0 %v3023, 16
        %v3101 = vpop.permute.xlu0 %3100
        %3102 = vrot.lane.b32.xlu0 %v3026, 16
        %v3103 = vpop.permute.xlu0 %3102
        %3104 = vrot.lane.b32.xlu0 %v3028, 16
        %v3105 = vpop.permute.xlu0 %3104
        %3106 = vrot.lane.b32.xlu0 %v3031, 16
        %v3107 = vpop.permute.xlu0 %3106
        %3108 = vrot.lane.b32.xlu0 %v3033, 16
        %v3109 = vpop.permute.xlu0 %3108
        %3110 = vrot.lane.b32.xlu0 %v3036, 16
        %v3111 = vpop.permute.xlu0 %3110
        %3112 = vrot.lane.b32.xlu0 %v3038, 16
        %v3113 = vpop.permute.xlu0 %3112
        %3114 = vrot.lane.b32.xlu0 %v3041, 16
        %v3115 = vpop.permute.xlu0 %3114
        %3116 = vrot.lane.b32.xlu0 %v3043, 16
        %v3117 = vpop.permute.xlu0 %3116
        %3118 = vrot.lane.b32.xlu0 %v3046, 16
        %v3119 = vpop.permute.xlu0 %3118
        %3120 = vrot.lane.b32.xlu0 %v3048, 16
        %v3121 = vpop.permute.xlu0 %3120
        %3122 = vrot.lane.b32.xlu0 %v3051, 16
        %v3123 = vpop.permute.xlu0 %3122
        %3124 = vrot.lane.b32.xlu0 %v3053, 16
        %v3125 = vpop.permute.xlu0 %3124
        %3126 = vrot.lane.b32.xlu0 %v3056, 16
        %v3127 = vpop.permute.xlu0 %3126
        %3128 = vrot.lane.b32.xlu0 %v3058, 16
        %v3129 = vpop.permute.xlu0 %3128
        %3130 = vrot.lane.b32.xlu0 %v3061, 16
        %v3131 = vpop.permute.xlu0 %3130
        %3132 = vrot.lane.b32.xlu0 %v3063, 16
        %v3133 = vpop.permute.xlu0 %3132
        %3134 = vrot.lane.b32.xlu0 %v3066, 16
        %v3135 = vpop.permute.xlu0 %3134
        %3136 = vrot.lane.b32.xlu0 %v3068, 16
        %v3137 = vpop.permute.xlu0 %3136
        %3138 = vrot.lane.b32.xlu0 %v3071, 16
        %v3139 = vpop.permute.xlu0 %3138
        %3140 = vrot.lane.b32.xlu0 %v3073, 16
        %v3141 = vpop.permute.xlu0 %3140
        %3142 = vrot.lane.b32.xlu0 %v3076, 16
        %v3143 = vpop.permute.xlu0 %3142
        %3144 = vrot.lane.b32.xlu0 %v3078, 16
        %v3145 = vpop.permute.xlu0 %3144
        %3146 = vrot.lane.b32.xlu0 %v3081, 16
        %v3147 = vpop.permute.xlu0 %3146
        %3148 = vrot.lane.b32.xlu0 %v3083, 16
        %v3149 = vpop.permute.xlu0 %3148
        %3150 = vrot.lane.b32.xlu0 %v3086, 16
        %v3151 = vpop.permute.xlu0 %3150
        %3152 = vrot.lane.b32.xlu0 %v3088, 16
        %v3153 = vpop.permute.xlu0 %3152
        %3154 = vrot.lane.b32.xlu0 %v3091, 16
        %v3155 = vpop.permute.xlu0 %3154
        %3156 = vrot.lane.b32.xlu0 %v3093, 16
        %v3157 = vpop.permute.xlu0 %3156
        %3191 = vrot.lane.b32.xlu0 %v2762, 24
        %v3192 = vpop.permute.xlu0 %3191
        %3193 = vrot.lane.b32.xlu0 %v2666, 24
        %v3194 = vpop.permute.xlu0 %3193
        %3195 = vrot.lane.b32.xlu0 %v2763, 24
        %v3196 = vpop.permute.xlu0 %3195
        %3197 = vrot.lane.b32.xlu0 %v2669, 24
        %v3198 = vpop.permute.xlu0 %3197
        %3199 = vrot.lane.b32.xlu0 %v2764, 24
        %v3200 = vpop.permute.xlu0 %3199
        %3201 = vrot.lane.b32.xlu0 %v2672, 24
        %v3202 = vpop.permute.xlu0 %3201
        %3203 = vrot.lane.b32.xlu0 %v2765, 24
        %v3204 = vpop.permute.xlu0 %3203
        %3205 = vrot.lane.b32.xlu0 %v2675, 24
        %v3206 = vpop.permute.xlu0 %3205
        %3207 = vrot.lane.b32.xlu0 %v2766, 24
        %v3208 = vpop.permute.xlu0 %3207
        %3209 = vrot.lane.b32.xlu0 %v2678, 24
        %v3210 = vpop.permute.xlu0 %3209
        %3211 = vrot.lane.b32.xlu0 %v2767, 24
        %v3212 = vpop.permute.xlu0 %3211
        %3213 = vrot.lane.b32.xlu0 %v2681, 24
        %v3214 = vpop.permute.xlu0 %3213
        %3215 = vrot.lane.b32.xlu0 %v2768, 24
        %v3216 = vpop.permute.xlu0 %3215
        %3217 = vrot.lane.b32.xlu0 %v2684, 24
        %v3218 = vpop.permute.xlu0 %3217
        %3219 = vrot.lane.b32.xlu0 %v2769, 24
        %v3220 = vpop.permute.xlu0 %3219
        %3221 = vrot.lane.b32.xlu0 %v2687, 24
        %v3222 = vpop.permute.xlu0 %3221
        %3223 = vrot.lane.b32.xlu0 %v2770, 24
        %v3224 = vpop.permute.xlu0 %3223
        %3225 = vrot.lane.b32.xlu0 %v2690, 24
        %v3226 = vpop.permute.xlu0 %3225
        %3227 = vrot.lane.b32.xlu0 %v2771, 24
        %v3228 = vpop.permute.xlu0 %3227
        %3229 = vrot.lane.b32.xlu0 %v2693, 24
        %v3230 = vpop.permute.xlu0 %3229
        %3231 = vrot.lane.b32.xlu0 %v2772, 24
        %v3232 = vpop.permute.xlu0 %3231
        %3233 = vrot.lane.b32.xlu0 %v2696, 24
        %v3234 = vpop.permute.xlu0 %3233
        %3235 = vrot.lane.b32.xlu0 %v2773, 24
        %v3236 = vpop.permute.xlu0 %3235
        %3237 = vrot.lane.b32.xlu0 %v2699, 24
        %v3238 = vpop.permute.xlu0 %3237
        %3239 = vrot.lane.b32.xlu0 %v2774, 24
        %v3240 = vpop.permute.xlu0 %3239
        %3241 = vrot.lane.b32.xlu0 %v2702, 24
        %v3242 = vpop.permute.xlu0 %3241
        %3243 = vrot.lane.b32.xlu0 %v2775, 24
        %v3244 = vpop.permute.xlu0 %3243
        %3245 = vrot.lane.b32.xlu0 %v2705, 24
        %v3246 = vpop.permute.xlu0 %3245
        %3247 = vrot.lane.b32.xlu0 %v2776, 24
        %v3248 = vpop.permute.xlu0 %3247
        %3249 = vrot.lane.b32.xlu0 %v2708, 24
        %v3250 = vpop.permute.xlu0 %3249
        %3251 = vrot.lane.b32.xlu0 %v2777, 24
        %v3252 = vpop.permute.xlu0 %3251
        %3253 = vrot.lane.b32.xlu0 %v2711, 24
        %v3254 = vpop.permute.xlu0 %3253
        %v3288 = vrot.slane %v2777, 1
        %v3289 = vrot.slane %v2711, 1
        %v3290 = vsel %vm2836, %v3288, %v3289
        %v3291 = vrot.slane %v2794, 1
        %v3292 = vsel %vm2836, %v3289, %v3291
        %3293 = vrot.lane.b32.xlu0 %v2844, 32
        %v3294 = vpop.permute.xlu0 %3293
        %3295 = vrot.lane.b32.xlu0 %v2846, 32
        %v3296 = vpop.permute.xlu0 %3295
        %3297 = vrot.lane.b32.xlu0 %v2849, 32
        %v3298 = vpop.permute.xlu0 %3297
        %3299 = vrot.lane.b32.xlu0 %v2851, 32
        %v3300 = vpop.permute.xlu0 %3299
        %3301 = vrot.lane.b32.xlu0 %v2854, 32
        %v3302 = vpop.permute.xlu0 %3301
        %3303 = vrot.lane.b32.xlu0 %v2856, 32
        %v3304 = vpop.permute.xlu0 %3303
        %3305 = vrot.lane.b32.xlu0 %v2859, 32
        %v3306 = vpop.permute.xlu0 %3305
        %3307 = vrot.lane.b32.xlu0 %v2861, 32
        %v3308 = vpop.permute.xlu0 %3307
        %3309 = vrot.lane.b32.xlu0 %v2864, 32
        %v3310 = vpop.permute.xlu0 %3309
        %3311 = vrot.lane.b32.xlu0 %v2866, 32
        %v3312 = vpop.permute.xlu0 %3311
        %3313 = vrot.lane.b32.xlu0 %v2869, 32
        %v3314 = vpop.permute.xlu0 %3313
        %3315 = vrot.lane.b32.xlu0 %v2871, 32
        %v3316 = vpop.permute.xlu0 %3315
        %3317 = vrot.lane.b32.xlu0 %v2874, 32
        %v3318 = vpop.permute.xlu0 %3317
        %3319 = vrot.lane.b32.xlu0 %v2876, 32
        %v3320 = vpop.permute.xlu0 %3319
        %3321 = vrot.lane.b32.xlu0 %v2879, 32
        %v3322 = vpop.permute.xlu0 %3321
        %3323 = vrot.lane.b32.xlu0 %v2881, 32
        %v3324 = vpop.permute.xlu0 %3323
        %3325 = vrot.lane.b32.xlu0 %v2884, 32
        %v3326 = vpop.permute.xlu0 %3325
        %3327 = vrot.lane.b32.xlu0 %v2886, 32
        %v3328 = vpop.permute.xlu0 %3327
        %3329 = vrot.lane.b32.xlu0 %v2889, 32
        %v3330 = vpop.permute.xlu0 %3329
        %3331 = vrot.lane.b32.xlu0 %v2891, 32
        %v3332 = vpop.permute.xlu0 %3331
        %3333 = vrot.lane.b32.xlu0 %v2894, 32
        %v3334 = vpop.permute.xlu0 %3333
        %3335 = vrot.lane.b32.xlu0 %v2896, 32
        %v3336 = vpop.permute.xlu0 %3335
        %3337 = vrot.lane.b32.xlu0 %v2899, 32
        %v3338 = vpop.permute.xlu0 %3337
        %3339 = vrot.lane.b32.xlu0 %v2901, 32
        %v3340 = vpop.permute.xlu0 %3339
        %3341 = vrot.lane.b32.xlu0 %v2904, 32
        %v3342 = vpop.permute.xlu0 %3341
        %3343 = vrot.lane.b32.xlu0 %v2906, 32
        %v3344 = vpop.permute.xlu0 %3343
        %3345 = vrot.lane.b32.xlu0 %v2909, 32
        %v3346 = vpop.permute.xlu0 %3345
        %3347 = vrot.lane.b32.xlu0 %v2911, 32
        %v3348 = vpop.permute.xlu0 %3347
        %3349 = vrot.lane.b32.xlu0 %v2914, 32
        %v3350 = vpop.permute.xlu0 %3349
        %3351 = vrot.lane.b32.xlu0 %v2916, 32
        %v3352 = vpop.permute.xlu0 %3351
        %3353 = vrot.lane.b32.xlu0 %v3290, 32
        %v3354 = vpop.permute.xlu0 %3353
        %3355 = vrot.lane.b32.xlu0 %v3292, 32
        %v3356 = vpop.permute.xlu0 %3355
        %v3389 = vrot.slane %v2777, 2
        %v3390 = vrot.slane %v2711, 2
        %v3391 = vsel %vm3013, %v3389, %v3390
        %v3392 = vrot.slane %v2794, 2
        %v3393 = vsel %vm3013, %v3390, %v3392
        %3394 = vrot.lane.b32.xlu0 %v3021, 40
        %v3395 = vpop.permute.xlu0 %3394
        %3396 = vrot.lane.b32.xlu0 %v3023, 40
        %v3397 = vpop.permute.xlu0 %3396
        %3398 = vrot.lane.b32.xlu0 %v3026, 40
        %v3399 = vpop.permute.xlu0 %3398
        %3400 = vrot.lane.b32.xlu0 %v3028, 40
        %v3401 = vpop.permute.xlu0 %3400
        %3402 = vrot.lane.b32.xlu0 %v3031, 40
        %v3403 = vpop.permute.xlu0 %3402
        %3404 = vrot.lane.b32.xlu0 %v3033, 40
        %v3405 = vpop.permute.xlu0 %3404
        %3406 = vrot.lane.b32.xlu0 %v3036, 40
        %v3407 = vpop.permute.xlu0 %3406
        %3408 = vrot.lane.b32.xlu0 %v3038, 40
        %v3409 = vpop.permute.xlu0 %3408
        %3410 = vrot.lane.b32.xlu0 %v3041, 40
        %v3411 = vpop.permute.xlu0 %3410
        %3412 = vrot.lane.b32.xlu0 %v3043, 40
        %v3413 = vpop.permute.xlu0 %3412
        %3414 = vrot.lane.b32.xlu0 %v3046, 40
        %v3415 = vpop.permute.xlu0 %3414
        %3416 = vrot.lane.b32.xlu0 %v3048, 40
        %v3417 = vpop.permute.xlu0 %3416
        %3418 = vrot.lane.b32.xlu0 %v3051, 40
        %v3419 = vpop.permute.xlu0 %3418
        %3420 = vrot.lane.b32.xlu0 %v3053, 40
        %v3421 = vpop.permute.xlu0 %3420
        %3422 = vrot.lane.b32.xlu0 %v3056, 40
        %v3423 = vpop.permute.xlu0 %3422
        %3424 = vrot.lane.b32.xlu0 %v3058, 40
        %v3425 = vpop.permute.xlu0 %3424
        %3426 = vrot.lane.b32.xlu0 %v3061, 40
        %v3427 = vpop.permute.xlu0 %3426
        %3428 = vrot.lane.b32.xlu0 %v3063, 40
        %v3429 = vpop.permute.xlu0 %3428
        %3430 = vrot.lane.b32.xlu0 %v3066, 40
        %v3431 = vpop.permute.xlu0 %3430
        %3432 = vrot.lane.b32.xlu0 %v3068, 40
        %v3433 = vpop.permute.xlu0 %3432
        %3434 = vrot.lane.b32.xlu0 %v3071, 40
        %v3435 = vpop.permute.xlu0 %3434
        %3436 = vrot.lane.b32.xlu0 %v3073, 40
        %v3437 = vpop.permute.xlu0 %3436
        %3438 = vrot.lane.b32.xlu0 %v3076, 40
        %v3439 = vpop.permute.xlu0 %3438
        %3440 = vrot.lane.b32.xlu0 %v3078, 40
        %v3441 = vpop.permute.xlu0 %3440
        %3442 = vrot.lane.b32.xlu0 %v3081, 40
        %v3443 = vpop.permute.xlu0 %3442
        %3444 = vrot.lane.b32.xlu0 %v3083, 40
        %v3445 = vpop.permute.xlu0 %3444
        %3446 = vrot.lane.b32.xlu0 %v3086, 40
        %v3447 = vpop.permute.xlu0 %3446
        %3448 = vrot.lane.b32.xlu0 %v3088, 40
        %v3449 = vpop.permute.xlu0 %3448
        %3450 = vrot.lane.b32.xlu0 %v3091, 40
        %v3451 = vpop.permute.xlu0 %3450
        %3452 = vrot.lane.b32.xlu0 %v3093, 40
        %v3453 = vpop.permute.xlu0 %3452
        %3454 = vrot.lane.b32.xlu0 %v3391, 40
        %v3455 = vpop.permute.xlu0 %3454
        %3456 = vrot.lane.b32.xlu0 %v3393, 40
        %v3457 = vpop.permute.xlu0 %3456
        %3490 = vrot.lane.b32.xlu0 %v2763, 48
        %v3491 = vpop.permute.xlu0 %3490
        %3492 = vrot.lane.b32.xlu0 %v2669, 48
        %v3493 = vpop.permute.xlu0 %3492
        %3494 = vrot.lane.b32.xlu0 %v2764, 48
        %v3495 = vpop.permute.xlu0 %3494
        %3496 = vrot.lane.b32.xlu0 %v2672, 48
        %v3497 = vpop.permute.xlu0 %3496
        %3498 = vrot.lane.b32.xlu0 %v2765, 48
        %v3499 = vpop.permute.xlu0 %3498
        %3500 = vrot.lane.b32.xlu0 %v2675, 48
        %v3501 = vpop.permute.xlu0 %3500
        %3502 = vrot.lane.b32.xlu0 %v2766, 48
        %v3503 = vpop.permute.xlu0 %3502
        %3504 = vrot.lane.b32.xlu0 %v2678, 48
        %v3505 = vpop.permute.xlu0 %3504
        %3506 = vrot.lane.b32.xlu0 %v2767, 48
        %v3507 = vpop.permute.xlu0 %3506
        %3508 = vrot.lane.b32.xlu0 %v2681, 48
        %v3509 = vpop.permute.xlu0 %3508
        %3510 = vrot.lane.b32.xlu0 %v2768, 48
        %v3511 = vpop.permute.xlu0 %3510
        %3512 = vrot.lane.b32.xlu0 %v2684, 48
        %v3513 = vpop.permute.xlu0 %3512
        %3514 = vrot.lane.b32.xlu0 %v2769, 48
        %v3515 = vpop.permute.xlu0 %3514
        %3516 = vrot.lane.b32.xlu0 %v2687, 48
        %v3517 = vpop.permute.xlu0 %3516
        %3518 = vrot.lane.b32.xlu0 %v2770, 48
        %v3519 = vpop.permute.xlu0 %3518
        %3520 = vrot.lane.b32.xlu0 %v2690, 48
        %v3521 = vpop.permute.xlu0 %3520
        %3522 = vrot.lane.b32.xlu0 %v2771, 48
        %v3523 = vpop.permute.xlu0 %3522
        %3524 = vrot.lane.b32.xlu0 %v2693, 48
        %v3525 = vpop.permute.xlu0 %3524
        %3526 = vrot.lane.b32.xlu0 %v2772, 48
        %v3527 = vpop.permute.xlu0 %3526
        %3528 = vrot.lane.b32.xlu0 %v2696, 48
        %v3529 = vpop.permute.xlu0 %3528
        %3530 = vrot.lane.b32.xlu0 %v2773, 48
        %v3531 = vpop.permute.xlu0 %3530
        %3532 = vrot.lane.b32.xlu0 %v2699, 48
        %v3533 = vpop.permute.xlu0 %3532
        %3534 = vrot.lane.b32.xlu0 %v2774, 48
        %v3535 = vpop.permute.xlu0 %3534
        %3536 = vrot.lane.b32.xlu0 %v2702, 48
        %v3537 = vpop.permute.xlu0 %3536
        %3538 = vrot.lane.b32.xlu0 %v2775, 48
        %v3539 = vpop.permute.xlu0 %3538
        %3540 = vrot.lane.b32.xlu0 %v2705, 48
        %v3541 = vpop.permute.xlu0 %3540
        %3542 = vrot.lane.b32.xlu0 %v2776, 48
        %v3543 = vpop.permute.xlu0 %3542
        %3544 = vrot.lane.b32.xlu0 %v2708, 48
        %v3545 = vpop.permute.xlu0 %3544
        %3546 = vrot.lane.b32.xlu0 %v2777, 48
        %v3547 = vpop.permute.xlu0 %3546
        %3548 = vrot.lane.b32.xlu0 %v2711, 48
        %v3549 = vpop.permute.xlu0 %3548
        %3550 = vrot.lane.b32.xlu0 %v2761, 48
        %v3551 = vpop.permute.xlu0 %3550
        %3552 = vrot.lane.b32.xlu0 %v2663, 48
        %v3553 = vpop.permute.xlu0 %3552
        %3586 = vrot.lane.b32.xlu0 %v2849, 56
        %v3587 = vpop.permute.xlu0 %3586
        %3588 = vrot.lane.b32.xlu0 %v2851, 56
        %v3589 = vpop.permute.xlu0 %3588
        %3590 = vrot.lane.b32.xlu0 %v2854, 56
        %v3591 = vpop.permute.xlu0 %3590
        %3592 = vrot.lane.b32.xlu0 %v2856, 56
        %v3593 = vpop.permute.xlu0 %3592
        %3594 = vrot.lane.b32.xlu0 %v2859, 56
        %v3595 = vpop.permute.xlu0 %3594
        %3596 = vrot.lane.b32.xlu0 %v2861, 56
        %v3597 = vpop.permute.xlu0 %3596
        %3598 = vrot.lane.b32.xlu0 %v2864, 56
        %v3599 = vpop.permute.xlu0 %3598
        %3600 = vrot.lane.b32.xlu0 %v2866, 56
        %v3601 = vpop.permute.xlu0 %3600
        %3602 = vrot.lane.b32.xlu0 %v2869, 56
        %v3603 = vpop.permute.xlu0 %3602
        %3604 = vrot.lane.b32.xlu0 %v2871, 56
        %v3605 = vpop.permute.xlu0 %3604
        %3606 = vrot.lane.b32.xlu0 %v2874, 56
        %v3607 = vpop.permute.xlu0 %3606
        %3608 = vrot.lane.b32.xlu0 %v2876, 56
        %v3609 = vpop.permute.xlu0 %3608
        %3610 = vrot.lane.b32.xlu0 %v2879, 56
        %v3611 = vpop.permute.xlu0 %3610
        %3612 = vrot.lane.b32.xlu0 %v2881, 56
        %v3613 = vpop.permute.xlu0 %3612
        %3614 = vrot.lane.b32.xlu0 %v2884, 56
        %v3615 = vpop.permute.xlu0 %3614
        %3616 = vrot.lane.b32.xlu0 %v2886, 56
        %v3617 = vpop.permute.xlu0 %3616
        %3618 = vrot.lane.b32.xlu0 %v2889, 56
        %v3619 = vpop.permute.xlu0 %3618
        %3620 = vrot.lane.b32.xlu0 %v2891, 56
        %v3621 = vpop.permute.xlu0 %3620
        %3622 = vrot.lane.b32.xlu0 %v2894, 56
        %v3623 = vpop.permute.xlu0 %3622
        %3624 = vrot.lane.b32.xlu0 %v2896, 56
        %v3625 = vpop.permute.xlu0 %3624
        %3626 = vrot.lane.b32.xlu0 %v2899, 56
        %v3627 = vpop.permute.xlu0 %3626
        %3628 = vrot.lane.b32.xlu0 %v2901, 56
        %v3629 = vpop.permute.xlu0 %3628
        %3630 = vrot.lane.b32.xlu0 %v2904, 56
        %v3631 = vpop.permute.xlu0 %3630
        %3632 = vrot.lane.b32.xlu0 %v2906, 56
        %v3633 = vpop.permute.xlu0 %3632
        %3634 = vrot.lane.b32.xlu0 %v2909, 56
        %v3635 = vpop.permute.xlu0 %3634
        %3636 = vrot.lane.b32.xlu0 %v2911, 56
        %v3637 = vpop.permute.xlu0 %3636
        %3638 = vrot.lane.b32.xlu0 %v2914, 56
        %v3639 = vpop.permute.xlu0 %3638
        %3640 = vrot.lane.b32.xlu0 %v2916, 56
        %v3641 = vpop.permute.xlu0 %3640
        %3642 = vrot.lane.b32.xlu0 %v3290, 56
        %v3643 = vpop.permute.xlu0 %3642
        %3644 = vrot.lane.b32.xlu0 %v3292, 56
        %v3645 = vpop.permute.xlu0 %3644
        %3646 = vrot.lane.b32.xlu0 %v2839, 56
        %v3647 = vpop.permute.xlu0 %3646
        %3648 = vrot.lane.b32.xlu0 %v2841, 56
        %v3649 = vpop.permute.xlu0 %3648
        %3682 = vrot.lane.b32.xlu0 %v3026, 64
        %v3683 = vpop.permute.xlu0 %3682
        %3684 = vrot.lane.b32.xlu0 %v3028, 64
        %v3685 = vpop.permute.xlu0 %3684
        %3686 = vrot.lane.b32.xlu0 %v3031, 64
        %v3687 = vpop.permute.xlu0 %3686
        %3688 = vrot.lane.b32.xlu0 %v3033, 64
        %v3689 = vpop.permute.xlu0 %3688
        %3690 = vrot.lane.b32.xlu0 %v3036, 64
        %v3691 = vpop.permute.xlu0 %3690
        %3692 = vrot.lane.b32.xlu0 %v3038, 64
        %v3693 = vpop.permute.xlu0 %3692
        %3694 = vrot.lane.b32.xlu0 %v3041, 64
        %v3695 = vpop.permute.xlu0 %3694
        %3696 = vrot.lane.b32.xlu0 %v3043, 64
        %v3697 = vpop.permute.xlu0 %3696
        %3698 = vrot.lane.b32.xlu0 %v3046, 64
        %v3699 = vpop.permute.xlu0 %3698
        %3700 = vrot.lane.b32.xlu0 %v3048, 64
        %v3701 = vpop.permute.xlu0 %3700
        %3702 = vrot.lane.b32.xlu0 %v3051, 64
        %v3703 = vpop.permute.xlu0 %3702
        %3704 = vrot.lane.b32.xlu0 %v3053, 64
        %v3705 = vpop.permute.xlu0 %3704
        %3706 = vrot.lane.b32.xlu0 %v3056, 64
        %v3707 = vpop.permute.xlu0 %3706
        %3708 = vrot.lane.b32.xlu0 %v3058, 64
        %v3709 = vpop.permute.xlu0 %3708
        %3710 = vrot.lane.b32.xlu0 %v3061, 64
        %v3711 = vpop.permute.xlu0 %3710
        %3712 = vrot.lane.b32.xlu0 %v3063, 64
        %v3713 = vpop.permute.xlu0 %3712
        %3714 = vrot.lane.b32.xlu0 %v3066, 64
        %v3715 = vpop.permute.xlu0 %3714
        %3716 = vrot.lane.b32.xlu0 %v3068, 64
        %v3717 = vpop.permute.xlu0 %3716
        %3718 = vrot.lane.b32.xlu0 %v3071, 64
        %v3719 = vpop.permute.xlu0 %3718
        %3720 = vrot.lane.b32.xlu0 %v3073, 64
        %v3721 = vpop.permute.xlu0 %3720
        %3722 = vrot.lane.b32.xlu0 %v3076, 64
        %v3723 = vpop.permute.xlu0 %3722
        %3724 = vrot.lane.b32.xlu0 %v3078, 64
        %v3725 = vpop.permute.xlu0 %3724
        %3726 = vrot.lane.b32.xlu0 %v3081, 64
        %v3727 = vpop.permute.xlu0 %3726
        %3728 = vrot.lane.b32.xlu0 %v3083, 64
        %v3729 = vpop.permute.xlu0 %3728
        %3730 = vrot.lane.b32.xlu0 %v3086, 64
        %v3731 = vpop.permute.xlu0 %3730
        %3732 = vrot.lane.b32.xlu0 %v3088, 64
        %v3733 = vpop.permute.xlu0 %3732
        %3734 = vrot.lane.b32.xlu0 %v3091, 64
        %v3735 = vpop.permute.xlu0 %3734
        %3736 = vrot.lane.b32.xlu0 %v3093, 64
        %v3737 = vpop.permute.xlu0 %3736
        %3738 = vrot.lane.b32.xlu0 %v3391, 64
        %v3739 = vpop.permute.xlu0 %3738
        %3740 = vrot.lane.b32.xlu0 %v3393, 64
        %v3741 = vpop.permute.xlu0 %3740
        %3742 = vrot.lane.b32.xlu0 %v3016, 64
        %v3743 = vpop.permute.xlu0 %3742
        %3744 = vrot.lane.b32.xlu0 %v3018, 64
        %v3745 = vpop.permute.xlu0 %3744
        %vm3778 = vcmask 64512
        %v3779 = vsel %vm3778, %v2761, %v2918
        %v3780 = vsel %vm3778, %v2663, %v2920
        %v3781 = vsel %vm3778, %v2762, %v2922
        %v3782 = vsel %vm3778, %v2666, %v2924
        %v3783 = vsel %vm3778, %v2763, %v2926
        %v3784 = vsel %vm3778, %v2669, %v2928
        %v3785 = vsel %vm3778, %v2764, %v2930
        %v3786 = vsel %vm3778, %v2672, %v2932
        %v3787 = vsel %vm3778, %v2765, %v2934
        %v3788 = vsel %vm3778, %v2675, %v2936
        %v3789 = vsel %vm3778, %v2766, %v2938
        %v3790 = vsel %vm3778, %v2678, %v2940
        %v3791 = vsel %vm3778, %v2767, %v2942
        %v3792 = vsel %vm3778, %v2681, %v2944
        %v3793 = vsel %vm3778, %v2768, %v2946
        %v3794 = vsel %vm3778, %v2684, %v2948
        %v3795 = vsel %vm3778, %v2769, %v2950
        %v3796 = vsel %vm3778, %v2687, %v2952
        %v3797 = vsel %vm3778, %v2770, %v2954
        %v3798 = vsel %vm3778, %v2690, %v2956
        %v3799 = vsel %vm3778, %v2771, %v2958
        %v3800 = vsel %vm3778, %v2693, %v2960
        %v3801 = vsel %vm3778, %v2772, %v2962
        %v3802 = vsel %vm3778, %v2696, %v2964
        %v3803 = vsel %vm3778, %v2773, %v2966
        %v3804 = vsel %vm3778, %v2699, %v2968
        %v3805 = vsel %vm3778, %v2774, %v2970
        %v3806 = vsel %vm3778, %v2702, %v2972
        %v3807 = vsel %vm3778, %v2775, %v2974
        %v3808 = vsel %vm3778, %v2705, %v2976
        %v3809 = vsel %vm3778, %v2776, %v2978
        %v3810 = vsel %vm3778, %v2708, %v2980
        %vm3811 = vcmask 130048
        %v3812 = vsel %vm3811, %v3779, %v3095
        %v3813 = vsel %vm3811, %v3780, %v3097
        %v3814 = vsel %vm3811, %v3781, %v3099
        %v3815 = vsel %vm3811, %v3782, %v3101
        %v3816 = vsel %vm3811, %v3783, %v3103
        %v3817 = vsel %vm3811, %v3784, %v3105
        %v3818 = vsel %vm3811, %v3785, %v3107
        %v3819 = vsel %vm3811, %v3786, %v3109
        %v3820 = vsel %vm3811, %v3787, %v3111
        %v3821 = vsel %vm3811, %v3788, %v3113
        %v3822 = vsel %vm3811, %v3789, %v3115
        %v3823 = vsel %vm3811, %v3790, %v3117
        %v3824 = vsel %vm3811, %v3791, %v3119
        %v3825 = vsel %vm3811, %v3792, %v3121
        %v3826 = vsel %vm3811, %v3793, %v3123
        %v3827 = vsel %vm3811, %v3794, %v3125
        %v3828 = vsel %vm3811, %v3795, %v3127
        %v3829 = vsel %vm3811, %v3796, %v3129
        %v3830 = vsel %vm3811, %v3797, %v3131
        %v3831 = vsel %vm3811, %v3798, %v3133
        %v3832 = vsel %vm3811, %v3799, %v3135
        %v3833 = vsel %vm3811, %v3800, %v3137
        %v3834 = vsel %vm3811, %v3801, %v3139
        %v3835 = vsel %vm3811, %v3802, %v3141
        %v3836 = vsel %vm3811, %v3803, %v3143
        %v3837 = vsel %vm3811, %v3804, %v3145
        %v3838 = vsel %vm3811, %v3805, %v3147
        %v3839 = vsel %vm3811, %v3806, %v3149
        %v3840 = vsel %vm3811, %v3807, %v3151
        %v3841 = vsel %vm3811, %v3808, %v3153
        %v3842 = vsel %vm3811, %v3809, %v3155
        %v3843 = vsel %vm3811, %v3810, %v3157
        %vm3844 = vcmask 195584
        %v3845 = vsel %vm3844, %v3812, %v3192
        %v3846 = vsel %vm3844, %v3813, %v3194
        %v3847 = vsel %vm3844, %v3814, %v3196
        %v3848 = vsel %vm3844, %v3815, %v3198
        %v3849 = vsel %vm3844, %v3816, %v3200
        %v3850 = vsel %vm3844, %v3817, %v3202
        %v3851 = vsel %vm3844, %v3818, %v3204
        %v3852 = vsel %vm3844, %v3819, %v3206
        %v3853 = vsel %vm3844, %v3820, %v3208
        %v3854 = vsel %vm3844, %v3821, %v3210
        %v3855 = vsel %vm3844, %v3822, %v3212
        %v3856 = vsel %vm3844, %v3823, %v3214
        %v3857 = vsel %vm3844, %v3824, %v3216
        %v3858 = vsel %vm3844, %v3825, %v3218
        %v3859 = vsel %vm3844, %v3826, %v3220
        %v3860 = vsel %vm3844, %v3827, %v3222
        %v3861 = vsel %vm3844, %v3828, %v3224
        %v3862 = vsel %vm3844, %v3829, %v3226
        %v3863 = vsel %vm3844, %v3830, %v3228
        %v3864 = vsel %vm3844, %v3831, %v3230
        %v3865 = vsel %vm3844, %v3832, %v3232
        %v3866 = vsel %vm3844, %v3833, %v3234
        %v3867 = vsel %vm3844, %v3834, %v3236
        %v3868 = vsel %vm3844, %v3835, %v3238
        %v3869 = vsel %vm3844, %v3836, %v3240
        %v3870 = vsel %vm3844, %v3837, %v3242
        %v3871 = vsel %vm3844, %v3838, %v3244
        %v3872 = vsel %vm3844, %v3839, %v3246
        %v3873 = vsel %vm3844, %v3840, %v3248
        %v3874 = vsel %vm3844, %v3841, %v3250
        %v3875 = vsel %vm3844, %v3842, %v3252
        %v3876 = vsel %vm3844, %v3843, %v3254
        %vm3877 = vcmask 261120
        %v3878 = vsel %vm3877, %v3845, %v3294
        %v3879 = vsel %vm3877, %v3846, %v3296
        %v3880 = vsel %vm3877, %v3847, %v3298
        %v3881 = vsel %vm3877, %v3848, %v3300
        %v3882 = vsel %vm3877, %v3849, %v3302
        %v3883 = vsel %vm3877, %v3850, %v3304
        %v3884 = vsel %vm3877, %v3851, %v3306
        %v3885 = vsel %vm3877, %v3852, %v3308
        %v3886 = vsel %vm3877, %v3853, %v3310
        %v3887 = vsel %vm3877, %v3854, %v3312
        %v3888 = vsel %vm3877, %v3855, %v3314
        %v3889 = vsel %vm3877, %v3856, %v3316
        %v3890 = vsel %vm3877, %v3857, %v3318
        %v3891 = vsel %vm3877, %v3858, %v3320
        %v3892 = vsel %vm3877, %v3859, %v3322
        %v3893 = vsel %vm3877, %v3860, %v3324
        %v3894 = vsel %vm3877, %v3861, %v3326
        %v3895 = vsel %vm3877, %v3862, %v3328
        %v3896 = vsel %vm3877, %v3863, %v3330
        %v3897 = vsel %vm3877, %v3864, %v3332
        %v3898 = vsel %vm3877, %v3865, %v3334
        %v3899 = vsel %vm3877, %v3866, %v3336
        %v3900 = vsel %vm3877, %v3867, %v3338
        %v3901 = vsel %vm3877, %v3868, %v3340
        %v3902 = vsel %vm3877, %v3869, %v3342
        %v3903 = vsel %vm3877, %v3870, %v3344
        %v3904 = vsel %vm3877, %v3871, %v3346
        %v3905 = vsel %vm3877, %v3872, %v3348
        %v3906 = vsel %vm3877, %v3873, %v3350
        %v3907 = vsel %vm3877, %v3874, %v3352
        %v3908 = vsel %vm3877, %v3875, %v3354
        %v3909 = vsel %vm3877, %v3876, %v3356
        %vm3910 = vcmask 326656
        %v3911 = vsel %vm3910, %v3878, %v3395
        %v3912 = vsel %vm3910, %v3879, %v3397
        %v3913 = vsel %vm3910, %v3880, %v3399
        %v3914 = vsel %vm3910, %v3881, %v3401
        %v3915 = vsel %vm3910, %v3882, %v3403
        %v3916 = vsel %vm3910, %v3883, %v3405
        %v3917 = vsel %vm3910, %v3884, %v3407
        %v3918 = vsel %vm3910, %v3885, %v3409
        %v3919 = vsel %vm3910, %v3886, %v3411
        %v3920 = vsel %vm3910, %v3887, %v3413
        %v3921 = vsel %vm3910, %v3888, %v3415
        %v3922 = vsel %vm3910, %v3889, %v3417
        %v3923 = vsel %vm3910, %v3890, %v3419
        %v3924 = vsel %vm3910, %v3891, %v3421
        %v3925 = vsel %vm3910, %v3892, %v3423
        %v3926 = vsel %vm3910, %v3893, %v3425
        %v3927 = vsel %vm3910, %v3894, %v3427
        %v3928 = vsel %vm3910, %v3895, %v3429
        %v3929 = vsel %vm3910, %v3896, %v3431
        %v3930 = vsel %vm3910, %v3897, %v3433
        %v3931 = vsel %vm3910, %v3898, %v3435
        %v3932 = vsel %vm3910, %v3899, %v3437
        %v3933 = vsel %vm3910, %v3900, %v3439
        %v3934 = vsel %vm3910, %v3901, %v3441
        %v3935 = vsel %vm3910, %v3902, %v3443
        %v3936 = vsel %vm3910, %v3903, %v3445
        %v3937 = vsel %vm3910, %v3904, %v3447
        %v3938 = vsel %vm3910, %v3905, %v3449
        %v3939 = vsel %vm3910, %v3906, %v3451
        %v3940 = vsel %vm3910, %v3907, %v3453
        %v3941 = vsel %vm3910, %v3908, %v3455
        %v3942 = vsel %vm3910, %v3909, %v3457
        %vm3943 = vcmask 392192
        %v3944 = vsel %vm3943, %v3911, %v3491
        %v3945 = vsel %vm3943, %v3912, %v3493
        %v3946 = vsel %vm3943, %v3913, %v3495
        %v3947 = vsel %vm3943, %v3914, %v3497
        %v3948 = vsel %vm3943, %v3915, %v3499
        %v3949 = vsel %vm3943, %v3916, %v3501
        %v3950 = vsel %vm3943, %v3917, %v3503
        %v3951 = vsel %vm3943, %v3918, %v3505
        %v3952 = vsel %vm3943, %v3919, %v3507
        %v3953 = vsel %vm3943, %v3920, %v3509
        %v3954 = vsel %vm3943, %v3921, %v3511
        %v3955 = vsel %vm3943, %v3922, %v3513
        %v3956 = vsel %vm3943, %v3923, %v3515
        %v3957 = vsel %vm3943, %v3924, %v3517
        %v3958 = vsel %vm3943, %v3925, %v3519
        %v3959 = vsel %vm3943, %v3926, %v3521
        %v3960 = vsel %vm3943, %v3927, %v3523
        %v3961 = vsel %vm3943, %v3928, %v3525
        %v3962 = vsel %vm3943, %v3929, %v3527
        %v3963 = vsel %vm3943, %v3930, %v3529
        %v3964 = vsel %vm3943, %v3931, %v3531
        %v3965 = vsel %vm3943, %v3932, %v3533
        %v3966 = vsel %vm3943, %v3933, %v3535
        %v3967 = vsel %vm3943, %v3934, %v3537
        %v3968 = vsel %vm3943, %v3935, %v3539
        %v3969 = vsel %vm3943, %v3936, %v3541
        %v3970 = vsel %vm3943, %v3937, %v3543
        %v3971 = vsel %vm3943, %v3938, %v3545
        %v3972 = vsel %vm3943, %v3939, %v3547
        %v3973 = vsel %vm3943, %v3940, %v3549
        %v3974 = vsel %vm3943, %v3941, %v3551
        %v3975 = vsel %vm3943, %v3942, %v3553
        %vm3976 = vcmask 457728
        %v3977 = vsel %vm3976, %v3944, %v3587
        %v3978 = vsel %vm3976, %v3945, %v3589
        %v3979 = vsel %vm3976, %v3946, %v3591
        %v3980 = vsel %vm3976, %v3947, %v3593
        %v3981 = vsel %vm3976, %v3948, %v3595
        %v3982 = vsel %vm3976, %v3949, %v3597
        %v3983 = vsel %vm3976, %v3950, %v3599
        %v3984 = vsel %vm3976, %v3951, %v3601
        %v3985 = vsel %vm3976, %v3952, %v3603
        %v3986 = vsel %vm3976, %v3953, %v3605
        %v3987 = vsel %vm3976, %v3954, %v3607
        %v3988 = vsel %vm3976, %v3955, %v3609
        %v3989 = vsel %vm3976, %v3956, %v3611
        %v3990 = vsel %vm3976, %v3957, %v3613
        %v3991 = vsel %vm3976, %v3958, %v3615
        %v3992 = vsel %vm3976, %v3959, %v3617
        %v3993 = vsel %vm3976, %v3960, %v3619
        %v3994 = vsel %vm3976, %v3961, %v3621
        %v3995 = vsel %vm3976, %v3962, %v3623
        %v3996 = vsel %vm3976, %v3963, %v3625
        %v3997 = vsel %vm3976, %v3964, %v3627
        %v3998 = vsel %vm3976, %v3965, %v3629
        %v3999 = vsel %vm3976, %v3966, %v3631
        %v4000 = vsel %vm3976, %v3967, %v3633
        %v4001 = vsel %vm3976, %v3968, %v3635
        %v4002 = vsel %vm3976, %v3969, %v3637
        %v4003 = vsel %vm3976, %v3970, %v3639
        %v4004 = vsel %vm3976, %v3971, %v3641
        %v4005 = vsel %vm3976, %v3972, %v3643
        %v4006 = vsel %vm3976, %v3973, %v3645
        %v4007 = vsel %vm3976, %v3974, %v3647
        %v4008 = vsel %vm3976, %v3975, %v3649
        %vm4009 = vcmask 523264
        %v4010 = vsel %vm4009, %v3977, %v3683
        %v4011 = vsel %vm4009, %v3978, %v3685
        %v4012 = vsel %vm4009, %v3979, %v3687
        %v4013 = vsel %vm4009, %v3980, %v3689
        %v4014 = vsel %vm4009, %v3981, %v3691
        %v4015 = vsel %vm4009, %v3982, %v3693
        %v4016 = vsel %vm4009, %v3983, %v3695
        %v4017 = vsel %vm4009, %v3984, %v3697
        %v4018 = vsel %vm4009, %v3985, %v3699
        %v4019 = vsel %vm4009, %v3986, %v3701
        %v4020 = vsel %vm4009, %v3987, %v3703
        %v4021 = vsel %vm4009, %v3988, %v3705
        %v4022 = vsel %vm4009, %v3989, %v3707
        %v4023 = vsel %vm4009, %v3990, %v3709
        %v4024 = vsel %vm4009, %v3991, %v3711
        %v4025 = vsel %vm4009, %v3992, %v3713
        %v4026 = vsel %vm4009, %v3993, %v3715
        %v4027 = vsel %vm4009, %v3994, %v3717
        %v4028 = vsel %vm4009, %v3995, %v3719
        %v4029 = vsel %vm4009, %v3996, %v3721
        %v4030 = vsel %vm4009, %v3997, %v3723
        %v4031 = vsel %vm4009, %v3998, %v3725
        %v4032 = vsel %vm4009, %v3999, %v3727
        %v4033 = vsel %vm4009, %v4000, %v3729
        %v4034 = vsel %vm4009, %v4001, %v3731
        %v4035 = vsel %vm4009, %v4002, %v3733
        %v4036 = vsel %vm4009, %v4003, %v3735
        %v4037 = vsel %vm4009, %v4004, %v3737
        %v4038 = vsel %vm4009, %v4005, %v3739
        %v4039 = vsel %vm4009, %v4006, %v3741
        %v4040 = vsel %vm4009, %v4007, %v3743
        %v4041 = vsel %vm4009, %v4008, %v3745
        %vm4042 = vcmask 588800
        %v4044 = vsel %vm4042, %v4010, 0
        %v4047 = vsel %vm4042, %v4011, 0
        %v4050 = vsel %vm4042, %v4012, 0
        %v4053 = vsel %vm4042, %v4013, 0
        %v4056 = vsel %vm4042, %v4014, 0
        %v4059 = vsel %vm4042, %v4015, 0
        %v4062 = vsel %vm4042, %v4016, 0
        %v4065 = vsel %vm4042, %v4017, 0
        %v4068 = vsel %vm4042, %v4018, 0
        %v4071 = vsel %vm4042, %v4019, 0
        %v4074 = vsel %vm4042, %v4020, 0
        %v4077 = vsel %vm4042, %v4021, 0
        %v4080 = vsel %vm4042, %v4022, 0
        %v4083 = vsel %vm4042, %v4023, 0
        %v4086 = vsel %vm4042, %v4024, 0
        %v4089 = vsel %vm4042, %v4025, 0
        %v4092 = vsel %vm4042, %v4026, 0
        %v4095 = vsel %vm4042, %v4027, 0
        %v4098 = vsel %vm4042, %v4028, 0
        %v4101 = vsel %vm4042, %v4029, 0
        %v4104 = vsel %vm4042, %v4030, 0
        %v4107 = vsel %vm4042, %v4031, 0
        %v4110 = vsel %vm4042, %v4032, 0
        %v4113 = vsel %vm4042, %v4033, 0
        %v4116 = vsel %vm4042, %v4034, 0
        %v4119 = vsel %vm4042, %v4035, 0
        %v4122 = vsel %vm4042, %v4036, 0
        %v4125 = vsel %vm4042, %v4037, 0
        %v4128 = vsel %vm4042, %v4038, 0
        %v4131 = vsel %vm4042, %v4039, 0
        %v4134 = vsel %vm4042, %v4040, 0
        %v4137 = vsel %vm4042, %v4041, 0
        %4139 = vmatpush.msra.mxu0 0.0
        %4140 = vmatpush.msra.mxu0 0.0
        %4141 = vmatpush.msra.mxu0 0.0
        %4142 = vmatpush.msra.mxu0 0.0
        %4143 = vmatpush.msra.mxu0 0.0
        %4144 = vmatpush.msra.mxu0 0.0
        %4145 = vmatpush.msra.mxu0 0.0
        %4146 = vmatpush.msra.mxu0 %v2803
        %4147 = vmatpush.msra.mxu0 %v2802
        %4148 = vmatpush.msra.mxu0 %v2801
        %4149 = vmatpush.msra.mxu0 %v2800
        %4150 = vmatpush.msra.mxu0 %v2799
        %4151 = vmatpush.msra.mxu0 %v2798
        %4152 = vmatpush.msra.mxu0 %v2797
        %4153 = vmatpush.msra.mxu0 %v2796
        %4154 = vmatpush.msra.mxu0 %v2795
        %4155 = vmatmul.f32.gmra.mxu0 %v4044
        %v4156 = vpop.f32.mrf.mxu0
        %v4157 = vadd.f32 0.0, %v4156
        %4158 = vmatmul.f32.gmra.mxu0 %v4047
        %v4159 = vpop.f32.mrf.mxu0
        %v4160 = vadd.f32 0.0, %v4159
        %4161 = vmatmul.f32.gmra.mxu0 %v4050
        %v4162 = vpop.f32.mrf.mxu0
        %v4163 = vadd.f32 0.0, %v4162
        %4164 = vmatmul.f32.gmra.mxu0 %v4053
        %v4165 = vpop.f32.mrf.mxu0
        %v4166 = vadd.f32 0.0, %v4165
        %4167 = vmatmul.f32.gmra.mxu0 %v4056
        %v4168 = vpop.f32.mrf.mxu0
        %v4169 = vadd.f32 0.0, %v4168
        %4170 = vmatmul.f32.gmra.mxu0 %v4059
        %v4171 = vpop.f32.mrf.mxu0
        %v4172 = vadd.f32 0.0, %v4171
        %4173 = vmatmul.f32.gmra.mxu0 %v4062
        %v4174 = vpop.f32.mrf.mxu0
        %v4175 = vadd.f32 0.0, %v4174
        %4176 = vmatmul.f32.gmra.mxu0 %v4065
        %v4177 = vpop.f32.mrf.mxu0
        %v4178 = vadd.f32 0.0, %v4177
        %4179 = vmatmul.f32.gmra.mxu0 %v4068
        %v4180 = vpop.f32.mrf.mxu0
        %v4181 = vadd.f32 0.0, %v4180
        %4182 = vmatmul.f32.gmra.mxu0 %v4071
        %v4183 = vpop.f32.mrf.mxu0
        %v4184 = vadd.f32 0.0, %v4183
        %4185 = vmatmul.f32.gmra.mxu0 %v4074
        %v4186 = vpop.f32.mrf.mxu0
        %v4187 = vadd.f32 0.0, %v4186
        %4188 = vmatmul.f32.gmra.mxu0 %v4077
        %v4189 = vpop.f32.mrf.mxu0
        %v4190 = vadd.f32 0.0, %v4189
        %4191 = vmatmul.f32.gmra.mxu0 %v4080
        %v4192 = vpop.f32.mrf.mxu0
        %v4193 = vadd.f32 0.0, %v4192
        %4194 = vmatmul.f32.gmra.mxu0 %v4083
        %v4195 = vpop.f32.mrf.mxu0
        %v4196 = vadd.f32 0.0, %v4195
        %4197 = vmatmul.f32.gmra.mxu0 %v4086
        %v4198 = vpop.f32.mrf.mxu0
        %v4199 = vadd.f32 0.0, %v4198
        %4200 = vmatmul.f32.gmra.mxu0 %v4089
        %v4201 = vpop.f32.mrf.mxu0
        %v4202 = vadd.f32 0.0, %v4201
        %4203 = vmatmul.f32.gmra.mxu0 %v4092
        %v4204 = vpop.f32.mrf.mxu0
        %v4205 = vadd.f32 0.0, %v4204
        %4206 = vmatmul.f32.gmra.mxu0 %v4095
        %v4207 = vpop.f32.mrf.mxu0
        %v4208 = vadd.f32 0.0, %v4207
        %4209 = vmatmul.f32.gmra.mxu0 %v4098
        %v4210 = vpop.f32.mrf.mxu0
        %v4211 = vadd.f32 0.0, %v4210
        %4212 = vmatmul.f32.gmra.mxu0 %v4101
        %v4213 = vpop.f32.mrf.mxu0
        %v4214 = vadd.f32 0.0, %v4213
        %4215 = vmatmul.f32.gmra.mxu0 %v4104
        %v4216 = vpop.f32.mrf.mxu0
        %v4217 = vadd.f32 0.0, %v4216
        %4218 = vmatmul.f32.gmra.mxu0 %v4107
        %v4219 = vpop.f32.mrf.mxu0
        %v4220 = vadd.f32 0.0, %v4219
        %4221 = vmatmul.f32.gmra.mxu0 %v4110
        %v4222 = vpop.f32.mrf.mxu0
        %v4223 = vadd.f32 0.0, %v4222
        %4224 = vmatmul.f32.gmra.mxu0 %v4113
        %v4225 = vpop.f32.mrf.mxu0
        %v4226 = vadd.f32 0.0, %v4225
        %4227 = vmatmul.f32.gmra.mxu0 %v4116
        %v4228 = vpop.f32.mrf.mxu0
        %v4229 = vadd.f32 0.0, %v4228
        %4230 = vmatmul.f32.gmra.mxu0 %v4119
        %v4231 = vpop.f32.mrf.mxu0
        %v4232 = vadd.f32 0.0, %v4231
        %4233 = vmatmul.f32.gmra.mxu0 %v4122
        %v4234 = vpop.f32.mrf.mxu0
        %v4235 = vadd.f32 0.0, %v4234
        %4236 = vmatmul.f32.gmra.mxu0 %v4125
        %v4237 = vpop.f32.mrf.mxu0
        %v4238 = vadd.f32 0.0, %v4237
        %4239 = vmatmul.f32.gmra.mxu0 %v4128
        %v4240 = vpop.f32.mrf.mxu0
        %v4241 = vadd.f32 0.0, %v4240
        %4242 = vmatmul.f32.gmra.mxu0 %v4131
        %v4243 = vpop.f32.mrf.mxu0
        %v4244 = vadd.f32 0.0, %v4243
        %4245 = vmatmul.f32.gmra.mxu0 %v4134
        %v4246 = vpop.f32.mrf.mxu0
        %v4247 = vadd.f32 0.0, %v4246
        %4248 = vmatmul.f32.gmra.mxu0 %v4137
        %v4249 = vpop.f32.mrf.mxu0
        %v4250 = vadd.f32 0.0, %v4249
        %4251 = vdwg.mxu0
        %s4252 = scalar_lea.vmem [#allocation4], %s2496
        %4253 = vst.msk [vmem:[%s4252] sm:$0xff] %vm3778, %v4157
        %4254 = vst.msk [vmem:[%s4252 + $0x8] sm:$0xff] %vm3778, %v4160
        %4255 = vst.msk [vmem:[%s4252 + $0x10] sm:$0xff] %vm3778, %v4163
        %4256 = vst.msk [vmem:[%s4252 + $0x18] sm:$0xff] %vm3778, %v4166
        %4257 = vst.msk [vmem:[%s4252 + $0x20] sm:$0xff] %vm3778, %v4169
        %4258 = vst.msk [vmem:[%s4252 + $0x28] sm:$0xff] %vm3778, %v4172
        %4259 = vst.msk [vmem:[%s4252 + $0x30] sm:$0xff] %vm3778, %v4175
        %4260 = vst.msk [vmem:[%s4252 + $0x38] sm:$0xff] %vm3778, %v4178
        %4261 = vst.msk [vmem:[%s4252 + $0x40] sm:$0xff] %vm3778, %v4181
        %4262 = vst.msk [vmem:[%s4252 + $0x48] sm:$0xff] %vm3778, %v4184
        %4263 = vst.msk [vmem:[%s4252 + $0x50] sm:$0xff] %vm3778, %v4187
        %4264 = vst.msk [vmem:[%s4252 + $0x58] sm:$0xff] %vm3778, %v4190
        %4265 = vst.msk [vmem:[%s4252 + $0x60] sm:$0xff] %vm3778, %v4193
        %4266 = vst.msk [vmem:[%s4252 + $0x68] sm:$0xff] %vm3778, %v4196
        %4267 = vst.msk [vmem:[%s4252 + $0x70] sm:$0xff] %vm3778, %v4199
        %4268 = vst.msk [vmem:[%s4252 + $0x78] sm:$0xff] %vm3778, %v4202
        %4269 = vst.msk [vmem:[%s4252 + $0x80] sm:$0xff] %vm3778, %v4205
        %4270 = vst.msk [vmem:[%s4252 + $0x88] sm:$0xff] %vm3778, %v4208
        %4271 = vst.msk [vmem:[%s4252 + $0x90] sm:$0xff] %vm3778, %v4211
        %4272 = vst.msk [vmem:[%s4252 + $0x98] sm:$0xff] %vm3778, %v4214
        %4273 = vst.msk [vmem:[%s4252 + $0xa0] sm:$0xff] %vm3778, %v4217
        %4274 = vst.msk [vmem:[%s4252 + $0xa8] sm:$0xff] %vm3778, %v4220
        %4275 = vst.msk [vmem:[%s4252 + $0xb0] sm:$0xff] %vm3778, %v4223
        %4276 = vst.msk [vmem:[%s4252 + $0xb8] sm:$0xff] %vm3778, %v4226
        %4277 = vst.msk [vmem:[%s4252 + $0xc0] sm:$0xff] %vm3778, %v4229
        %4278 = vst.msk [vmem:[%s4252 + $0xc8] sm:$0xff] %vm3778, %v4232
        %4279 = vst.msk [vmem:[%s4252 + $0xd0] sm:$0xff] %vm3778, %v4235
        %4280 = vst.msk [vmem:[%s4252 + $0xd8] sm:$0xff] %vm3778, %v4238
        %4281 = vst.msk [vmem:[%s4252 + $0xe0] sm:$0xff] %vm3778, %v4241
        %4282 = vst.msk [vmem:[%s4252 + $0xe8] sm:$0xff] %vm3778, %v4244
        %4283 = vst.msk [vmem:[%s4252 + $0xf0] sm:$0xff] %vm3778, %v4247
        %4284 = vst.msk [vmem:[%s4252 + $0xf8] sm:$0xff] %vm3778, %v4250
        %v4285 = vld [vmem:[#allocation5 + $0x4] sm:$0x1]
        %v4286 = vsel %vm3778, %v4157, 0.0
        %v4287 = vsel %vm3778, %v4160, 0.0
        %v4288 = vadd.f32 %v4286, %v4287
        %v4289 = vsel %vm3778, %v4163, 0.0
        %v4290 = vadd.f32 %v4288, %v4289
        %v4291 = vsel %vm3778, %v4166, 0.0
        %v4292 = vadd.f32 %v4290, %v4291
        %v4293 = vsel %vm3778, %v4169, 0.0
        %v4294 = vadd.f32 %v4292, %v4293
        %v4295 = vsel %vm3778, %v4172, 0.0
        %v4296 = vadd.f32 %v4294, %v4295
        %v4297 = vsel %vm3778, %v4175, 0.0
        %v4298 = vadd.f32 %v4296, %v4297
        %v4299 = vsel %vm3778, %v4178, 0.0
        %v4300 = vadd.f32 %v4298, %v4299
        %v4301 = vsel %vm3778, %v4181, 0.0
        %v4302 = vadd.f32 %v4300, %v4301
        %v4303 = vsel %vm3778, %v4184, 0.0
        %v4304 = vadd.f32 %v4302, %v4303
        %v4305 = vsel %vm3778, %v4187, 0.0
        %v4306 = vadd.f32 %v4304, %v4305
        %v4307 = vsel %vm3778, %v4190, 0.0
        %v4308 = vadd.f32 %v4306, %v4307
        %v4309 = vsel %vm3778, %v4193, 0.0
        %v4310 = vadd.f32 %v4308, %v4309
        %v4311 = vsel %vm3778, %v4196, 0.0
        %v4312 = vadd.f32 %v4310, %v4311
        %v4313 = vsel %vm3778, %v4199, 0.0
        %v4314 = vadd.f32 %v4312, %v4313
        %v4315 = vsel %vm3778, %v4202, 0.0
        %v4316 = vadd.f32 %v4314, %v4315
        %v4317 = vsel %vm3778, %v4205, 0.0
        %v4318 = vadd.f32 %v4316, %v4317
        %v4319 = vsel %vm3778, %v4208, 0.0
        %v4320 = vadd.f32 %v4318, %v4319
        %v4321 = vsel %vm3778, %v4211, 0.0
        %v4322 = vadd.f32 %v4320, %v4321
        %v4323 = vsel %vm3778, %v4214, 0.0
        %v4324 = vadd.f32 %v4322, %v4323
        %v4325 = vsel %vm3778, %v4217, 0.0
        %v4326 = vadd.f32 %v4324, %v4325
        %v4327 = vsel %vm3778, %v4220, 0.0
        %v4328 = vadd.f32 %v4326, %v4327
        %v4329 = vsel %vm3778, %v4223, 0.0
        %v4330 = vadd.f32 %v4328, %v4329
        %v4331 = vsel %vm3778, %v4226, 0.0
        %v4332 = vadd.f32 %v4330, %v4331
        %v4333 = vsel %vm3778, %v4229, 0.0
        %v4334 = vadd.f32 %v4332, %v4333
        %v4335 = vsel %vm3778, %v4232, 0.0
        %v4336 = vadd.f32 %v4334, %v4335
        %v4337 = vsel %vm3778, %v4235, 0.0
        %v4338 = vadd.f32 %v4336, %v4337
        %v4339 = vsel %vm3778, %v4238, 0.0
        %v4340 = vadd.f32 %v4338, %v4339
        %v4341 = vsel %vm3778, %v4241, 0.0
        %v4342 = vadd.f32 %v4340, %v4341
        %v4343 = vsel %vm3778, %v4244, 0.0
        %v4344 = vadd.f32 %v4342, %v4343
        %v4345 = vsel %vm3778, %v4247, 0.0
        %v4346 = vadd.f32 %v4344, %v4345
        %v4347 = vsel %vm3778, %v4250, 0.0
        %v4348 = vadd.f32 %v4346, %v4347
        %v4349 = vrot.slane %v4348, 4
        %v4350 = vadd.f32 %v4348, %v4349
        %v4351 = vrot.slane %v4350, 2
        %v4352 = vadd.f32 %v4350, %v4351
        %v4353 = vrot.slane %v4352, 1
        %v4354 = vadd.f32 %v4352, %v4353
        %v4355 = vadd.f32 %v4285, %v4354
        %vm4356 = vcmask 57344
        %4357 = vst.msk [vmem:[#allocation5 + $0x4] sm:$0x1] %vm4356, %v4355
        %v4358 = vld [vmem:[#allocation5 + $0x5] sm:$0x1]
        %v4359 = vmul.f32 %v4157, %v4157
        %v4360 = vmul.f32 %v4160, %v4160
        %v4361 = vmul.f32 %v4163, %v4163
        %v4362 = vmul.f32 %v4166, %v4166
        %v4363 = vmul.f32 %v4169, %v4169
        %v4364 = vmul.f32 %v4172, %v4172
        %v4365 = vmul.f32 %v4175, %v4175
        %v4366 = vmul.f32 %v4178, %v4178
        %v4367 = vmul.f32 %v4181, %v4181
        %v4368 = vmul.f32 %v4184, %v4184
        %v4369 = vmul.f32 %v4187, %v4187
        %v4370 = vmul.f32 %v4190, %v4190
        %v4371 = vmul.f32 %v4193, %v4193
        %v4372 = vmul.f32 %v4196, %v4196
        %v4373 = vmul.f32 %v4199, %v4199
        %v4374 = vmul.f32 %v4202, %v4202
        %v4375 = vmul.f32 %v4205, %v4205
        %v4376 = vmul.f32 %v4208, %v4208
        %v4377 = vmul.f32 %v4211, %v4211
        %v4378 = vmul.f32 %v4214, %v4214
        %v4379 = vmul.f32 %v4217, %v4217
        %v4380 = vmul.f32 %v4220, %v4220
        %v4381 = vmul.f32 %v4223, %v4223
        %v4382 = vmul.f32 %v4226, %v4226
        %v4383 = vmul.f32 %v4229, %v4229
        %v4384 = vmul.f32 %v4232, %v4232
        %v4385 = vmul.f32 %v4235, %v4235
        %v4386 = vmul.f32 %v4238, %v4238
        %v4387 = vmul.f32 %v4241, %v4241
        %v4388 = vmul.f32 %v4244, %v4244
        %v4389 = vmul.f32 %v4247, %v4247
        %v4390 = vmul.f32 %v4250, %v4250
        %v4391 = vsel %vm3778, %v4359, 0.0
        %v4392 = vsel %vm3778, %v4360, 0.0
        %v4393 = vadd.f32 %v4391, %v4392
        %v4394 = vsel %vm3778, %v4361, 0.0
        %v4395 = vadd.f32 %v4393, %v4394
        %v4396 = vsel %vm3778, %v4362, 0.0
        %v4397 = vadd.f32 %v4395, %v4396
        %v4398 = vsel %vm3778, %v4363, 0.0
        %v4399 = vadd.f32 %v4397, %v4398
        %v4400 = vsel %vm3778, %v4364, 0.0
        %v4401 = vadd.f32 %v4399, %v4400
        %v4402 = vsel %vm3778, %v4365, 0.0
        %v4403 = vadd.f32 %v4401, %v4402
        %v4404 = vsel %vm3778, %v4366, 0.0
        %v4405 = vadd.f32 %v4403, %v4404
        %v4406 = vsel %vm3778, %v4367, 0.0
        %v4407 = vadd.f32 %v4405, %v4406
        %v4408 = vsel %vm3778, %v4368, 0.0
        %v4409 = vadd.f32 %v4407, %v4408
        %v4410 = vsel %vm3778, %v4369, 0.0
        %v4411 = vadd.f32 %v4409, %v4410
        %v4412 = vsel %vm3778, %v4370, 0.0
        %v4413 = vadd.f32 %v4411, %v4412
        %v4414 = vsel %vm3778, %v4371, 0.0
        %v4415 = vadd.f32 %v4413, %v4414
        %v4416 = vsel %vm3778, %v4372, 0.0
        %v4417 = vadd.f32 %v4415, %v4416
        %v4418 = vsel %vm3778, %v4373, 0.0
        %v4419 = vadd.f32 %v4417, %v4418
        %v4420 = vsel %vm3778, %v4374, 0.0
        %v4421 = vadd.f32 %v4419, %v4420
        %v4422 = vsel %vm3778, %v4375, 0.0
        %v4423 = vadd.f32 %v4421, %v4422
        %v4424 = vsel %vm3778, %v4376, 0.0
        %v4425 = vadd.f32 %v4423, %v4424
        %v4426 = vsel %vm3778, %v4377, 0.0
        %v4427 = vadd.f32 %v4425, %v4426
        %v4428 = vsel %vm3778, %v4378, 0.0
        %v4429 = vadd.f32 %v4427, %v4428
        %v4430 = vsel %vm3778, %v4379, 0.0
        %v4431 = vadd.f32 %v4429, %v4430
        %v4432 = vsel %vm3778, %v4380, 0.0
        %v4433 = vadd.f32 %v4431, %v4432
        %v4434 = vsel %vm3778, %v4381, 0.0
        %v4435 = vadd.f32 %v4433, %v4434
        %v4436 = vsel %vm3778, %v4382, 0.0
        %v4437 = vadd.f32 %v4435, %v4436
        %v4438 = vsel %vm3778, %v4383, 0.0
        %v4439 = vadd.f32 %v4437, %v4438
        %v4440 = vsel %vm3778, %v4384, 0.0
        %v4441 = vadd.f32 %v4439, %v4440
        %v4442 = vsel %vm3778, %v4385, 0.0
        %v4443 = vadd.f32 %v4441, %v4442
        %v4444 = vsel %vm3778, %v4386, 0.0
        %v4445 = vadd.f32 %v4443, %v4444
        %v4446 = vsel %vm3778, %v4387, 0.0
        %v4447 = vadd.f32 %v4445, %v4446
        %v4448 = vsel %vm3778, %v4388, 0.0
        %v4449 = vadd.f32 %v4447, %v4448
        %v4450 = vsel %vm3778, %v4389, 0.0
        %v4451 = vadd.f32 %v4449, %v4450
        %v4452 = vsel %vm3778, %v4390, 0.0
        %v4453 = vadd.f32 %v4451, %v4452
        %v4454 = vrot.slane %v4453, 4
        %v4455 = vadd.f32 %v4453, %v4454
        %v4456 = vrot.slane %v4455, 2
        %v4457 = vadd.f32 %v4455, %v4456
        %v4458 = vrot.slane %v4457, 1
        %v4459 = vadd.f32 %v4457, %v4458
        %v4460 = vadd.f32 %v4358, %v4459
        %4461 = vst.msk [vmem:[#allocation5 + $0x5] sm:$0x1] %vm4356, %v4460
      $region52: #{tpu_custom_call.1} parent=39 // pred_fallthru
        _
      %p4462 = scmp.eq.s32.totalorder %s20, 2
      // Predicated region
      $region53: #{tpu_custom_call.1} parent=39 // pred_check
        %p4463 = pneg %p4462
      $region54: #{tpu_custom_call.1} parent=39 // pred_check_branch
        %4465 = sbr.rel (%p4463) target = $region56
      $region55: #{tpu_custom_call.1} parent=39 // pred_region
        %v4466 = vld [vmem:[#allocation5 + $0x4] sm:$0x1]
        %v4467 = vld [vmem:[#allocation5 + $0x5] sm:$0x1]
        %v4468 = vld [vmem:[%s4 + $0x2] sm:$0x1]
        %v4469 = vld [vmem:[%s4 + $0x3] sm:$0x1]
        %v4470 = vmul.f32 %v4466, 0.001953125
        %v4471 = vmul.f32 %v4467, 0.001953125
        %v4472 = vmul.f32 %v4470, %v4470
        %v4473 = vsub.f32 %v4471, %v4472
        %v4474 = vmax.f32 %v4473, 0.0
        %v4475 = vadd.f32 %v4474, 1e-05
        %v4476 = vrsqrt.pop %v4475
        %v4477 = vmul.f32 %v4476, %v4475
        %v4478 = vmul.f32 %v4477, %v4476
        %v4479 = vmul.f32 0.5, %v4478
        %v4480 = vsub.f32 1.5, %v4479
        %v4481 = vmul.f32 %v4476, %v4480
        %vm4482 = vweird.f32 %v4475
        %vm4483 = vweird.f32 %v4476
        %vm4484 = vmor %vm4482, %vm4483
        %v4485 = vsel %vm4484, %v4476, %v4481
        %v4486 = vmul.f32 %v4468, %v4485
        %v4487 = vmul.f32 %v4470, %v4486
        %v4488 = vsub.f32 %v4469, %v4487
        %v4489 = vld [vmem:[#allocation5 + $0x2] sm:$0x1]
        %v4490 = vld [vmem:[#allocation5 + $0x3] sm:$0x1]
        %v4491 = vld [vmem:[%s4 + $0x4] sm:$0x1]
        %v4492 = vld [vmem:[%s4 + $0x5] sm:$0x1]
        %v4493 = vmul.f32 %v4489, 0.001953125
        %v4494 = vmul.f32 %v4490, 0.001953125
        %v4495 = vmul.f32 %v4493, %v4493
        %v4496 = vsub.f32 %v4494, %v4495
        %v4497 = vmax.f32 %v4496, 0.0
        %v4498 = vadd.f32 %v4497, 1e-05
        %v4499 = vrsqrt.pop %v4498
        %v4500 = vmul.f32 %v4499, %v4498
        %v4501 = vmul.f32 %v4500, %v4499
        %v4502 = vmul.f32 0.5, %v4501
        %v4503 = vsub.f32 1.5, %v4502
        %v4504 = vmul.f32 %v4499, %v4503
        %vm4505 = vweird.f32 %v4498
        %vm4506 = vweird.f32 %v4499
        %vm4507 = vmor %vm4505, %vm4506
        %v4508 = vsel %vm4507, %v4499, %v4504
        %v4509 = vmul.f32 %v4491, %v4508
        %v4510 = vmul.f32 %v4493, %v4509
        %v4511 = vsub.f32 %v4492, %v4510
        %s4512 = smul.u32 %s21, 256
        %s4513 = scalar_lea.vmem [#allocation4], %s4512
        %v4514 = vld [vmem:[%s4513] sm:$0xff]
        %v4515 = vld [vmem:[%s4513 + $0x8] sm:$0xff]
        %v4516 = vld [vmem:[%s4513 + $0x10] sm:$0xff]
        %v4517 = vld [vmem:[%s4513 + $0x18] sm:$0xff]
        %v4518 = vld [vmem:[%s4513 + $0x20] sm:$0xff]
        %v4519 = vld [vmem:[%s4513 + $0x28] sm:$0xff]
        %v4520 = vld [vmem:[%s4513 + $0x30] sm:$0xff]
        %v4521 = vld [vmem:[%s4513 + $0x38] sm:$0xff]
        %v4522 = vld [vmem:[%s4513 + $0x40] sm:$0xff]
        %v4523 = vld [vmem:[%s4513 + $0x48] sm:$0xff]
        %v4524 = vld [vmem:[%s4513 + $0x50] sm:$0xff]
        %v4525 = vld [vmem:[%s4513 + $0x58] sm:$0xff]
        %v4526 = vld [vmem:[%s4513 + $0x60] sm:$0xff]
        %v4527 = vld [vmem:[%s4513 + $0x68] sm:$0xff]
        %v4528 = vld [vmem:[%s4513 + $0x70] sm:$0xff]
        %v4529 = vld [vmem:[%s4513 + $0x78] sm:$0xff]
        %v4530 = vld [vmem:[%s4513 + $0x80] sm:$0xff]
        %v4531 = vld [vmem:[%s4513 + $0x88] sm:$0xff]
        %v4532 = vld [vmem:[%s4513 + $0x90] sm:$0xff]
        %v4533 = vld [vmem:[%s4513 + $0x98] sm:$0xff]
        %v4534 = vld [vmem:[%s4513 + $0xa0] sm:$0xff]
        %v4535 = vld [vmem:[%s4513 + $0xa8] sm:$0xff]
        %v4536 = vld [vmem:[%s4513 + $0xb0] sm:$0xff]
        %v4537 = vld [vmem:[%s4513 + $0xb8] sm:$0xff]
        %v4538 = vld [vmem:[%s4513 + $0xc0] sm:$0xff]
        %v4539 = vld [vmem:[%s4513 + $0xc8] sm:$0xff]
        %v4540 = vld [vmem:[%s4513 + $0xd0] sm:$0xff]
        %v4541 = vld [vmem:[%s4513 + $0xd8] sm:$0xff]
        %v4542 = vld [vmem:[%s4513 + $0xe0] sm:$0xff]
        %v4543 = vld [vmem:[%s4513 + $0xe8] sm:$0xff]
        %v4544 = vld [vmem:[%s4513 + $0xf0] sm:$0xff]
        %v4545 = vld [vmem:[%s4513 + $0xf8] sm:$0xff]
        %s4546 = scalar_lea.vmem [#allocation3], %s4512
        %v4547 = vld [vmem:[%s4546] sm:$0xff]
        %v4548 = vld [vmem:[%s4546 + $0x8] sm:$0xff]
        %v4549 = vld [vmem:[%s4546 + $0x10] sm:$0xff]
        %v4550 = vld [vmem:[%s4546 + $0x18] sm:$0xff]
        %v4551 = vld [vmem:[%s4546 + $0x20] sm:$0xff]
        %v4552 = vld [vmem:[%s4546 + $0x28] sm:$0xff]
        %v4553 = vld [vmem:[%s4546 + $0x30] sm:$0xff]
        %v4554 = vld [vmem:[%s4546 + $0x38] sm:$0xff]
        %v4555 = vld [vmem:[%s4546 + $0x40] sm:$0xff]
        %v4556 = vld [vmem:[%s4546 + $0x48] sm:$0xff]
        %v4557 = vld [vmem:[%s4546 + $0x50] sm:$0xff]
        %v4558 = vld [vmem:[%s4546 + $0x58] sm:$0xff]
        %v4559 = vld [vmem:[%s4546 + $0x60] sm:$0xff]
        %v4560 = vld [vmem:[%s4546 + $0x68] sm:$0xff]
        %v4561 = vld [vmem:[%s4546 + $0x70] sm:$0xff]
        %v4562 = vld [vmem:[%s4546 + $0x78] sm:$0xff]
        %v4563 = vld [vmem:[%s4546 + $0x80] sm:$0xff]
        %v4564 = vld [vmem:[%s4546 + $0x88] sm:$0xff]
        %v4565 = vld [vmem:[%s4546 + $0x90] sm:$0xff]
        %v4566 = vld [vmem:[%s4546 + $0x98] sm:$0xff]
        %v4567 = vld [vmem:[%s4546 + $0xa0] sm:$0xff]
        %v4568 = vld [vmem:[%s4546 + $0xa8] sm:$0xff]
        %v4569 = vld [vmem:[%s4546 + $0xb0] sm:$0xff]
        %v4570 = vld [vmem:[%s4546 + $0xb8] sm:$0xff]
        %v4571 = vld [vmem:[%s4546 + $0xc0] sm:$0xff]
        %v4572 = vld [vmem:[%s4546 + $0xc8] sm:$0xff]
        %v4573 = vld [vmem:[%s4546 + $0xd0] sm:$0xff]
        %v4574 = vld [vmem:[%s4546 + $0xd8] sm:$0xff]
        %v4575 = vld [vmem:[%s4546 + $0xe0] sm:$0xff]
        %v4576 = vld [vmem:[%s4546 + $0xe8] sm:$0xff]
        %v4577 = vld [vmem:[%s4546 + $0xf0] sm:$0xff]
        %v4578 = vld [vmem:[%s4546 + $0xf8] sm:$0xff]
        %v4579 = vperm.slane %v4486, 0
        %v4580 = vmul.f32 %v4514, %v4579
        %v4581 = vmul.f32 %v4515, %v4579
        %v4582 = vmul.f32 %v4516, %v4579
        %v4583 = vmul.f32 %v4517, %v4579
        %v4584 = vmul.f32 %v4518, %v4579
        %v4585 = vmul.f32 %v4519, %v4579
        %v4586 = vmul.f32 %v4520, %v4579
        %v4587 = vmul.f32 %v4521, %v4579
        %v4588 = vmul.f32 %v4522, %v4579
        %v4589 = vmul.f32 %v4523, %v4579
        %v4590 = vmul.f32 %v4524, %v4579
        %v4591 = vmul.f32 %v4525, %v4579
        %v4592 = vmul.f32 %v4526, %v4579
        %v4593 = vmul.f32 %v4527, %v4579
        %v4594 = vmul.f32 %v4528, %v4579
        %v4595 = vmul.f32 %v4529, %v4579
        %v4596 = vmul.f32 %v4530, %v4579
        %v4597 = vmul.f32 %v4531, %v4579
        %v4598 = vmul.f32 %v4532, %v4579
        %v4599 = vmul.f32 %v4533, %v4579
        %v4600 = vmul.f32 %v4534, %v4579
        %v4601 = vmul.f32 %v4535, %v4579
        %v4602 = vmul.f32 %v4536, %v4579
        %v4603 = vmul.f32 %v4537, %v4579
        %v4604 = vmul.f32 %v4538, %v4579
        %v4605 = vmul.f32 %v4539, %v4579
        %v4606 = vmul.f32 %v4540, %v4579
        %v4607 = vmul.f32 %v4541, %v4579
        %v4608 = vmul.f32 %v4542, %v4579
        %v4609 = vmul.f32 %v4543, %v4579
        %v4610 = vmul.f32 %v4544, %v4579
        %v4611 = vmul.f32 %v4545, %v4579
        %v4612 = vperm.slane %v4488, 0
        %v4613 = vadd.f32 %v4580, %v4612
        %v4614 = vadd.f32 %v4581, %v4612
        %v4615 = vadd.f32 %v4582, %v4612
        %v4616 = vadd.f32 %v4583, %v4612
        %v4617 = vadd.f32 %v4584, %v4612
        %v4618 = vadd.f32 %v4585, %v4612
        %v4619 = vadd.f32 %v4586, %v4612
        %v4620 = vadd.f32 %v4587, %v4612
        %v4621 = vadd.f32 %v4588, %v4612
        %v4622 = vadd.f32 %v4589, %v4612
        %v4623 = vadd.f32 %v4590, %v4612
        %v4624 = vadd.f32 %v4591, %v4612
        %v4625 = vadd.f32 %v4592, %v4612
        %v4626 = vadd.f32 %v4593, %v4612
        %v4627 = vadd.f32 %v4594, %v4612
        %v4628 = vadd.f32 %v4595, %v4612
        %v4629 = vadd.f32 %v4596, %v4612
        %v4630 = vadd.f32 %v4597, %v4612
        %v4631 = vadd.f32 %v4598, %v4612
        %v4632 = vadd.f32 %v4599, %v4612
        %v4633 = vadd.f32 %v4600, %v4612
        %v4634 = vadd.f32 %v4601, %v4612
        %v4635 = vadd.f32 %v4602, %v4612
        %v4636 = vadd.f32 %v4603, %v4612
        %v4637 = vadd.f32 %v4604, %v4612
        %v4638 = vadd.f32 %v4605, %v4612
        %v4639 = vadd.f32 %v4606, %v4612
        %v4640 = vadd.f32 %v4607, %v4612
        %v4641 = vadd.f32 %v4608, %v4612
        %v4642 = vadd.f32 %v4609, %v4612
        %v4643 = vadd.f32 %v4610, %v4612
        %v4644 = vadd.f32 %v4611, %v4612
        %v4645 = vperm.slane %v4509, 0
        %v4646 = vmul.f32 %v4547, %v4645
        %v4647 = vmul.f32 %v4548, %v4645
        %v4648 = vmul.f32 %v4549, %v4645
        %v4649 = vmul.f32 %v4550, %v4645
        %v4650 = vmul.f32 %v4551, %v4645
        %v4651 = vmul.f32 %v4552, %v4645
        %v4652 = vmul.f32 %v4553, %v4645
        %v4653 = vmul.f32 %v4554, %v4645
        %v4654 = vmul.f32 %v4555, %v4645
        %v4655 = vmul.f32 %v4556, %v4645
        %v4656 = vmul.f32 %v4557, %v4645
        %v4657 = vmul.f32 %v4558, %v4645
        %v4658 = vmul.f32 %v4559, %v4645
        %v4659 = vmul.f32 %v4560, %v4645
        %v4660 = vmul.f32 %v4561, %v4645
        %v4661 = vmul.f32 %v4562, %v4645
        %v4662 = vmul.f32 %v4563, %v4645
        %v4663 = vmul.f32 %v4564, %v4645
        %v4664 = vmul.f32 %v4565, %v4645
        %v4665 = vmul.f32 %v4566, %v4645
        %v4666 = vmul.f32 %v4567, %v4645
        %v4667 = vmul.f32 %v4568, %v4645
        %v4668 = vmul.f32 %v4569, %v4645
        %v4669 = vmul.f32 %v4570, %v4645
        %v4670 = vmul.f32 %v4571, %v4645
        %v4671 = vmul.f32 %v4572, %v4645
        %v4672 = vmul.f32 %v4573, %v4645
        %v4673 = vmul.f32 %v4574, %v4645
        %v4674 = vmul.f32 %v4575, %v4645
        %v4675 = vmul.f32 %v4576, %v4645
        %v4676 = vmul.f32 %v4577, %v4645
        %v4677 = vmul.f32 %v4578, %v4645
        %v4678 = vadd.f32 %v4613, %v4646
        %v4679 = vadd.f32 %v4614, %v4647
        %v4680 = vadd.f32 %v4615, %v4648
        %v4681 = vadd.f32 %v4616, %v4649
        %v4682 = vadd.f32 %v4617, %v4650
        %v4683 = vadd.f32 %v4618, %v4651
        %v4684 = vadd.f32 %v4619, %v4652
        %v4685 = vadd.f32 %v4620, %v4653
        %v4686 = vadd.f32 %v4621, %v4654
        %v4687 = vadd.f32 %v4622, %v4655
        %v4688 = vadd.f32 %v4623, %v4656
        %v4689 = vadd.f32 %v4624, %v4657
        %v4690 = vadd.f32 %v4625, %v4658
        %v4691 = vadd.f32 %v4626, %v4659
        %v4692 = vadd.f32 %v4627, %v4660
        %v4693 = vadd.f32 %v4628, %v4661
        %v4694 = vadd.f32 %v4629, %v4662
        %v4695 = vadd.f32 %v4630, %v4663
        %v4696 = vadd.f32 %v4631, %v4664
        %v4697 = vadd.f32 %v4632, %v4665
        %v4698 = vadd.f32 %v4633, %v4666
        %v4699 = vadd.f32 %v4634, %v4667
        %v4700 = vadd.f32 %v4635, %v4668
        %v4701 = vadd.f32 %v4636, %v4669
        %v4702 = vadd.f32 %v4637, %v4670
        %v4703 = vadd.f32 %v4638, %v4671
        %v4704 = vadd.f32 %v4639, %v4672
        %v4705 = vadd.f32 %v4640, %v4673
        %v4706 = vadd.f32 %v4641, %v4674
        %v4707 = vadd.f32 %v4642, %v4675
        %v4708 = vadd.f32 %v4643, %v4676
        %v4709 = vadd.f32 %v4644, %v4677
        %v4710 = vperm.slane %v4511, 0
        %v4711 = vadd.f32 %v4678, %v4710
        %v4712 = vadd.f32 %v4679, %v4710
        %v4713 = vadd.f32 %v4680, %v4710
        %v4714 = vadd.f32 %v4681, %v4710
        %v4715 = vadd.f32 %v4682, %v4710
        %v4716 = vadd.f32 %v4683, %v4710
        %v4717 = vadd.f32 %v4684, %v4710
        %v4718 = vadd.f32 %v4685, %v4710
        %v4719 = vadd.f32 %v4686, %v4710
        %v4720 = vadd.f32 %v4687, %v4710
        %v4721 = vadd.f32 %v4688, %v4710
        %v4722 = vadd.f32 %v4689, %v4710
        %v4723 = vadd.f32 %v4690, %v4710
        %v4724 = vadd.f32 %v4691, %v4710
        %v4725 = vadd.f32 %v4692, %v4710
        %v4726 = vadd.f32 %v4693, %v4710
        %v4727 = vadd.f32 %v4694, %v4710
        %v4728 = vadd.f32 %v4695, %v4710
        %v4729 = vadd.f32 %v4696, %v4710
        %v4730 = vadd.f32 %v4697, %v4710
        %v4731 = vadd.f32 %v4698, %v4710
        %v4732 = vadd.f32 %v4699, %v4710
        %v4733 = vadd.f32 %v4700, %v4710
        %v4734 = vadd.f32 %v4701, %v4710
        %v4735 = vadd.f32 %v4702, %v4710
        %v4736 = vadd.f32 %v4703, %v4710
        %v4737 = vadd.f32 %v4704, %v4710
        %v4738 = vadd.f32 %v4705, %v4710
        %v4739 = vadd.f32 %v4706, %v4710
        %v4740 = vadd.f32 %v4707, %v4710
        %v4741 = vadd.f32 %v4708, %v4710
        %v4742 = vadd.f32 %v4709, %v4710
        %v4743 = vmax.f32 %v4711, 0.0
        %v4744 = vmax.f32 %v4712, 0.0
        %v4745 = vmax.f32 %v4713, 0.0
        %v4746 = vmax.f32 %v4714, 0.0
        %v4747 = vmax.f32 %v4715, 0.0
        %v4748 = vmax.f32 %v4716, 0.0
        %v4749 = vmax.f32 %v4717, 0.0
        %v4750 = vmax.f32 %v4718, 0.0
        %v4751 = vmax.f32 %v4719, 0.0
        %v4752 = vmax.f32 %v4720, 0.0
        %v4753 = vmax.f32 %v4721, 0.0
        %v4754 = vmax.f32 %v4722, 0.0
        %v4755 = vmax.f32 %v4723, 0.0
        %v4756 = vmax.f32 %v4724, 0.0
        %v4757 = vmax.f32 %v4725, 0.0
        %v4758 = vmax.f32 %v4726, 0.0
        %v4759 = vmax.f32 %v4727, 0.0
        %v4760 = vmax.f32 %v4728, 0.0
        %v4761 = vmax.f32 %v4729, 0.0
        %v4762 = vmax.f32 %v4730, 0.0
        %v4763 = vmax.f32 %v4731, 0.0
        %v4764 = vmax.f32 %v4732, 0.0
        %v4765 = vmax.f32 %v4733, 0.0
        %v4766 = vmax.f32 %v4734, 0.0
        %v4767 = vmax.f32 %v4735, 0.0
        %v4768 = vmax.f32 %v4736, 0.0
        %v4769 = vmax.f32 %v4737, 0.0
        %v4770 = vmax.f32 %v4738, 0.0
        %v4771 = vmax.f32 %v4739, 0.0
        %v4772 = vmax.f32 %v4740, 0.0
        %v4773 = vmax.f32 %v4741, 0.0
        %v4774 = vmax.f32 %v4742, 0.0
        %vm4775 = vcmask 64512
        %4776 = vst.msk [vmem:[%s258] sm:$0xff] %vm4775, %v4743
        %4777 = vst.msk [vmem:[%s258 + $0x8] sm:$0xff] %vm4775, %v4744
        %4778 = vst.msk [vmem:[%s258 + $0x10] sm:$0xff] %vm4775, %v4745
        %4779 = vst.msk [vmem:[%s258 + $0x18] sm:$0xff] %vm4775, %v4746
        %4780 = vst.msk [vmem:[%s258 + $0x20] sm:$0xff] %vm4775, %v4747
        %4781 = vst.msk [vmem:[%s258 + $0x28] sm:$0xff] %vm4775, %v4748
        %4782 = vst.msk [vmem:[%s258 + $0x30] sm:$0xff] %vm4775, %v4749
        %4783 = vst.msk [vmem:[%s258 + $0x38] sm:$0xff] %vm4775, %v4750
        %4784 = vst.msk [vmem:[%s258 + $0x40] sm:$0xff] %vm4775, %v4751
        %4785 = vst.msk [vmem:[%s258 + $0x48] sm:$0xff] %vm4775, %v4752
        %4786 = vst.msk [vmem:[%s258 + $0x50] sm:$0xff] %vm4775, %v4753
        %4787 = vst.msk [vmem:[%s258 + $0x58] sm:$0xff] %vm4775, %v4754
        %4788 = vst.msk [vmem:[%s258 + $0x60] sm:$0xff] %vm4775, %v4755
        %4789 = vst.msk [vmem:[%s258 + $0x68] sm:$0xff] %vm4775, %v4756
        %4790 = vst.msk [vmem:[%s258 + $0x70] sm:$0xff] %vm4775, %v4757
        %4791 = vst.msk [vmem:[%s258 + $0x78] sm:$0xff] %vm4775, %v4758
        %4792 = vst.msk [vmem:[%s258 + $0x80] sm:$0xff] %vm4775, %v4759
        %4793 = vst.msk [vmem:[%s258 + $0x88] sm:$0xff] %vm4775, %v4760
        %4794 = vst.msk [vmem:[%s258 + $0x90] sm:$0xff] %vm4775, %v4761
        %4795 = vst.msk [vmem:[%s258 + $0x98] sm:$0xff] %vm4775, %v4762
        %4796 = vst.msk [vmem:[%s258 + $0xa0] sm:$0xff] %vm4775, %v4763
        %4797 = vst.msk [vmem:[%s258 + $0xa8] sm:$0xff] %vm4775, %v4764
        %4798 = vst.msk [vmem:[%s258 + $0xb0] sm:$0xff] %vm4775, %v4765
        %4799 = vst.msk [vmem:[%s258 + $0xb8] sm:$0xff] %vm4775, %v4766
        %4800 = vst.msk [vmem:[%s258 + $0xc0] sm:$0xff] %vm4775, %v4767
        %4801 = vst.msk [vmem:[%s258 + $0xc8] sm:$0xff] %vm4775, %v4768
        %4802 = vst.msk [vmem:[%s258 + $0xd0] sm:$0xff] %vm4775, %v4769
        %4803 = vst.msk [vmem:[%s258 + $0xd8] sm:$0xff] %vm4775, %v4770
        %4804 = vst.msk [vmem:[%s258 + $0xe0] sm:$0xff] %vm4775, %v4771
        %4805 = vst.msk [vmem:[%s258 + $0xe8] sm:$0xff] %vm4775, %v4772
        %4806 = vst.msk [vmem:[%s258 + $0xf0] sm:$0xff] %vm4775, %v4773
        %4807 = vst.msk [vmem:[%s258 + $0xf8] sm:$0xff] %vm4775, %v4774
      $region56: #{tpu_custom_call.1} parent=39 // pred_fallthru
        _
      %p4808 = scmp.eq.s32.totalorder %s20, 2
      %s4809 = scalar_select %p4808, %s21, 0
      %p4810 = scmp.lt.s32.totalorder %s4809, 1
      %s4811 = scalar_select %p4810, %s4809, 1
      %s4812 = smul.addr %s4811, 32
      %s4813 = smul.addr %s4812, 8
      %s4814 = scalar_lea.vmem %s5, %s4813
      // Predicated region
      $region57: #{tpu_custom_call.1} parent=39 // pred_check
        %p4815 = pneg %p164
      $region58: #{tpu_custom_call.1} parent=39 // pred_check_branch
        %4817 = sbr.rel (%p4815) target = $region60
      $region59: #{tpu_custom_call.1} parent=39 // pred_region
        %p4818 = scmp.eq.s32.totalorder %s20, 2
        %s4819 = scalar_select %p4818, %s21, 0
      $region60: #{tpu_custom_call.1} parent=39 // pred_fallthru
        _
    $region40: #{tpu_custom_call.1} parent=5 // pred_fallthru
      _
    %p4820 = scmp.le.s32.totalorder 2, %s11
    // Predicated region
    $region61: #{tpu_custom_call.1} parent=5 // pred_check
      %p4821 = pneg %p4820
    $region62: #{tpu_custom_call.1} parent=5 // pred_check_branch
      %4823 = sbr.rel (%p4821) target = $region64
    $region63: #{tpu_custom_call.1} parent=5 // pred_region
      %s4824 = ssub.s32 %s11, 2
      // Predicated region
      $region65: #{tpu_custom_call.1} parent=63 // pred_check
        %p4825 = pneg %p170
      $region66: #{tpu_custom_call.1} parent=63 // pred_check_branch
        %4827 = sbr.rel (%p4825) target = $region68
      $region67: #{tpu_custom_call.1} parent=63 // pred_region
        %p4828 = scmp.eq.s32.totalorder %s22, 2
        %s4829 = scalar_select %p4828, %s23, 0
        %p4830 = scmp.lt.s32.totalorder %s4829, 1
        %s4831 = scalar_select %p4830, %s4829, 1
        %s4832 = smul.addr %s4831, 32
        %s4833 = smul.addr %s4832, 8
        %s4834 = scalar_lea.vmem %s5, %s4833
      $region68: #{tpu_custom_call.1} parent=63 // pred_fallthru
        _
    $region64: #{tpu_custom_call.1} parent=5 // pred_fallthru
      _
  $region6: #{tpu_custom_call.1} parent=0 // loop_footer
    %s15 = sadd.s32 1, %s11
  $region7: #{tpu_custom_call.1} parent=0 // loop_footer_branch
    %10 = sbr.rel target = $region3
  $region8: #{tpu_custom_call.1} parent=0 // loop_exit
    _

</llo_original>
